<compile_context>
chip_gen: v6e
topology: v6e:2x2x1
jax: 0.10.0
libtpu: 0.0.40
codegen_flags: <defaults>
</compile_context>

<pallas_src>
import math

import jax
import jax.numpy as jnp
import numpy as np
from jax.experimental import pallas as pl
from jax.experimental.pallas import tpu as pltpu

# ---- module hyper-parameters (implied by the PyTorch code) -------------------
IN_DIM = 1024          # encoder nn.Linear(1024, 256)
HIDDEN = 256           # config['Architecture']['hidden_size']
NUM_HEADS = 4          # config['Architecture']['num_attention_heads']
HEAD_DIM = HIDDEN // NUM_HEADS
LN_EPS = 1e-12


def _gelu(x):
    # exact (erf) gelu, matches torch.nn.GELU() / the file-level gelu()
    return x * 0.5 * (1.0 + jax.lax.erf(x / math.sqrt(2.0)))


def _heads_major(x3):   # [M, H, D] -> [H, M, D]
    if hasattr(pltpu, "einshape"):
        return pltpu.einshape("mhd->hmd", x3)
    return jnp.swapaxes(x3, 0, 1)


def _seq_major(x3):     # [H, M, D] -> [M, H, D]
    if hasattr(pltpu, "einshape"):
        return pltpu.einshape("hmd->mhd", x3)
    return jnp.swapaxes(x3, 0, 1)


def protein_encoder_kernel(
    pf_ref,        # [TB, S, IN_DIM]   f32 or bf16
    amask_ref,     # [TB, 1, S]        f32 additive attention mask (over keys)
    pmask_ref,     # [TB, S, 1]        f32 0/1 token mask
    w1_ref, b1_ref,          # [IN_DIM, HIDDEN] bf16, [1, HIDDEN] f32
    wqkv_ref, bqkv_ref,      # [HIDDEN, 3*HIDDEN] bf16, [1, 3*HIDDEN] f32
    wo_ref, bo_ref,          # [HIDDEN, HIDDEN] bf16, [1, HIDDEN] f32
    gamma_ref, beta_ref,     # LayerNorm affine, [1, HIDDEN] f32
    out_ref,       # [TB, S, HIDDEN]
):
    TB, S, _ = pf_ref.shape
    M = TB * S
    HB = NUM_HEADS * TB           # (head, sequence) folded attention batch

    x = pf_ref[...].reshape(M, IN_DIM)
    pmask = pmask_ref[...].reshape(M, 1)               # [M, 1]

    # ---- encoder: linear -> mask -> gelu (dropout = identity, eval) ----------
    h = jnp.dot(x.astype(jnp.bfloat16), w1_ref[...],
                preferred_element_type=jnp.float32) + b1_ref[...]
    h = _gelu(h * pmask)                                # f32 [M, HIDDEN]

    # ---- fused Q/K/V projection: one N=768 matmul -----------------------------
    qkv = jnp.dot(h.astype(jnp.bfloat16), wqkv_ref[...],
                  preferred_element_type=jnp.float32) + bqkv_ref[...]
    q = qkv[:, 0 * HIDDEN:1 * HIDDEN]                   # 128-lane aligned slices
    k = qkv[:, 1 * HIDDEN:2 * HIDDEN]
    v = qkv[:, 2 * HIDDEN:3 * HIDDEN]

    def to_heads(t):
        # [M, HIDDEN] -> [H, M, D] (one layout transform) -> [H*TB, S, D] (pure view)
        t = _heads_major(t.reshape(M, NUM_HEADS, HEAD_DIM))
        return t.reshape(HB, S, HEAD_DIM).astype(jnp.bfloat16)

    qh = to_heads(q)
    kh = to_heads(k)
    vh = to_heads(v)

    inv_sqrt_d = 1.0 / math.sqrt(HEAD_DIM)
    # ---- batched attention over all (head, sequence) pairs at once ------------
    scores = jnp.einsum("bqd,bkd->bqk", qh, kh,
                        preferred_element_type=jnp.float32) * inv_sqrt_d
    # additive key mask: [TB,1,S] -> [1,TB,1,S] broadcasts over heads & queries
    scores = scores.reshape(NUM_HEADS, TB, S, S) + amask_ref[...][None]

    # softmax over keys; reductions on a dense 2-D [H*TB*Sq, Sk] view
    s2 = scores.reshape(HB * S, S)
    mx = jnp.max(s2, axis=-1, keepdims=True)
    e = jnp.exp(s2 - mx)
    p2 = e * pl.reciprocal(jnp.sum(e, axis=-1, keepdims=True), approx=True)

    # query-row mask (torch: probs * tmp_mask.unsqueeze(1).unsqueeze(3)); dropout=id
    probs = p2.reshape(NUM_HEADS, TB, S, S) * pmask_ref[...][None]

    ctx = jnp.einsum("bqk,bkd->bqd",
                     probs.reshape(HB, S, S).astype(jnp.bfloat16), vh,
                     preferred_element_type=jnp.float32)          # [HB, S, D]
    ctx = _seq_major(ctx.reshape(NUM_HEADS, M, HEAD_DIM)).reshape(M, HIDDEN)

    # ---- BertAttOutput: dense -> (dropout=id) -> LayerNorm(residual) -> gelu --
    d = jnp.dot(ctx.astype(jnp.bfloat16), wo_ref[...],
                preferred_element_type=jnp.float32) + bo_ref[...]
    y = d + h
    mean = jnp.mean(y, axis=-1, keepdims=True)
    var = jnp.mean((y - mean) ** 2, axis=-1, keepdims=True)
    yn = (y - mean) * jax.lax.rsqrt(var + LN_EPS)
    yn = yn * gamma_ref[...] + beta_ref[...]
    act = _gelu(yn)

    # pocket_mask is exactly 0/1 (invariant!), so a single multiply equals the
    # original stack's double multiply.
    out = act * pmask
    out_ref[...] = out.reshape(TB, S, HIDDEN).astype(out_ref.dtype)


def _pick_tb(B, S, max_rows=512, mxu_rows=256):
    """Batch-block size TB (divides B).

    * Maximize M = TB*S up to `max_rows` (>= 2x a 256-row MXU tile; the 512-row
      block plus intermediates stays well inside even v7x's 64 MiB VMEM).
    * Keep >= 2 grid steps (v7x has two TensorCores) only when that does NOT
      shrink M below one MXU tile, or when the whole problem is smaller than one
      tile anyway (the ~0.35 us/step overhead is then negligible).  On 1-TC
      v5e/v6e the extra step at >= 256 rows costs essentially nothing.
    """
    divisors = [d for d in range(1, B + 1) if B % d == 0]
    fits = [d for d in divisors if d * S <= max_rows] or [1]
    tb = max(fits)
    if B // tb >= 2:
        return tb
    for d in sorted(fits, reverse=True):
        if B // d >= 2 and (d * S >= mxu_rows or B * S < mxu_rows):
            return d
    return tb


def _vmem_limit_bytes(TB, S, pf_itemsize):
    """Actual block bytes (x2 pipeline buffers) + weights + f32 intermediates,
    with headroom; floored at 32 MiB (v5e default scoped limit is 16 MiB) and
    capped at 48 MiB (inside v7x's 64 MiB physical VMEM)."""
    M = TB * S
    blocks = (M * IN_DIM * pf_itemsize          # pf block
              + TB * S * 4 * 2                  # the two masks (f32)
              + M * HIDDEN * 4)                 # output block (f32)
    weights = (2 * (IN_DIM * HIDDEN + HIDDEN * 3 * HIDDEN + HIDDEN * HIDDEN)
               + 4 * 8 * HIDDEN)                # bf16 weights + f32 biases/LN
    inter = 4 * M * (10 * HIDDEN) + 4 * NUM_HEADS * M * S * 3   # f32 temporaries
    need = 2 * (blocks + weights) + inter
    return int(min(max(2 * need, 32 * 2**20), 48 * 2**20))


def protein_encoder_forward(pf, attn_mask_add, pocket_mask, params,
                            out_dtype=jnp.float32):
    """pf: [B,S,1024] (f32 or bf16 -- pass bf16 directly, no wrapper cast is added);
    attn_mask_add: [B,1,S] additive; pocket_mask: [B,S] of exactly 0/1."""
    B, S, _ = pf.shape
    TB = _pick_tb(B, S)

    pmask3 = pocket_mask.reshape(B, S, 1).astype(jnp.float32)
    amask3 = attn_mask_add.reshape(B, 1, S).astype(jnp.float32)

    # bf16 weights in HBM/VMEM (halves weight traffic); biases / LN params stay f32
    w1 = params["w1"].astype(jnp.bfloat16)
    wqkv = jnp.concatenate([params["wq"], params["wk"], params["wv"]],
                           axis=1).astype(jnp.bfloat16)           # [256, 768]
    wo = params["wo"].astype(jnp.bfloat16)
    b1 = params["b1"].reshape(1, -1)
    bqkv = jnp.concatenate([params["bq"], params["bk"], params["bv"]]).reshape(1, -1)
    bo = params["bo"].reshape(1, -1)
    gamma = params["ln_g"].reshape(1, -1)
    beta = params["ln_b"].reshape(1, -1)

    # Constant-index weight blocks: DMA'd once (index_map is constant).
    w_full = lambda shape: pl.BlockSpec(shape, lambda b: tuple(0 for _ in shape))
    in_specs = [
        pl.BlockSpec((TB, S, IN_DIM), lambda b: (b, 0, 0)),
        pl.BlockSpec((TB, 1, S), lambda b: (b, 0, 0)),
        pl.BlockSpec((TB, S, 1), lambda b: (b, 0, 0)),
        w_full((IN_DIM, HIDDEN)), w_full((1, HIDDEN)),
        w_full((HIDDEN, 3 * HIDDEN)), w_full((1, 3 * HIDDEN)),
        w_full((HIDDEN, HIDDEN)), w_full((1, HIDDEN)),
        w_full((1, HIDDEN)), w_full((1, HIDDEN)),
    ]

    flops = 2 * B * S * (IN_DIM * HIDDEN + HIDDEN * 3 * HIDDEN
                         + 2 * S * HIDDEN + HIDDEN * HIDDEN)
    transcendentals = B * S * (2 * HIDDEN + NUM_HEADS * S)
    pf_isz = jnp.dtype(pf.dtype).itemsize
    bytes_accessed = (
        pf_isz * B * S * IN_DIM + 4 * (B * S + B * S + B * S * HIDDEN)
        + 2 * (IN_DIM * HIDDEN + HIDDEN * 3 * HIDDEN + HIDDEN * HIDDEN)
        + 4 * (7 * HIDDEN))

    return pl.pallas_call(
        protein_encoder_kernel,
        out_shape=jax.ShapeDtypeStruct((B, S, HIDDEN), out_dtype),
        grid_spec=pltpu.PrefetchScalarGridSpec(
            num_scalar_prefetch=0,
            grid=(B // TB,),
            in_specs=in_specs,
            out_specs=pl.BlockSpec((TB, S, HIDDEN), lambda b: (b, 0, 0)),
        ),
        compiler_params=pltpu.CompilerParams(
            dimension_semantics=("parallel",),
            vmem_limit_bytes=_vmem_limit_bytes(TB, S, pf_isz),
        ),
        cost_estimate=pl.CostEstimate(
            flops=flops, transcendentals=transcendentals,
            bytes_accessed=bytes_accessed),
    )(
        pf, amask3, pmask3,
        w1, b1, wqkv, bqkv, wo, bo, gamma, beta,
    )


# ---- plain-JAX reference (mirrors the PyTorch forward in eval mode) ----------
def reference_forward(pf, attn_mask_add, pocket_mask, params,
                      matmul_dtype=jnp.float32):
    def mm(a, w):
        return jnp.dot(a.astype(matmul_dtype), w.astype(matmul_dtype),
                       preferred_element_type=jnp.float32)

    pm = pocket_mask[..., None].astype(jnp.float32)           # [B,S,1]
    h = mm(pf, params["w1"]) + params["b1"]
    h = _gelu(h * pm)
    B, S, _ = h.shape
    q = (mm(h, params["wq"]) + params["bq"]).reshape(B, S, NUM_HEADS, HEAD_DIM).transpose(0, 2, 1, 3)
    k = (mm(h, params["wk"]) + params["bk"]).reshape(B, S, NUM_HEADS, HEAD_DIM).transpose(0, 2, 1, 3)
    v = (mm(h, params["wv"]) + params["bv"]).reshape(B, S, NUM_HEADS, HEAD_DIM).transpose(0, 2, 1, 3)
    scores = jnp.einsum("bhqd,bhkd->bhqk",
                        q.astype(matmul_dtype), k.astype(matmul_dtype),
                        preferred_element_type=jnp.float32) / math.sqrt(HEAD_DIM)
    scores = scores + attn_mask_add[:, None, :, :]            # broadcast over heads/queries
    probs = jax.nn.softmax(scores, axis=-1)
    probs = probs * pocket_mask[:, None, :, None]
    ctx = jnp.einsum("bhqk,bhkd->bhqd",
                     probs.astype(matmul_dtype), v.astype(matmul_dtype),
                     preferred_element_type=jnp.float32).transpose(0, 2, 1, 3).reshape(B, S, HIDDEN)
    d = mm(ctx, params["wo"]) + params["bo"]
    y = d + h
    mean = jnp.mean(y, axis=-1, keepdims=True)
    var = jnp.mean((y - mean) ** 2, axis=-1, keepdims=True)
    yn = (y - mean) / jnp.sqrt(var + LN_EPS)
    yn = yn * params["ln_g"] + params["ln_b"]
    out = _gelu(yn) * pm
    out = out * pm          # original module stack applies the 0/1 mask twice
    return out


def init_params(key):
    ks = jax.random.split(key, 10)

    def lin(k, fan_in, fan_out):
        bound = 1.0 / math.sqrt(fan_in)
        kw, kb = jax.random.split(k)
        w = jax.random.uniform(kw, (fan_in, fan_out), jnp.float32, -bound, bound)
        b = jax.random.uniform(kb, (fan_out,), jnp.float32, -bound, bound)
        return w, b

    p = {}
    p["w1"], p["b1"] = lin(ks[0], IN_DIM, HIDDEN)
    p["wq"], p["bq"] = lin(ks[1], HIDDEN, HIDDEN)
    p["wk"], p["bk"] = lin(ks[2], HIDDEN, HIDDEN)
    p["wv"], p["bv"] = lin(ks[3], HIDDEN, HIDDEN)
    p["wo"], p["bo"] = lin(ks[4], HIDDEN, HIDDEN)
    p["ln_g"] = jnp.ones((HIDDEN,), jnp.float32)
    p["ln_b"] = jnp.zeros((HIDDEN,), jnp.float32)
    return p


if __name__ == "__main__":
    B, S = 4, 8                      # _pick_tb -> TB=2, grid=2: exercises batch blocking
    key = jax.random.PRNGKey(0)
    kp, kx, km = jax.random.split(key, 3)

    params = init_params(kp)
    protein_features = jax.random.normal(kx, (B, S, IN_DIM), jnp.float32)
    pocket_mask = (jax.random.uniform(km, (B, S)) > 0.3).astype(jnp.float32)
    pocket_mask = pocket_mask.at[:, 0].set(1.0)
    pocket_attention_mask = (1.0 - pocket_mask)[:, None, :] * -10000.0

    out = protein_encoder_forward(protein_features, pocket_attention_mask,
                                  pocket_mask, params)
    out = jax.block_until_ready(out)

    # (1) reference whose matmul operands are bf16 like the kernel -> tight check
    ref_bf16 = reference_forward(protein_features, pocket_attention_mask,
                                 pocket_mask, params, matmul_dtype=jnp.bfloat16)
    np.testing.assert_allclose(np.asarray(out), np.asarray(ref_bf16),
                               rtol=1e-2, atol=1e-2)
    # (2) full-f32 reference -> only bf16 precision drift expected
    ref_f32 = reference_forward(protein_features, pocket_attention_mask,
                                pocket_mask, params, matmul_dtype=jnp.float32)
    np.testing.assert_allclose(np.asarray(out), np.asarray(ref_f32),
                               rtol=6e-2, atol=6e-2)
    print("KERNEL_OK")
</pallas_src>

<mosaic_0001>
module attributes {stable_mosaic.version = 11 : i64} {
  func.func @protein_encoder_kernel(%arg0: i32, %arg1: memref<2x8x1024xf32, #tpu.memory_space<vmem>>, %arg2: memref<2x1x8xf32, #tpu.memory_space<vmem>>, %arg3: memref<2x8x1xf32, #tpu.memory_space<vmem>>, %arg4: memref<1024x256xbf16, #tpu.memory_space<vmem>>, %arg5: memref<1x256xf32, #tpu.memory_space<vmem>>, %arg6: memref<256x768xbf16, #tpu.memory_space<vmem>>, %arg7: memref<1x768xf32, #tpu.memory_space<vmem>>, %arg8: memref<256x256xbf16, #tpu.memory_space<vmem>>, %arg9: memref<1x256xf32, #tpu.memory_space<vmem>>, %arg10: memref<1x256xf32, #tpu.memory_space<vmem>>, %arg11: memref<1x256xf32, #tpu.memory_space<vmem>>, %arg12: memref<2x8x256xf32, #tpu.memory_space<vmem>>) attributes {dimension_semantics = [#tpu.dimension_semantics<parallel>], iteration_bounds = array<i64: 2>, scalar_prefetch = 0 : i64, scratch_operands = 0 : i64, tpu.core_type = #tpu.core_type<tc>, window_params = [{transform_indices = @transform_0, window_bounds = array<i64: 2, 8, 1024>}, {transform_indices = @transform_1, window_bounds = array<i64: 2, 1, 8>}, {transform_indices = @transform_2, window_bounds = array<i64: 2, 8, 1>}, {pipeline_mode = #tpu.pipeline_mode<synchronous>, transform_indices = @transform_3, window_bounds = array<i64: 1024, 256>}, {pipeline_mode = #tpu.pipeline_mode<synchronous>, transform_indices = @transform_4, window_bounds = array<i64: 1, 256>}, {pipeline_mode = #tpu.pipeline_mode<synchronous>, transform_indices = @transform_5, window_bounds = array<i64: 256, 768>}, {pipeline_mode = #tpu.pipeline_mode<synchronous>, transform_indices = @transform_6, window_bounds = array<i64: 1, 768>}, {pipeline_mode = #tpu.pipeline_mode<synchronous>, transform_indices = @transform_7, window_bounds = array<i64: 256, 256>}, {pipeline_mode = #tpu.pipeline_mode<synchronous>, transform_indices = @transform_8, window_bounds = array<i64: 1, 256>}, {pipeline_mode = #tpu.pipeline_mode<synchronous>, transform_indices = @transform_9, window_bounds = array<i64: 1, 256>}, {pipeline_mode = #tpu.pipeline_mode<synchronous>, transform_indices = @transform_10, window_bounds = array<i64: 1, 256>}, {transform_indices = @transform_11, window_bounds = array<i64: 2, 8, 256>}]} {
    %c0 = arith.constant 0 : index
    %c0_0 = arith.constant 0 : index
    %c0_1 = arith.constant 0 : index
    %0 = vector.load %arg1[%c0, %c0_0, %c0_1] : memref<2x8x1024xf32, #tpu.memory_space<vmem>>, vector<2x8x1024xf32>
    %1 = vector.shape_cast %0 : vector<2x8x1024xf32> to vector<16x1024xf32>
    %c0_2 = arith.constant 0 : index
    %c0_3 = arith.constant 0 : index
    %c0_4 = arith.constant 0 : index
    %2 = vector.load %arg3[%c0_2, %c0_3, %c0_4] : memref<2x8x1xf32, #tpu.memory_space<vmem>>, vector<2x8x1xf32>
    %3 = vector.shape_cast %2 : vector<2x8x1xf32> to vector<16x1xf32>
    %4 = arith.truncf %1 : vector<16x1024xf32> to vector<16x1024xbf16>
    %c0_5 = arith.constant 0 : index
    %c0_6 = arith.constant 0 : index
    %5 = vector.load %arg4[%c0_5, %c0_6] : memref<1024x256xbf16, #tpu.memory_space<vmem>>, vector<1024x256xbf16>
    %cst = arith.constant dense<0.000000e+00> : vector<16x256xf32>
    %6 = tpu.matmul %4, %5, %cst {dimension_numbers = #tpu.dot_dimension_numbers<[1], [0], [0], [1], [0, 0, 1, 1], [], []>} : vector<16x1024xbf16>, vector<1024x256xbf16>, vector<16x256xf32> -> vector<16x256xf32>
    %c0_7 = arith.constant 0 : index
    %c0_8 = arith.constant 0 : index
    %7 = vector.load %arg5[%c0_7, %c0_8] : memref<1x256xf32, #tpu.memory_space<vmem>>, vector<1x256xf32>
    %8 = vector.broadcast %7 : vector<1x256xf32> to vector<16x256xf32>
    %9 = arith.addf %6, %8 : vector<16x256xf32>
    %10 = vector.broadcast %3 : vector<16x1xf32> to vector<16x256xf32>
    %11 = arith.mulf %9, %10 : vector<16x256xf32>
    %cst_9 = arith.constant 5.000000e-01 : f32
    %12 = vector.broadcast %cst_9 : f32 to vector<16x256xf32>
    %13 = arith.mulf %11, %12 : vector<16x256xf32>
    %cst_10 = arith.constant 1.41421354 : f32
    %14 = vector.broadcast %cst_10 : f32 to vector<16x256xf32>
    %15 = arith.divf %11, %14 : vector<16x256xf32>
    %16 = math.erf %15 : vector<16x256xf32>
    %cst_11 = arith.constant 1.000000e+00 : f32
    %17 = vector.broadcast %cst_11 : f32 to vector<16x256xf32>
    %18 = arith.addf %17, %16 : vector<16x256xf32>
    %19 = arith.mulf %13, %18 : vector<16x256xf32>
    %20 = arith.truncf %19 : vector<16x256xf32> to vector<16x256xbf16>
    %c0_12 = arith.constant 0 : index
    %c0_13 = arith.constant 0 : index
    %21 = vector.load %arg6[%c0_12, %c0_13] : memref<256x768xbf16, #tpu.memory_space<vmem>>, vector<256x768xbf16>
    %cst_14 = arith.constant dense<0.000000e+00> : vector<16x768xf32>
    %22 = tpu.matmul %20, %21, %cst_14 {dimension_numbers = #tpu.dot_dimension_numbers<[1], [0], [0], [1], [0, 0, 1, 1], [], []>} : vector<16x256xbf16>, vector<256x768xbf16>, vector<16x768xf32> -> vector<16x768xf32>
    %c0_15 = arith.constant 0 : index
    %c0_16 = arith.constant 0 : index
    %23 = vector.load %arg7[%c0_15, %c0_16] : memref<1x768xf32, #tpu.memory_space<vmem>>, vector<1x768xf32>
    %24 = vector.broadcast %23 : vector<1x768xf32> to vector<16x768xf32>
    %25 = arith.addf %22, %24 : vector<16x768xf32>
    %26 = vector.extract_strided_slice %25 {offsets = [0, 0], sizes = [16, 256], strides = [1, 1]} : vector<16x768xf32> to vector<16x256xf32>
    %27 = vector.extract_strided_slice %25 {offsets = [0, 256], sizes = [16, 256], strides = [1, 1]} : vector<16x768xf32> to vector<16x256xf32>
    %28 = vector.extract_strided_slice %25 {offsets = [0, 512], sizes = [16, 256], strides = [1, 1]} : vector<16x768xf32> to vector<16x256xf32>
    %29 = vector.shape_cast %26 : vector<16x256xf32> to vector<16x4x64xf32>
    %30 = tpu.transpose %29, [1, 0, 2] : vector<16x4x64xf32> -> vector<4x16x64xf32>
    %31 = vector.shape_cast %30 : vector<4x16x64xf32> to vector<8x8x64xf32>
    %32 = arith.truncf %31 : vector<8x8x64xf32> to vector<8x8x64xbf16>
    %33 = vector.shape_cast %27 : vector<16x256xf32> to vector<16x4x64xf32>
    %34 = tpu.transpose %33, [1, 0, 2] : vector<16x4x64xf32> -> vector<4x16x64xf32>
    %35 = vector.shape_cast %34 : vector<4x16x64xf32> to vector<8x8x64xf32>
    %36 = arith.truncf %35 : vector<8x8x64xf32> to vector<8x8x64xbf16>
    %37 = vector.shape_cast %28 : vector<16x256xf32> to vector<16x4x64xf32>
    %38 = tpu.transpose %37, [1, 0, 2] : vector<16x4x64xf32> -> vector<4x16x64xf32>
    %39 = vector.shape_cast %38 : vector<4x16x64xf32> to vector<8x8x64xf32>
    %40 = arith.truncf %39 : vector<8x8x64xf32> to vector<8x8x64xbf16>
    "tpu.trace_start"() <{level = 10 : i32, message = "bqd,bkd->bqk"}> : () -> ()
    %cst_17 = arith.constant dense<0.000000e+00> : vector<8x8x8xf32>
    %41 = tpu.matmul %32, %36, %cst_17 {dimension_numbers = #tpu.dot_dimension_numbers<[2], [2], [1], [1], [0, 0, 0, 1, 1, 1], [0], [0]>} : vector<8x8x64xbf16>, vector<8x8x64xbf16>, vector<8x8x8xf32> -> vector<8x8x8xf32>
    "tpu.trace_stop"() : () -> ()
    %cst_18 = arith.constant 1.250000e-01 : f32
    %42 = vector.broadcast %cst_18 : f32 to vector<8x8x8xf32>
    %43 = arith.mulf %41, %42 : vector<8x8x8xf32>
    %44 = vector.shape_cast %43 : vector<8x8x8xf32> to vector<4x2x8x8xf32>
    %c0_19 = arith.constant 0 : index
    %c0_20 = arith.constant 0 : index
    %c0_21 = arith.constant 0 : index
    %45 = vector.load %arg2[%c0_19, %c0_20, %c0_21] : memref<2x1x8xf32, #tpu.memory_space<vmem>>, vector<2x1x8xf32>
    %46 = vector.shape_cast %45 : vector<2x1x8xf32> to vector<1x2x1x8xf32>
    %47 = vector.broadcast %46 : vector<1x2x1x8xf32> to vector<4x2x8x8xf32>
    %48 = arith.addf %44, %47 : vector<4x2x8x8xf32>
    %49 = vector.shape_cast %48 : vector<4x2x8x8xf32> to vector<64x8xf32>
    %cst_22 = arith.constant dense<0xFF800000> : vector<64xf32>
    %50 = vector.multi_reduction <maximumf>, %49, %cst_22 [1] : vector<64x8xf32> to vector<64xf32>
    %51 = vector.shape_cast %50 : vector<64xf32> to vector<64x1xf32>
    %52 = vector.broadcast %51 : vector<64x1xf32> to vector<64x8xf32>
    %53 = arith.subf %49, %52 : vector<64x8xf32>
    %54 = math.exp %53 : vector<64x8xf32>
    %cst_23 = arith.constant dense<0.000000e+00> : vector<64xf32>
    %55 = vector.multi_reduction <add>, %54, %cst_23 [1] : vector<64x8xf32> to vector<64xf32>
    %56 = vector.shape_cast %55 : vector<64xf32> to vector<64x1xf32>
    %57 = tpu.reciprocal %56 {approx = true} : vector<64x1xf32> -> vector<64x1xf32>
    %58 = vector.broadcast %57 : vector<64x1xf32> to vector<64x8xf32>
    %59 = arith.mulf %54, %58 : vector<64x8xf32>
    %60 = vector.shape_cast %59 : vector<64x8xf32> to vector<4x2x8x8xf32>
    %c0_24 = arith.constant 0 : index
    %c0_25 = arith.constant 0 : index
    %c0_26 = arith.constant 0 : index
    %61 = vector.load %arg3[%c0_24, %c0_25, %c0_26] : memref<2x8x1xf32, #tpu.memory_space<vmem>>, vector<2x8x1xf32>
    %62 = vector.shape_cast %61 : vector<2x8x1xf32> to vector<1x2x8x1xf32>
    %63 = vector.broadcast %62 : vector<1x2x8x1xf32> to vector<4x2x8x8xf32>
    %64 = arith.mulf %60, %63 : vector<4x2x8x8xf32>
    %65 = vector.shape_cast %64 : vector<4x2x8x8xf32> to vector<8x8x8xf32>
    %66 = arith.truncf %65 : vector<8x8x8xf32> to vector<8x8x8xbf16>
    "tpu.trace_start"() <{level = 10 : i32, message = "bqk,bkd->bqd"}> : () -> ()
    %cst_27 = arith.constant dense<0.000000e+00> : vector<8x8x64xf32>
    %67 = tpu.matmul %66, %40, %cst_27 {dimension_numbers = #tpu.dot_dimension_numbers<[2], [1], [1], [2], [0, 0, 0, 1, 1, 2], [0], [0]>} : vector<8x8x8xbf16>, vector<8x8x64xbf16>, vector<8x8x64xf32> -> vector<8x8x64xf32>
    "tpu.trace_stop"() : () -> ()
    %68 = vector.shape_cast %67 : vector<8x8x64xf32> to vector<4x16x64xf32>
    %69 = tpu.transpose %68, [1, 0, 2] : vector<4x16x64xf32> -> vector<16x4x64xf32>
    %70 = vector.shape_cast %69 : vector<16x4x64xf32> to vector<16x256xf32>
    %71 = arith.truncf %70 : vector<16x256xf32> to vector<16x256xbf16>
    %c0_28 = arith.constant 0 : index
    %c0_29 = arith.constant 0 : index
    %72 = vector.load %arg8[%c0_28, %c0_29] : memref<256x256xbf16, #tpu.memory_space<vmem>>, vector<256x256xbf16>
    %cst_30 = arith.constant dense<0.000000e+00> : vector<16x256xf32>
    %73 = tpu.matmul %71, %72, %cst_30 {dimension_numbers = #tpu.dot_dimension_numbers<[1], [0], [0], [1], [0, 0, 1, 1], [], []>} : vector<16x256xbf16>, vector<256x256xbf16>, vector<16x256xf32> -> vector<16x256xf32>
    %c0_31 = arith.constant 0 : index
    %c0_32 = arith.constant 0 : index
    %74 = vector.load %arg9[%c0_31, %c0_32] : memref<1x256xf32, #tpu.memory_space<vmem>>, vector<1x256xf32>
    %75 = vector.broadcast %74 : vector<1x256xf32> to vector<16x256xf32>
    %76 = arith.addf %73, %75 : vector<16x256xf32>
    %77 = arith.addf %76, %19 : vector<16x256xf32>
    %cst_33 = arith.constant dense<0.000000e+00> : vector<16xf32>
    %78 = vector.multi_reduction <add>, %77, %cst_33 [1] : vector<16x256xf32> to vector<16xf32>
    %79 = vector.shape_cast %78 : vector<16xf32> to vector<16x1xf32>
    %cst_34 = arith.constant 2.560000e+02 : f32
    %80 = vector.broadcast %cst_34 : f32 to vector<16x1xf32>
    %81 = arith.divf %79, %80 : vector<16x1xf32>
    %82 = vector.broadcast %81 : vector<16x1xf32> to vector<16x256xf32>
    %83 = arith.subf %77, %82 : vector<16x256xf32>
    %84 = arith.mulf %83, %83 : vector<16x256xf32>
    %cst_35 = arith.constant dense<0.000000e+00> : vector<16xf32>
    %85 = vector.multi_reduction <add>, %84, %cst_35 [1] : vector<16x256xf32> to vector<16xf32>
    %86 = vector.shape_cast %85 : vector<16xf32> to vector<16x1xf32>
    %cst_36 = arith.constant 2.560000e+02 : f32
    %87 = vector.broadcast %cst_36 : f32 to vector<16x1xf32>
    %88 = arith.divf %86, %87 : vector<16x1xf32>
    %89 = vector.broadcast %81 : vector<16x1xf32> to vector<16x256xf32>
    %90 = arith.subf %77, %89 : vector<16x256xf32>
    %cst_37 = arith.constant 9.99999996E-13 : f32
    %91 = vector.broadcast %cst_37 : f32 to vector<16x1xf32>
    %92 = arith.addf %88, %91 : vector<16x1xf32>
    %93 = math.rsqrt %92 : vector<16x1xf32>
    %94 = vector.broadcast %93 : vector<16x1xf32> to vector<16x256xf32>
    %95 = arith.mulf %90, %94 : vector<16x256xf32>
    %c0_38 = arith.constant 0 : index
    %c0_39 = arith.constant 0 : index
    %96 = vector.load %arg10[%c0_38, %c0_39] : memref<1x256xf32, #tpu.memory_space<vmem>>, vector<1x256xf32>
    %97 = vector.broadcast %96 : vector<1x256xf32> to vector<16x256xf32>
    %98 = arith.mulf %95, %97 : vector<16x256xf32>
    %c0_40 = arith.constant 0 : index
    %c0_41 = arith.constant 0 : index
    %99 = vector.load %arg11[%c0_40, %c0_41] : memref<1x256xf32, #tpu.memory_space<vmem>>, vector<1x256xf32>
    %100 = vector.broadcast %99 : vector<1x256xf32> to vector<16x256xf32>
    %101 = arith.addf %98, %100 : vector<16x256xf32>
    %cst_42 = arith.constant 5.000000e-01 : f32
    %102 = vector.broadcast %cst_42 : f32 to vector<16x256xf32>
    %103 = arith.mulf %101, %102 : vector<16x256xf32>
    %cst_43 = arith.constant 1.41421354 : f32
    %104 = vector.broadcast %cst_43 : f32 to vector<16x256xf32>
    %105 = arith.divf %101, %104 : vector<16x256xf32>
    %106 = math.erf %105 : vector<16x256xf32>
    %cst_44 = arith.constant 1.000000e+00 : f32
    %107 = vector.broadcast %cst_44 : f32 to vector<16x256xf32>
    %108 = arith.addf %107, %106 : vector<16x256xf32>
    %109 = arith.mulf %103, %108 : vector<16x256xf32>
    %110 = vector.broadcast %3 : vector<16x1xf32> to vector<16x256xf32>
    %111 = arith.mulf %109, %110 : vector<16x256xf32>
    %112 = vector.shape_cast %111 : vector<16x256xf32> to vector<2x8x256xf32>
    %c0_45 = arith.constant 0 : index
    %c0_46 = arith.constant 0 : index
    %c0_47 = arith.constant 0 : index
    %113 = vector.load %arg12[%c0_45, %c0_46, %c0_47] : memref<2x8x256xf32, #tpu.memory_space<vmem>>, vector<2x8x256xf32>
    tpu.vector_store %arg12[%c0_45, %c0_46, %c0_47], %112 {strides = array<i32>} : memref<2x8x256xf32, #tpu.memory_space<vmem>>, vector<2x8x256xf32>,
    return
  }
  func.func @transform_0(%arg0: i32) -> (i32, i32, i32) {
    %c0_i32 = arith.constant 0 : i32
    %c0_i32_0 = arith.constant 0 : i32
    %c0_i32_1 = arith.constant 0 : i32
    return %arg0, %c0_i32, %c0_i32_0 : i32, i32, i32
  }
  func.func @transform_1(%arg0: i32) -> (i32, i32, i32) {
    %c0_i32 = arith.constant 0 : i32
    %c0_i32_0 = arith.constant 0 : i32
    %c0_i32_1 = arith.constant 0 : i32
    return %arg0, %c0_i32, %c0_i32_0 : i32, i32, i32
  }
  func.func @transform_2(%arg0: i32) -> (i32, i32, i32) {
    %c0_i32 = arith.constant 0 : i32
    %c0_i32_0 = arith.constant 0 : i32
    %c0_i32_1 = arith.constant 0 : i32
    return %arg0, %c0_i32, %c0_i32_0 : i32, i32, i32
  }
  func.func @transform_3(%arg0: i32) -> (i32, i32) {
    %c0_i32 = arith.constant 0 : i32
    %c0_i32_0 = arith.constant 0 : i32
    %c0_i32_1 = arith.constant 0 : i32
    return %c0_i32, %c0_i32_0 : i32, i32
  }
  func.func @transform_4(%arg0: i32) -> (i32, i32) {
    %c0_i32 = arith.constant 0 : i32
    %c0_i32_0 = arith.constant 0 : i32
    %c0_i32_1 = arith.constant 0 : i32
    return %c0_i32, %c0_i32_0 : i32, i32
  }
  func.func @transform_5(%arg0: i32) -> (i32, i32) {
    %c0_i32 = arith.constant 0 : i32
    %c0_i32_0 = arith.constant 0 : i32
    %c0_i32_1 = arith.constant 0 : i32
    return %c0_i32, %c0_i32_0 : i32, i32
  }
  func.func @transform_6(%arg0: i32) -> (i32, i32) {
    %c0_i32 = arith.constant 0 : i32
    %c0_i32_0 = arith.constant 0 : i32
    %c0_i32_1 = arith.constant 0 : i32
    return %c0_i32, %c0_i32_0 : i32, i32
  }
  func.func @transform_7(%arg0: i32) -> (i32, i32) {
    %c0_i32 = arith.constant 0 : i32
    %c0_i32_0 = arith.constant 0 : i32
    %c0_i32_1 = arith.constant 0 : i32
    return %c0_i32, %c0_i32_0 : i32, i32
  }
  func.func @transform_8(%arg0: i32) -> (i32, i32) {
    %c0_i32 = arith.constant 0 : i32
    %c0_i32_0 = arith.constant 0 : i32
    %c0_i32_1 = arith.constant 0 : i32
    return %c0_i32, %c0_i32_0 : i32, i32
  }
  func.func @transform_9(%arg0: i32) -> (i32, i32) {
    %c0_i32 = arith.constant 0 : i32
    %c0_i32_0 = arith.constant 0 : i32
    %c0_i32_1 = arith.constant 0 : i32
    return %c0_i32, %c0_i32_0 : i32, i32
  }
  func.func @transform_10(%arg0: i32) -> (i32, i32) {
    %c0_i32 = arith.constant 0 : i32
    %c0_i32_0 = arith.constant 0 : i32
    %c0_i32_1 = arith.constant 0 : i32
    return %c0_i32, %c0_i32_0 : i32, i32
  }
  func.func @transform_11(%arg0: i32) -> (i32, i32, i32) {
    %c0_i32 = arith.constant 0 : i32
    %c0_i32_0 = arith.constant 0 : i32
    %c0_i32_1 = arith.constant 0 : i32
    return %arg0, %c0_i32, %c0_i32_0 : i32, i32, i32
  }
}

</mosaic_0001>

<llo_original>
// kernel: tpu_custom_call.1
$region0: #{tpu_custom_call.1}
  #allocation0 [shape = 'u32[]', space=smem, size = 0x4, offset = 0x4, fixed_abs, tag = 'smem constant byte address 0x4 - core index']
  #allocation1 [shape = 'u32[144,128]{1,0:T(1,128)}', space=vmem, size = 0x12000, scoped, tag = 'internal scratch']
  %s0 = inlined_call_operand.hbm [shape: f32[4,8,1024], index: 0, kind: input, shape index: {}]
  %s1 = inlined_call_operand.vmem [shape: f32[4,1,8], index: 1, kind: input, shape index: {}]
  %s2 = inlined_call_operand.vmem [shape: f32[4,8,1], index: 2, kind: input, shape index: {}]
  %s3 = inlined_call_operand.hbm [shape: bf16[1024,256], index: 3, kind: input, shape index: {}]
  %s4 = inlined_call_operand.vmem [shape: f32[1,256], index: 4, kind: input, shape index: {}]
  %s5 = inlined_call_operand.hbm [shape: bf16[256,768], index: 5, kind: input, shape index: {}]
  %s6 = inlined_call_operand.vmem [shape: f32[1,768], index: 6, kind: input, shape index: {}]
  %s7 = inlined_call_operand.hbm [shape: bf16[256,256], index: 7, kind: input, shape index: {}]
  %s8 = inlined_call_operand.vmem [shape: f32[1,256], index: 8, kind: input, shape index: {}]
  %s9 = inlined_call_operand.vmem [shape: f32[1,256], index: 9, kind: input, shape index: {}]
  %s10 = inlined_call_operand.vmem [shape: f32[1,256], index: 10, kind: input, shape index: {}]
  %s11 = inlined_call_operand.hbm [shape: f32[4,8,256], index: 11, kind: output, shape index: {}]
  %s12 = sld [smem:[#allocation0]]
  $region93: #{tpu_custom_call.1} parent=0
    _
  %s14 = ssub.s32 1, %s12
  %s15 = scalar_select 0, %s14, %s12
  $region1: #{tpu_custom_call.1} parent=0
    #allocation2 [shape = 'u8[131072]{0}', space=vmem, size = 0x20000, scoped, tag = 'input window, operand 0']
    #allocation3 [shape = 's32[2]{0}', space=sflag, size = 0x8, scoped, tag = 'scoped memory for tpu_custom_call.1']
    #allocation4 [shape = 's32[2]{0}', space=sflag, size = 0x8, scoped, tag = 'scoped memory for tpu_custom_call.1']
    #allocation5 [shape = 'u8[524288]{0}', space=vmem, size = 0x80000, scoped, tag = 'input window, operand 3, single buffered']
    #allocation6 [shape = 's32[1]{0}', space=sflag, size = 0x4, scoped, tag = 'scoped memory for tpu_custom_call.1']
    #allocation7 [shape = 'u8[393216]{0}', space=vmem, size = 0x60000, scoped, tag = 'input window, operand 5, single buffered']
    #allocation8 [shape = 'u8[131072]{0}', space=vmem, size = 0x20000, scoped, tag = 'input window, operand 7, single buffered']
    #allocation9 [shape = 's32[1]{0}', space=sflag, size = 0x4, scoped, tag = 'scoped memory for tpu_custom_call.1']
    #allocation10 [shape = 'u8[32768]{0}', space=vmem, size = 0x8000, scoped, tag = 'output window, operand 0']
    %16 = vsyncpa [#allocation3], 0
    %s17 = scalar_lea.sflag [#allocation3], 1
    %18 = vsyncpa %s17, 0
    %19 = vsyncpa [#allocation6], 0
    %20 = vsyncpa [#allocation9], 0
    %21 = vsyncpa [#allocation4], 0
    %s22 = scalar_lea.sflag [#allocation4], 1
    %23 = vsyncpa %s22, 0
    loop: start=0, step=1, limit=4
    $region2: #{tpu_custom_call.1} parent=1 // loop_pre_header
      _
    $region3: #{tpu_custom_call.1} parent=1 // loop_header
      %s25 = sphi 0, %s29
      %p26 = scmp.ge.s32.totalorder %s25, 4
      %s35 = sphi 0, %s37
      %s38 = sphi 0, %s35
      %s39 = sphi 0, %s38
      %s55 = sphi 0, %s39
      %s61 = sphi 0, %s63
      %s64 = sphi 0, %s61
      %s65 = sphi 0, %s64
      %s81 = sphi 0, %s65
      %s87 = sphi 0, %s89
      %s90 = sphi 0, %s87
      %s91 = sphi 0, %s90
      %s107 = sphi 0, %s91
      %s111 = sphi 0, %s111
      %s113 = sphi 0, %s111
      %s114 = sphi 0, %s113
      %s128 = sphi 0, %s114
      %s132 = sphi 0, %s132
      %s134 = sphi 0, %s132
      %s135 = sphi 0, %s134
      %s149 = sphi 0, %s135
      %s153 = sphi 0, %s153
      %s155 = sphi 0, %s153
      %s156 = sphi 0, %s155
      %s170 = sphi 0, %s156
      %s174 = sphi 0, %s174
      %s176 = sphi 0, %s174
      %s177 = sphi 0, %s176
      %s191 = sphi 0, %s177
      %s195 = sphi 0, %s195
      %s197 = sphi 0, %s195
      %s198 = sphi 0, %s197
      %s212 = sphi 0, %s198
      %s216 = sphi 0, %s216
      %s218 = sphi 0, %s216
      %s219 = sphi 0, %s218
      %s233 = sphi 0, %s219
      %s237 = sphi 0, %s237
      %s239 = sphi 0, %s237
      %s240 = sphi 0, %s239
      %s254 = sphi 0, %s240
      %s258 = sphi 0, %s258
      %s260 = sphi 0, %s258
      %s261 = sphi 0, %s260
      %s275 = sphi 0, %s261
      %s281 = sphi 0, %s283
      %s284 = sphi 0, %s281
      %s285 = sphi 0, %s284
      %s301 = sphi 0, %s285
    $region4: #{tpu_custom_call.1} parent=1 // loop_header_branch
      %28 = sbr.rel (%p26) target = $region8
    $region5: #{tpu_custom_call.1} parent=1 // loop_body
      %s30 = ssub.s32 %s25, 1
      %s31 = ssub.s32 %s25, 2
      %s32 = sadd.s32 %s25, 1
      %s33 = ssub.s32 %s25, %s32
      %p34 = scmp.eq.s32.totalorder %s33, 0
      %s36 = sadd.s32 %s35, 1
      %s37 = scalar_select %p34, %s35, %s36
      %p40 = pneg %p34
      %p41 = scmp.eq.s32.totalorder %s25, 1
      %p42 = por %p40, %p41
      %p43 = scmp.ne.s32.totalorder %s35, %s38
      %p44 = scmp.eq.s32.totalorder %s25, 0
      %p45 = por %p43, %p44
      %p46 = scmp.ne.s32.totalorder %s35, %s38
      %p47 = scmp.eq.s32.totalorder %s30, 1
      %p48 = por %p46, %p47
      %p49 = scmp.ne.s32.totalorder %s38, %s39
      %p50 = scmp.eq.s32.totalorder %s30, 0
      %p51 = por %p49, %p50
      %p52 = scmp.ne.s32.totalorder %s38, %s39
      %p53 = scmp.eq.s32.totalorder %s31, 1
      %p54 = por %p52, %p53
      %p56 = scmp.ne.s32.totalorder %s39, %s55
      %p57 = scmp.eq.s32.totalorder %s31, 0
      %p58 = por %p56, %p57
      %s59 = ssub.s32 %s25, %s32
      %p60 = scmp.eq.s32.totalorder %s59, 0
      %s62 = sadd.s32 %s61, 1
      %s63 = scalar_select %p60, %s61, %s62
      %p66 = pneg %p60
      %p67 = scmp.eq.s32.totalorder %s25, 1
      %p68 = por %p66, %p67
      %p69 = scmp.ne.s32.totalorder %s61, %s64
      %p70 = scmp.eq.s32.totalorder %s25, 0
      %p71 = por %p69, %p70
      %p72 = scmp.ne.s32.totalorder %s61, %s64
      %p73 = scmp.eq.s32.totalorder %s30, 1
      %p74 = por %p72, %p73
      %p75 = scmp.ne.s32.totalorder %s64, %s65
      %p76 = scmp.eq.s32.totalorder %s30, 0
      %p77 = por %p75, %p76
      %p78 = scmp.ne.s32.totalorder %s64, %s65
      %p79 = scmp.eq.s32.totalorder %s31, 1
      %p80 = por %p78, %p79
      %p82 = scmp.ne.s32.totalorder %s65, %s81
      %p83 = scmp.eq.s32.totalorder %s31, 0
      %p84 = por %p82, %p83
      %s85 = ssub.s32 %s25, %s32
      %p86 = scmp.eq.s32.totalorder %s85, 0
      %s88 = sadd.s32 %s87, 1
      %s89 = scalar_select %p86, %s87, %s88
      %p92 = pneg %p86
      %p93 = scmp.eq.s32.totalorder %s25, 1
      %p94 = por %p92, %p93
      %p95 = scmp.ne.s32.totalorder %s87, %s90
      %p96 = scmp.eq.s32.totalorder %s25, 0
      %p97 = por %p95, %p96
      %p98 = scmp.ne.s32.totalorder %s87, %s90
      %p99 = scmp.eq.s32.totalorder %s30, 1
      %p100 = por %p98, %p99
      %p101 = scmp.ne.s32.totalorder %s90, %s91
      %p102 = scmp.eq.s32.totalorder %s30, 0
      %p103 = por %p101, %p102
      %p104 = scmp.ne.s32.totalorder %s90, %s91
      %p105 = scmp.eq.s32.totalorder %s31, 1
      %p106 = por %p104, %p105
      %p108 = scmp.ne.s32.totalorder %s91, %s107
      %p109 = scmp.eq.s32.totalorder %s31, 0
      %p110 = por %p108, %p109
      %s112 = sadd.s32 %s111, 1
      %p115 = scmp.eq.s32.totalorder %s25, 1
      %p116 = scmp.ne.s32.totalorder %s111, %s113
      %p117 = scmp.eq.s32.totalorder %s25, 0
      %p118 = por %p116, %p117
      %p119 = scmp.ne.s32.totalorder %s111, %s113
      %p120 = scmp.eq.s32.totalorder %s30, 1
      %p121 = por %p119, %p120
      %p122 = scmp.ne.s32.totalorder %s113, %s114
      %p123 = scmp.eq.s32.totalorder %s30, 0
      %p124 = por %p122, %p123
      %p125 = scmp.ne.s32.totalorder %s113, %s114
      %p126 = scmp.eq.s32.totalorder %s31, 1
      %p127 = por %p125, %p126
      %p129 = scmp.ne.s32.totalorder %s114, %s128
      %p130 = scmp.eq.s32.totalorder %s31, 0
      %p131 = por %p129, %p130
      %s133 = sadd.s32 %s132, 1
      %p136 = scmp.eq.s32.totalorder %s25, 1
      %p137 = scmp.ne.s32.totalorder %s132, %s134
      %p138 = scmp.eq.s32.totalorder %s25, 0
      %p139 = por %p137, %p138
      %p140 = scmp.ne.s32.totalorder %s132, %s134
      %p141 = scmp.eq.s32.totalorder %s30, 1
      %p142 = por %p140, %p141
      %p143 = scmp.ne.s32.totalorder %s134, %s135
      %p144 = scmp.eq.s32.totalorder %s30, 0
      %p145 = por %p143, %p144
      %p146 = scmp.ne.s32.totalorder %s134, %s135
      %p147 = scmp.eq.s32.totalorder %s31, 1
      %p148 = por %p146, %p147
      %p150 = scmp.ne.s32.totalorder %s135, %s149
      %p151 = scmp.eq.s32.totalorder %s31, 0
      %p152 = por %p150, %p151
      %s154 = sadd.s32 %s153, 1
      %p157 = scmp.eq.s32.totalorder %s25, 1
      %p158 = scmp.ne.s32.totalorder %s153, %s155
      %p159 = scmp.eq.s32.totalorder %s25, 0
      %p160 = por %p158, %p159
      %p161 = scmp.ne.s32.totalorder %s153, %s155
      %p162 = scmp.eq.s32.totalorder %s30, 1
      %p163 = por %p161, %p162
      %p164 = scmp.ne.s32.totalorder %s155, %s156
      %p165 = scmp.eq.s32.totalorder %s30, 0
      %p166 = por %p164, %p165
      %p167 = scmp.ne.s32.totalorder %s155, %s156
      %p168 = scmp.eq.s32.totalorder %s31, 1
      %p169 = por %p167, %p168
      %p171 = scmp.ne.s32.totalorder %s156, %s170
      %p172 = scmp.eq.s32.totalorder %s31, 0
      %p173 = por %p171, %p172
      %s175 = sadd.s32 %s174, 1
      %p178 = scmp.eq.s32.totalorder %s25, 1
      %p179 = scmp.ne.s32.totalorder %s174, %s176
      %p180 = scmp.eq.s32.totalorder %s25, 0
      %p181 = por %p179, %p180
      %p182 = scmp.ne.s32.totalorder %s174, %s176
      %p183 = scmp.eq.s32.totalorder %s30, 1
      %p184 = por %p182, %p183
      %p185 = scmp.ne.s32.totalorder %s176, %s177
      %p186 = scmp.eq.s32.totalorder %s30, 0
      %p187 = por %p185, %p186
      %p188 = scmp.ne.s32.totalorder %s176, %s177
      %p189 = scmp.eq.s32.totalorder %s31, 1
      %p190 = por %p188, %p189
      %p192 = scmp.ne.s32.totalorder %s177, %s191
      %p193 = scmp.eq.s32.totalorder %s31, 0
      %p194 = por %p192, %p193
      %s196 = sadd.s32 %s195, 1
      %p199 = scmp.eq.s32.totalorder %s25, 1
      %p200 = scmp.ne.s32.totalorder %s195, %s197
      %p201 = scmp.eq.s32.totalorder %s25, 0
      %p202 = por %p200, %p201
      %p203 = scmp.ne.s32.totalorder %s195, %s197
      %p204 = scmp.eq.s32.totalorder %s30, 1
      %p205 = por %p203, %p204
      %p206 = scmp.ne.s32.totalorder %s197, %s198
      %p207 = scmp.eq.s32.totalorder %s30, 0
      %p208 = por %p206, %p207
      %p209 = scmp.ne.s32.totalorder %s197, %s198
      %p210 = scmp.eq.s32.totalorder %s31, 1
      %p211 = por %p209, %p210
      %p213 = scmp.ne.s32.totalorder %s198, %s212
      %p214 = scmp.eq.s32.totalorder %s31, 0
      %p215 = por %p213, %p214
      %s217 = sadd.s32 %s216, 1
      %p220 = scmp.eq.s32.totalorder %s25, 1
      %p221 = scmp.ne.s32.totalorder %s216, %s218
      %p222 = scmp.eq.s32.totalorder %s25, 0
      %p223 = por %p221, %p222
      %p224 = scmp.ne.s32.totalorder %s216, %s218
      %p225 = scmp.eq.s32.totalorder %s30, 1
      %p226 = por %p224, %p225
      %p227 = scmp.ne.s32.totalorder %s218, %s219
      %p228 = scmp.eq.s32.totalorder %s30, 0
      %p229 = por %p227, %p228
      %p230 = scmp.ne.s32.totalorder %s218, %s219
      %p231 = scmp.eq.s32.totalorder %s31, 1
      %p232 = por %p230, %p231
      %p234 = scmp.ne.s32.totalorder %s219, %s233
      %p235 = scmp.eq.s32.totalorder %s31, 0
      %p236 = por %p234, %p235
      %s238 = sadd.s32 %s237, 1
      %p241 = scmp.eq.s32.totalorder %s25, 1
      %p242 = scmp.ne.s32.totalorder %s237, %s239
      %p243 = scmp.eq.s32.totalorder %s25, 0
      %p244 = por %p242, %p243
      %p245 = scmp.ne.s32.totalorder %s237, %s239
      %p246 = scmp.eq.s32.totalorder %s30, 1
      %p247 = por %p245, %p246
      %p248 = scmp.ne.s32.totalorder %s239, %s240
      %p249 = scmp.eq.s32.totalorder %s30, 0
      %p250 = por %p248, %p249
      %p251 = scmp.ne.s32.totalorder %s239, %s240
      %p252 = scmp.eq.s32.totalorder %s31, 1
      %p253 = por %p251, %p252
      %p255 = scmp.ne.s32.totalorder %s240, %s254
      %p256 = scmp.eq.s32.totalorder %s31, 0
      %p257 = por %p255, %p256
      %s259 = sadd.s32 %s258, 1
      %p262 = scmp.eq.s32.totalorder %s25, 1
      %p263 = scmp.ne.s32.totalorder %s258, %s260
      %p264 = scmp.eq.s32.totalorder %s25, 0
      %p265 = por %p263, %p264
      %p266 = scmp.ne.s32.totalorder %s258, %s260
      %p267 = scmp.eq.s32.totalorder %s30, 1
      %p268 = por %p266, %p267
      %p269 = scmp.ne.s32.totalorder %s260, %s261
      %p270 = scmp.eq.s32.totalorder %s30, 0
      %p271 = por %p269, %p270
      %p272 = scmp.ne.s32.totalorder %s260, %s261
      %p273 = scmp.eq.s32.totalorder %s31, 1
      %p274 = por %p272, %p273
      %p276 = scmp.ne.s32.totalorder %s261, %s275
      %p277 = scmp.eq.s32.totalorder %s31, 0
      %p278 = por %p276, %p277
      %s279 = ssub.s32 %s25, %s32
      %p280 = scmp.eq.s32.totalorder %s279, 0
      %s282 = sadd.s32 %s281, 1
      %s283 = scalar_select %p280, %s281, %s282
      %p286 = pneg %p280
      %p287 = scmp.eq.s32.totalorder %s25, 1
      %p288 = por %p286, %p287
      %p289 = scmp.ne.s32.totalorder %s281, %s284
      %p290 = scmp.eq.s32.totalorder %s25, 0
      %p291 = por %p289, %p290
      %p292 = scmp.ne.s32.totalorder %s281, %s284
      %p293 = scmp.eq.s32.totalorder %s30, 1
      %p294 = por %p292, %p293
      %p295 = scmp.ne.s32.totalorder %s284, %s285
      %p296 = scmp.eq.s32.totalorder %s30, 0
      %p297 = por %p295, %p296
      %p298 = scmp.ne.s32.totalorder %s284, %s285
      %p299 = scmp.eq.s32.totalorder %s31, 1
      %p300 = por %p298, %p299
      %p302 = scmp.ne.s32.totalorder %s285, %s301
      %p303 = scmp.eq.s32.totalorder %s31, 0
      %p304 = por %p302, %p303
      %p305 = scmp.le.s32.totalorder 1, %s25
      %p306 = scmp.lt.s32.totalorder %s25, 3
      %p307 = pnand %p305, %p306
      %p308 = pneg %p307
      // Predicated region
      $region9: #{tpu_custom_call.1} parent=5 // pred_check
        _
      $region10: #{tpu_custom_call.1} parent=5 // pred_check_branch
        %310 = sbr.rel (%p307) target = $region12
      $region11: #{tpu_custom_call.1} parent=5 // pred_region
        %s311 = ssub.s32 %s25, 1
        // Predicated region
        $region13: #{tpu_custom_call.1} parent=11 // pred_check
          %p312 = pneg %p124
        $region14: #{tpu_custom_call.1} parent=11 // pred_check_branch
          %314 = sbr.rel (%p312) target = $region16
        $region15: #{tpu_custom_call.1} parent=11 // pred_region
          %s316 = ssub.s32 16384, 16384
          %317 = vsyncadd [#allocation6], %s316
          %s318 = sshll.u32 [#allocation5], 4
          %s319 = int_to_ptr.vmem [resolvable:$true] %s318
          %324 = dma.hbm_to_vmem [thread:$0]  %s3, 16384, %s319, [#allocation6], 128, 128, 8
        $region16: #{tpu_custom_call.1} parent=11 // pred_fallthru
          _
        // Predicated region
        $region17: #{tpu_custom_call.1} parent=11 // pred_check
          %p325 = pneg %p145
        $region18: #{tpu_custom_call.1} parent=11 // pred_check_branch
          %327 = sbr.rel (%p325) target = $region20
        $region19: #{tpu_custom_call.1} parent=11 // pred_region
          _
        $region20: #{tpu_custom_call.1} parent=11 // pred_fallthru
          _
        // Predicated region
        $region21: #{tpu_custom_call.1} parent=11 // pred_check
          %p328 = pneg %p166
        $region22: #{tpu_custom_call.1} parent=11 // pred_check_branch
          %330 = sbr.rel (%p328) target = $region24
        $region23: #{tpu_custom_call.1} parent=11 // pred_region
          %s332 = ssub.s32 12288, 12288
          %333 = vsyncadd [#allocation6], %s332
          %s334 = sshll.u32 [#allocation7], 4
          %s335 = int_to_ptr.vmem [resolvable:$true] %s334
          %340 = dma.hbm_to_vmem [thread:$0]  %s5, 12288, %s335, [#allocation6], 384, 384, 24
        $region24: #{tpu_custom_call.1} parent=11 // pred_fallthru
          _
        // Predicated region
        $region25: #{tpu_custom_call.1} parent=11 // pred_check
          %p341 = pneg %p187
        $region26: #{tpu_custom_call.1} parent=11 // pred_check_branch
          %343 = sbr.rel (%p341) target = $region28
        $region27: #{tpu_custom_call.1} parent=11 // pred_region
          _
        $region28: #{tpu_custom_call.1} parent=11 // pred_fallthru
          _
        // Predicated region
        $region29: #{tpu_custom_call.1} parent=11 // pred_check
          %p344 = pneg %p208
        $region30: #{tpu_custom_call.1} parent=11 // pred_check_branch
          %346 = sbr.rel (%p344) target = $region32
        $region31: #{tpu_custom_call.1} parent=11 // pred_region
          %s348 = ssub.s32 4096, 4096
          %349 = vsyncadd [#allocation9], %s348
          %s350 = sshll.u32 [#allocation8], 4
          %s351 = int_to_ptr.vmem [resolvable:$true] %s350
          %356 = dma.hbm_to_vmem [thread:$0]  %s7, 4096, %s351, [#allocation9], 128, 128, 8
        $region32: #{tpu_custom_call.1} parent=11 // pred_fallthru
          _
        // Predicated region
        $region33: #{tpu_custom_call.1} parent=11 // pred_check
          %p357 = pneg %p229
        $region34: #{tpu_custom_call.1} parent=11 // pred_check_branch
          %359 = sbr.rel (%p357) target = $region36
        $region35: #{tpu_custom_call.1} parent=11 // pred_region
          _
        $region36: #{tpu_custom_call.1} parent=11 // pred_fallthru
          _
        // Predicated region
        $region37: #{tpu_custom_call.1} parent=11 // pred_check
          %p360 = pneg %p250
        $region38: #{tpu_custom_call.1} parent=11 // pred_check_branch
          %362 = sbr.rel (%p360) target = $region40
        $region39: #{tpu_custom_call.1} parent=11 // pred_region
          _
        $region40: #{tpu_custom_call.1} parent=11 // pred_fallthru
          _
        // Predicated region
        $region41: #{tpu_custom_call.1} parent=11 // pred_check
          %p363 = pneg %p271
        $region42: #{tpu_custom_call.1} parent=11 // pred_check_branch
          %365 = sbr.rel (%p363) target = $region44
        $region43: #{tpu_custom_call.1} parent=11 // pred_region
          _
        $region44: #{tpu_custom_call.1} parent=11 // pred_fallthru
          _
      $region12: #{tpu_custom_call.1} parent=5 // pred_fallthru
        _
      %p366 = scmp.lt.s32.totalorder %s25, 2
      // Predicated region
      $region45: #{tpu_custom_call.1} parent=5 // pred_check
        %p367 = pneg %p366
      $region46: #{tpu_custom_call.1} parent=5 // pred_check_branch
        %369 = sbr.rel (%p367) target = $region48
      $region47: #{tpu_custom_call.1} parent=5 // pred_region
        // Predicated region
        $region49: #{tpu_custom_call.1} parent=47 // pred_check
          %p370 = pneg %p45
        $region50: #{tpu_custom_call.1} parent=47 // pred_check_branch
          %372 = sbr.rel (%p370) target = $region52
        $region51: #{tpu_custom_call.1} parent=47 // pred_region
          %s373 = sand.u32 %s35, 1
          %s374 = scalar_lea.sflag [#allocation3], %s373
          %s375 = sand.u32 %s35, 1
          %s376 = smul.addr %s375, 128
          %s377 = scalar_lea.vmem [#allocation2], %s376
          %s378 = smul.u32 2, %s25
          %s380 = ssub.s32 2048, 2048
          %381 = vsyncadd %s374, %s380
          %s382 = smul.addr %s378, 8
          %s383 = smul.addr %s382, 128
          %s384 = scalar_lea.hbm %s0, %s383
          %s385 = sshll.u32 %s377, 4
          %s386 = int_to_ptr.vmem [resolvable:$true] %s385
          %391 = dma.hbm_to_vmem [thread:$0]  %s384, 2048, %s386, %s374, 1024, 1024, 64
        $region52: #{tpu_custom_call.1} parent=47 // pred_fallthru
          _
        // Predicated region
        $region53: #{tpu_custom_call.1} parent=47 // pred_check
          %p392 = pneg %p71
        $region54: #{tpu_custom_call.1} parent=47 // pred_check_branch
          %394 = sbr.rel (%p392) target = $region56
        $region55: #{tpu_custom_call.1} parent=47 // pred_region
          %s395 = smul.u32 2, %s25
          %p396 = scmp.lt.s32.totalorder %s395, 3
          %s397 = scalar_select %p396, %s395, 3
          %s398 = scalar_lea.vmem %s1, %s397
          %s399 = smul.u32 2, %s25
        $region56: #{tpu_custom_call.1} parent=47 // pred_fallthru
          _
        // Predicated region
        $region57: #{tpu_custom_call.1} parent=47 // pred_check
          %p400 = pneg %p97
        $region58: #{tpu_custom_call.1} parent=47 // pred_check_branch
          %402 = sbr.rel (%p400) target = $region60
        $region59: #{tpu_custom_call.1} parent=47 // pred_region
          %s403 = smul.u32 2, %s25
          %p404 = scmp.lt.s32.totalorder %s403, 3
          %s405 = scalar_select %p404, %s403, 3
          %s406 = smul.addr %s405, 8
          %s407 = scalar_lea.vmem %s2, %s406
          %s408 = smul.u32 2, %s25
        $region60: #{tpu_custom_call.1} parent=47 // pred_fallthru
          _
      $region48: #{tpu_custom_call.1} parent=5 // pred_fallthru
        _
      %p409 = scmp.le.s32.totalorder 1, %s25
      %p410 = scmp.lt.s32.totalorder %s25, 3
      %p411 = pnand %p409, %p410
      %p412 = pneg %p411
      // Predicated region
      $region61: #{tpu_custom_call.1} parent=5 // pred_check
        _
      $region62: #{tpu_custom_call.1} parent=5 // pred_check_branch
        %414 = sbr.rel (%p411) target = $region64
      $region63: #{tpu_custom_call.1} parent=5 // pred_region
        %s415 = ssub.s32 %s25, 1
        %s416 = sand.u32 %s38, 1
        %s417 = scalar_lea.sflag [#allocation3], %s416
        %s418 = sand.u32 %s38, 1
        %s419 = smul.addr %s418, 128
        %s420 = scalar_lea.vmem [#allocation2], %s419
        // Predicated region
        $region65: #{tpu_custom_call.1} parent=63 // pred_check
          %p421 = pneg %p51
        $region66: #{tpu_custom_call.1} parent=63 // pred_check_branch
          %423 = sbr.rel (%p421) target = $region68
        $region67: #{tpu_custom_call.1} parent=63 // pred_region
          %424 = dma.done %s417, 2048
        $region68: #{tpu_custom_call.1} parent=63 // pred_fallthru
          _
        // Predicated region
        $region69: #{tpu_custom_call.1} parent=63 // pred_check
          %p425 = pneg %p124
        $region70: #{tpu_custom_call.1} parent=63 // pred_check_branch
          %427 = sbr.rel (%p425) target = $region72
        $region71: #{tpu_custom_call.1} parent=63 // pred_region
          %428 = dma.done [#allocation6], 16384
        $region72: #{tpu_custom_call.1} parent=63 // pred_fallthru
          _
        // Predicated region
        $region73: #{tpu_custom_call.1} parent=63 // pred_check
          %p429 = pneg %p166
        $region74: #{tpu_custom_call.1} parent=63 // pred_check_branch
          %431 = sbr.rel (%p429) target = $region76
        $region75: #{tpu_custom_call.1} parent=63 // pred_region
          %432 = dma.done [#allocation6], 12288
        $region76: #{tpu_custom_call.1} parent=63 // pred_fallthru
          _
        // Predicated region
        $region77: #{tpu_custom_call.1} parent=63 // pred_check
          %p433 = pneg %p208
        $region78: #{tpu_custom_call.1} parent=63 // pred_check_branch
          %435 = sbr.rel (%p433) target = $region80
        $region79: #{tpu_custom_call.1} parent=63 // pred_region
          %436 = dma.done [#allocation9], 4096
        $region80: #{tpu_custom_call.1} parent=63 // pred_fallthru
          _
        %s437 = sand.u32 %s38, 1
        %s438 = scalar_lea.sflag [#allocation3], %s437
        %s439 = sand.u32 %s38, 1
        %s440 = smul.addr %s439, 128
        %s441 = scalar_lea.vmem [#allocation2], %s440
        %p442 = pneg %p51
        %p443 = pneg %p48
        %s444 = smul.u32 2, %s30
        %p445 = scmp.lt.s32.totalorder %s444, 3
        %s446 = scalar_select %p445, %s444, 3
        %s447 = scalar_lea.vmem %s1, %s446
        %p448 = pneg %p77
        %p449 = pneg %p74
        %s450 = smul.u32 2, %s30
        %p451 = scmp.lt.s32.totalorder %s450, 3
        %s452 = scalar_select %p451, %s450, 3
        %s453 = smul.addr %s452, 8
        %s454 = scalar_lea.vmem %s2, %s453
        %p455 = pneg %p103
        %p456 = pneg %p100
        %p457 = pneg %p124
        %p458 = pneg %p121
        %p459 = pneg %p145
        %p460 = pneg %p142
        %p461 = pneg %p166
        %p462 = pneg %p163
        %p463 = pneg %p187
        %p464 = pneg %p184
        %p465 = pneg %p208
        %p466 = pneg %p205
        %p467 = pneg %p229
        %p468 = pneg %p226
        %p469 = pneg %p250
        %p470 = pneg %p247
        %p471 = pneg %p271
        %p472 = pneg %p268
        %p473 = pneg %p297
        %p474 = pneg %p294
        %s475 = sand.u32 %s284, 1
        %s476 = scalar_lea.sflag [#allocation4], %s475
        %s477 = sand.u32 %s284, 1
        %s478 = smul.addr %s477, 32
        %s479 = scalar_lea.vmem [#allocation10], %s478
        %s480 = smul.u32 2, %s30
        %s481 = smul.u32 2, %s30
        %p482 = scmp.lt.s32.totalorder %s481, 3
        %s483 = scalar_select %p482, %s481, 3
        %s484 = scalar_lea.vmem %s1, %s483
        %s485 = smul.u32 2, %s30
        %s486 = smul.u32 2, %s30
        %p487 = scmp.lt.s32.totalorder %s486, 3
        %s488 = scalar_select %p487, %s486, 3
        %s489 = smul.addr %s488, 8
        %s490 = scalar_lea.vmem %s2, %s489
        %s491 = smul.u32 2, %s30
        %s492 = smul.u32 2, %s30
        %v494 = vld [vmem:[%s420] sm:$0xff]
        %v495 = vld [vmem:[%s420 + $0x8] sm:$0xff]
        %v496 = vld [vmem:[%s420 + $0x10] sm:$0xff]
        %v497 = vld [vmem:[%s420 + $0x18] sm:$0xff]
        %v498 = vld [vmem:[%s420 + $0x20] sm:$0xff]
        %v499 = vld [vmem:[%s420 + $0x28] sm:$0xff]
        %v500 = vld [vmem:[%s420 + $0x30] sm:$0xff]
        %v501 = vld [vmem:[%s420 + $0x38] sm:$0xff]
        %v502 = vld [vmem:[%s420 + $0x40] sm:$0xff]
        %v503 = vld [vmem:[%s420 + $0x48] sm:$0xff]
        %v504 = vld [vmem:[%s420 + $0x50] sm:$0xff]
        %v505 = vld [vmem:[%s420 + $0x58] sm:$0xff]
        %v506 = vld [vmem:[%s420 + $0x60] sm:$0xff]
        %v507 = vld [vmem:[%s420 + $0x68] sm:$0xff]
        %v508 = vld [vmem:[%s420 + $0x70] sm:$0xff]
        %v509 = vld [vmem:[%s420 + $0x78] sm:$0xff]
        %v510 = vld [vmem:[%s490] sm:$0xff]
        %v511 = vld [vmem:[%s490 + $0x8] sm:$0xff]
        %v512 = vpack.c.bf16 %v502, %v494
        %v513 = vpack.c.bf16 %v503, %v495
        %v514 = vpack.c.bf16 %v504, %v496
        %v515 = vpack.c.bf16 %v505, %v497
        %v516 = vpack.c.bf16 %v506, %v498
        %v517 = vpack.c.bf16 %v507, %v499
        %v518 = vpack.c.bf16 %v508, %v500
        %v519 = vpack.c.bf16 %v509, %v501
        %v520 = vld [vmem:[#allocation5] sm:$0xff]
        %v521 = vld [vmem:[#allocation5 + $0x8] sm:$0xff]
        %v522 = vld [vmem:[#allocation5 + $0x10] sm:$0xff]
        %v523 = vld [vmem:[#allocation5 + $0x18] sm:$0xff]
        %v524 = vld [vmem:[#allocation5 + $0x20] sm:$0xff]
        %v525 = vld [vmem:[#allocation5 + $0x28] sm:$0xff]
        %v526 = vld [vmem:[#allocation5 + $0x30] sm:$0xff]
        %v527 = vld [vmem:[#allocation5 + $0x38] sm:$0xff]
        %v528 = vld [vmem:[#allocation5 + $0x40] sm:$0xff]
        %v529 = vld [vmem:[#allocation5 + $0x48] sm:$0xff]
        %v530 = vld [vmem:[#allocation5 + $0x50] sm:$0xff]
        %v531 = vld [vmem:[#allocation5 + $0x58] sm:$0xff]
        %v532 = vld [vmem:[#allocation5 + $0x60] sm:$0xff]
        %v533 = vld [vmem:[#allocation5 + $0x68] sm:$0xff]
        %v534 = vld [vmem:[#allocation5 + $0x70] sm:$0xff]
        %v535 = vld [vmem:[#allocation5 + $0x78] sm:$0xff]
        %v536 = vld [vmem:[#allocation5 + $0x80] sm:$0xff]
        %v537 = vld [vmem:[#allocation5 + $0x88] sm:$0xff]
        %v538 = vld [vmem:[#allocation5 + $0x90] sm:$0xff]
        %v539 = vld [vmem:[#allocation5 + $0x98] sm:$0xff]
        %v540 = vld [vmem:[#allocation5 + $0xa0] sm:$0xff]
        %v541 = vld [vmem:[#allocation5 + $0xa8] sm:$0xff]
        %v542 = vld [vmem:[#allocation5 + $0xb0] sm:$0xff]
        %v543 = vld [vmem:[#allocation5 + $0xb8] sm:$0xff]
        %v544 = vld [vmem:[#allocation5 + $0xc0] sm:$0xff]
        %v545 = vld [vmem:[#allocation5 + $0xc8] sm:$0xff]
        %v546 = vld [vmem:[#allocation5 + $0xd0] sm:$0xff]
        %v547 = vld [vmem:[#allocation5 + $0xd8] sm:$0xff]
        %v548 = vld [vmem:[#allocation5 + $0xe0] sm:$0xff]
        %v549 = vld [vmem:[#allocation5 + $0xe8] sm:$0xff]
        %v550 = vld [vmem:[#allocation5 + $0xf0] sm:$0xff]
        %v551 = vld [vmem:[#allocation5 + $0xf8] sm:$0xff]
        %v552 = vld [vmem:[#allocation5 + $0x100] sm:$0xff]
        %v553 = vld [vmem:[#allocation5 + $0x108] sm:$0xff]
        %v554 = vld [vmem:[#allocation5 + $0x110] sm:$0xff]
        %v555 = vld [vmem:[#allocation5 + $0x118] sm:$0xff]
        %v556 = vld [vmem:[#allocation5 + $0x120] sm:$0xff]
        %v557 = vld [vmem:[#allocation5 + $0x128] sm:$0xff]
        %v558 = vld [vmem:[#allocation5 + $0x130] sm:$0xff]
        %v559 = vld [vmem:[#allocation5 + $0x138] sm:$0xff]
        %v560 = vld [vmem:[#allocation5 + $0x140] sm:$0xff]
        %v561 = vld [vmem:[#allocation5 + $0x148] sm:$0xff]
        %v562 = vld [vmem:[#allocation5 + $0x150] sm:$0xff]
        %v563 = vld [vmem:[#allocation5 + $0x158] sm:$0xff]
        %v564 = vld [vmem:[#allocation5 + $0x160] sm:$0xff]
        %v565 = vld [vmem:[#allocation5 + $0x168] sm:$0xff]
        %v566 = vld [vmem:[#allocation5 + $0x170] sm:$0xff]
        %v567 = vld [vmem:[#allocation5 + $0x178] sm:$0xff]
        %v568 = vld [vmem:[#allocation5 + $0x180] sm:$0xff]
        %v569 = vld [vmem:[#allocation5 + $0x188] sm:$0xff]
        %v570 = vld [vmem:[#allocation5 + $0x190] sm:$0xff]
        %v571 = vld [vmem:[#allocation5 + $0x198] sm:$0xff]
        %v572 = vld [vmem:[#allocation5 + $0x1a0] sm:$0xff]
        %v573 = vld [vmem:[#allocation5 + $0x1a8] sm:$0xff]
        %v574 = vld [vmem:[#allocation5 + $0x1b0] sm:$0xff]
        %v575 = vld [vmem:[#allocation5 + $0x1b8] sm:$0xff]
        %v576 = vld [vmem:[#allocation5 + $0x1c0] sm:$0xff]
        %v577 = vld [vmem:[#allocation5 + $0x1c8] sm:$0xff]
        %v578 = vld [vmem:[#allocation5 + $0x1d0] sm:$0xff]
        %v579 = vld [vmem:[#allocation5 + $0x1d8] sm:$0xff]
        %v580 = vld [vmem:[#allocation5 + $0x1e0] sm:$0xff]
        %v581 = vld [vmem:[#allocation5 + $0x1e8] sm:$0xff]
        %v582 = vld [vmem:[#allocation5 + $0x1f0] sm:$0xff]
        %v583 = vld [vmem:[#allocation5 + $0x1f8] sm:$0xff]
        %v584 = vld [vmem:[#allocation5 + $0x200] sm:$0xff]
        %v585 = vld [vmem:[#allocation5 + $0x208] sm:$0xff]
        %v586 = vld [vmem:[#allocation5 + $0x210] sm:$0xff]
        %v587 = vld [vmem:[#allocation5 + $0x218] sm:$0xff]
        %v588 = vld [vmem:[#allocation5 + $0x220] sm:$0xff]
        %v589 = vld [vmem:[#allocation5 + $0x228] sm:$0xff]
        %v590 = vld [vmem:[#allocation5 + $0x230] sm:$0xff]
        %v591 = vld [vmem:[#allocation5 + $0x238] sm:$0xff]
        %v592 = vld [vmem:[#allocation5 + $0x240] sm:$0xff]
        %v593 = vld [vmem:[#allocation5 + $0x248] sm:$0xff]
        %v594 = vld [vmem:[#allocation5 + $0x250] sm:$0xff]
        %v595 = vld [vmem:[#allocation5 + $0x258] sm:$0xff]
        %v596 = vld [vmem:[#allocation5 + $0x260] sm:$0xff]
        %v597 = vld [vmem:[#allocation5 + $0x268] sm:$0xff]
        %v598 = vld [vmem:[#allocation5 + $0x270] sm:$0xff]
        %v599 = vld [vmem:[#allocation5 + $0x278] sm:$0xff]
        %v600 = vld [vmem:[#allocation5 + $0x280] sm:$0xff]
        %v601 = vld [vmem:[#allocation5 + $0x288] sm:$0xff]
        %v602 = vld [vmem:[#allocation5 + $0x290] sm:$0xff]
        %v603 = vld [vmem:[#allocation5 + $0x298] sm:$0xff]
        %v604 = vld [vmem:[#allocation5 + $0x2a0] sm:$0xff]
        %v605 = vld [vmem:[#allocation5 + $0x2a8] sm:$0xff]
        %v606 = vld [vmem:[#allocation5 + $0x2b0] sm:$0xff]
        %v607 = vld [vmem:[#allocation5 + $0x2b8] sm:$0xff]
        %v608 = vld [vmem:[#allocation5 + $0x2c0] sm:$0xff]
        %v609 = vld [vmem:[#allocation5 + $0x2c8] sm:$0xff]
        %v610 = vld [vmem:[#allocation5 + $0x2d0] sm:$0xff]
        %v611 = vld [vmem:[#allocation5 + $0x2d8] sm:$0xff]
        %v612 = vld [vmem:[#allocation5 + $0x2e0] sm:$0xff]
        %v613 = vld [vmem:[#allocation5 + $0x2e8] sm:$0xff]
        %v614 = vld [vmem:[#allocation5 + $0x2f0] sm:$0xff]
        %v615 = vld [vmem:[#allocation5 + $0x2f8] sm:$0xff]
        %v616 = vld [vmem:[#allocation5 + $0x300] sm:$0xff]
        %v617 = vld [vmem:[#allocation5 + $0x308] sm:$0xff]
        %v618 = vld [vmem:[#allocation5 + $0x310] sm:$0xff]
        %v619 = vld [vmem:[#allocation5 + $0x318] sm:$0xff]
        %v620 = vld [vmem:[#allocation5 + $0x320] sm:$0xff]
        %v621 = vld [vmem:[#allocation5 + $0x328] sm:$0xff]
        %v622 = vld [vmem:[#allocation5 + $0x330] sm:$0xff]
        %v623 = vld [vmem:[#allocation5 + $0x338] sm:$0xff]
        %v624 = vld [vmem:[#allocation5 + $0x340] sm:$0xff]
        %v625 = vld [vmem:[#allocation5 + $0x348] sm:$0xff]
        %v626 = vld [vmem:[#allocation5 + $0x350] sm:$0xff]
        %v627 = vld [vmem:[#allocation5 + $0x358] sm:$0xff]
        %v628 = vld [vmem:[#allocation5 + $0x360] sm:$0xff]
        %v629 = vld [vmem:[#allocation5 + $0x368] sm:$0xff]
        %v630 = vld [vmem:[#allocation5 + $0x370] sm:$0xff]
        %v631 = vld [vmem:[#allocation5 + $0x378] sm:$0xff]
        %v632 = vld [vmem:[#allocation5 + $0x380] sm:$0xff]
        %v633 = vld [vmem:[#allocation5 + $0x388] sm:$0xff]
        %v634 = vld [vmem:[#allocation5 + $0x390] sm:$0xff]
        %v635 = vld [vmem:[#allocation5 + $0x398] sm:$0xff]
        %v636 = vld [vmem:[#allocation5 + $0x3a0] sm:$0xff]
        %v637 = vld [vmem:[#allocation5 + $0x3a8] sm:$0xff]
        %v638 = vld [vmem:[#allocation5 + $0x3b0] sm:$0xff]
        %v639 = vld [vmem:[#allocation5 + $0x3b8] sm:$0xff]
        %v640 = vld [vmem:[#allocation5 + $0x3c0] sm:$0xff]
        %v641 = vld [vmem:[#allocation5 + $0x3c8] sm:$0xff]
        %v642 = vld [vmem:[#allocation5 + $0x3d0] sm:$0xff]
        %v643 = vld [vmem:[#allocation5 + $0x3d8] sm:$0xff]
        %v644 = vld [vmem:[#allocation5 + $0x3e0] sm:$0xff]
        %v645 = vld [vmem:[#allocation5 + $0x3e8] sm:$0xff]
        %v646 = vld [vmem:[#allocation5 + $0x3f0] sm:$0xff]
        %v647 = vld [vmem:[#allocation5 + $0x3f8] sm:$0xff]
        %v648 = vld [vmem:[%s4] sm:$0x3]
        %v650 = vlaneseq
        %v651 = vshrl.u32 %v650, 7
        %v652 = vsub.s32 0, %v651
        %v653 = vrot.slane %v648, %v652
        %v654 = vlaneseq
        %v655 = vshrl.u32 %v654, 7
        %v656 = vsub.s32 1, %v655
        %v657 = vrot.slane %v648, %v656
        %v788 = vunpack.c.l.b16 %v520
        %v789 = vunpack.c.h.b16 %v520
        %v790 = vunpack.c.l.b16 %v521
        %v791 = vunpack.c.h.b16 %v521
        %v792 = vunpack.c.l.b16 %v522
        %v793 = vunpack.c.h.b16 %v522
        %v794 = vunpack.c.l.b16 %v523
        %v795 = vunpack.c.h.b16 %v523
        %v796 = vunpack.c.l.b16 %v524
        %v797 = vunpack.c.h.b16 %v524
        %v798 = vunpack.c.l.b16 %v525
        %v799 = vunpack.c.h.b16 %v525
        %v800 = vunpack.c.l.b16 %v526
        %v801 = vunpack.c.h.b16 %v526
        %v802 = vunpack.c.l.b16 %v527
        %v803 = vunpack.c.h.b16 %v527
        %v804 = vunpack.c.l.b16 %v528
        %v805 = vunpack.c.h.b16 %v528
        %v806 = vunpack.c.l.b16 %v529
        %v807 = vunpack.c.h.b16 %v529
        %v808 = vunpack.c.l.b16 %v530
        %v809 = vunpack.c.h.b16 %v530
        %v810 = vunpack.c.l.b16 %v531
        %v811 = vunpack.c.h.b16 %v531
        %v812 = vunpack.c.l.b16 %v532
        %v813 = vunpack.c.h.b16 %v532
        %v814 = vunpack.c.l.b16 %v533
        %v815 = vunpack.c.h.b16 %v533
        %v816 = vunpack.c.l.b16 %v534
        %v817 = vunpack.c.h.b16 %v534
        %v818 = vunpack.c.l.b16 %v535
        %v819 = vunpack.c.h.b16 %v535
        %v820 = vunpack.c.l.b16 %v536
        %v821 = vunpack.c.h.b16 %v536
        %v822 = vunpack.c.l.b16 %v537
        %v823 = vunpack.c.h.b16 %v537
        %v824 = vunpack.c.l.b16 %v538
        %v825 = vunpack.c.h.b16 %v538
        %v826 = vunpack.c.l.b16 %v539
        %v827 = vunpack.c.h.b16 %v539
        %v828 = vunpack.c.l.b16 %v540
        %v829 = vunpack.c.h.b16 %v540
        %v830 = vunpack.c.l.b16 %v541
        %v831 = vunpack.c.h.b16 %v541
        %v832 = vunpack.c.l.b16 %v542
        %v833 = vunpack.c.h.b16 %v542
        %v834 = vunpack.c.l.b16 %v543
        %v835 = vunpack.c.h.b16 %v543
        %v836 = vunpack.c.l.b16 %v544
        %v837 = vunpack.c.h.b16 %v544
        %v838 = vunpack.c.l.b16 %v545
        %v839 = vunpack.c.h.b16 %v545
        %v840 = vunpack.c.l.b16 %v546
        %v841 = vunpack.c.h.b16 %v546
        %v842 = vunpack.c.l.b16 %v547
        %v843 = vunpack.c.h.b16 %v547
        %v844 = vunpack.c.l.b16 %v548
        %v845 = vunpack.c.h.b16 %v548
        %v846 = vunpack.c.l.b16 %v549
        %v847 = vunpack.c.h.b16 %v549
        %v848 = vunpack.c.l.b16 %v550
        %v849 = vunpack.c.h.b16 %v550
        %v850 = vunpack.c.l.b16 %v551
        %v851 = vunpack.c.h.b16 %v551
        %v852 = vunpack.c.l.b16 %v552
        %v853 = vunpack.c.h.b16 %v552
        %v854 = vunpack.c.l.b16 %v553
        %v855 = vunpack.c.h.b16 %v553
        %v856 = vunpack.c.l.b16 %v554
        %v857 = vunpack.c.h.b16 %v554
        %v858 = vunpack.c.l.b16 %v555
        %v859 = vunpack.c.h.b16 %v555
        %v860 = vunpack.c.l.b16 %v556
        %v861 = vunpack.c.h.b16 %v556
        %v862 = vunpack.c.l.b16 %v557
        %v863 = vunpack.c.h.b16 %v557
        %v864 = vunpack.c.l.b16 %v558
        %v865 = vunpack.c.h.b16 %v558
        %v866 = vunpack.c.l.b16 %v559
        %v867 = vunpack.c.h.b16 %v559
        %v868 = vunpack.c.l.b16 %v560
        %v869 = vunpack.c.h.b16 %v560
        %v870 = vunpack.c.l.b16 %v561
        %v871 = vunpack.c.h.b16 %v561
        %v872 = vunpack.c.l.b16 %v562
        %v873 = vunpack.c.h.b16 %v562
        %v874 = vunpack.c.l.b16 %v563
        %v875 = vunpack.c.h.b16 %v563
        %v876 = vunpack.c.l.b16 %v564
        %v877 = vunpack.c.h.b16 %v564
        %v878 = vunpack.c.l.b16 %v565
        %v879 = vunpack.c.h.b16 %v565
        %v880 = vunpack.c.l.b16 %v566
        %v881 = vunpack.c.h.b16 %v566
        %v882 = vunpack.c.l.b16 %v567
        %v883 = vunpack.c.h.b16 %v567
        %v884 = vunpack.c.l.b16 %v568
        %v885 = vunpack.c.h.b16 %v568
        %v886 = vunpack.c.l.b16 %v569
        %v887 = vunpack.c.h.b16 %v569
        %v888 = vunpack.c.l.b16 %v570
        %v889 = vunpack.c.h.b16 %v570
        %v890 = vunpack.c.l.b16 %v571
        %v891 = vunpack.c.h.b16 %v571
        %v892 = vunpack.c.l.b16 %v572
        %v893 = vunpack.c.h.b16 %v572
        %v894 = vunpack.c.l.b16 %v573
        %v895 = vunpack.c.h.b16 %v573
        %v896 = vunpack.c.l.b16 %v574
        %v897 = vunpack.c.h.b16 %v574
        %v898 = vunpack.c.l.b16 %v575
        %v899 = vunpack.c.h.b16 %v575
        %v900 = vunpack.c.l.b16 %v576
        %v901 = vunpack.c.h.b16 %v576
        %v902 = vunpack.c.l.b16 %v577
        %v903 = vunpack.c.h.b16 %v577
        %v904 = vunpack.c.l.b16 %v578
        %v905 = vunpack.c.h.b16 %v578
        %v906 = vunpack.c.l.b16 %v579
        %v907 = vunpack.c.h.b16 %v579
        %v908 = vunpack.c.l.b16 %v580
        %v909 = vunpack.c.h.b16 %v580
        %v910 = vunpack.c.l.b16 %v581
        %v911 = vunpack.c.h.b16 %v581
        %v912 = vunpack.c.l.b16 %v582
        %v913 = vunpack.c.h.b16 %v582
        %v914 = vunpack.c.l.b16 %v583
        %v915 = vunpack.c.h.b16 %v583
        %v916 = vunpack.c.l.b16 %v584
        %v917 = vunpack.c.h.b16 %v584
        %v918 = vunpack.c.l.b16 %v585
        %v919 = vunpack.c.h.b16 %v585
        %v920 = vunpack.c.l.b16 %v586
        %v921 = vunpack.c.h.b16 %v586
        %v922 = vunpack.c.l.b16 %v587
        %v923 = vunpack.c.h.b16 %v587
        %v924 = vunpack.c.l.b16 %v588
        %v925 = vunpack.c.h.b16 %v588
        %v926 = vunpack.c.l.b16 %v589
        %v927 = vunpack.c.h.b16 %v589
        %v928 = vunpack.c.l.b16 %v590
        %v929 = vunpack.c.h.b16 %v590
        %v930 = vunpack.c.l.b16 %v591
        %v931 = vunpack.c.h.b16 %v591
        %v932 = vunpack.c.l.b16 %v592
        %v933 = vunpack.c.h.b16 %v592
        %v934 = vunpack.c.l.b16 %v593
        %v935 = vunpack.c.h.b16 %v593
        %v936 = vunpack.c.l.b16 %v594
        %v937 = vunpack.c.h.b16 %v594
        %v938 = vunpack.c.l.b16 %v595
        %v939 = vunpack.c.h.b16 %v595
        %v940 = vunpack.c.l.b16 %v596
        %v941 = vunpack.c.h.b16 %v596
        %v942 = vunpack.c.l.b16 %v597
        %v943 = vunpack.c.h.b16 %v597
        %v944 = vunpack.c.l.b16 %v598
        %v945 = vunpack.c.h.b16 %v598
        %v946 = vunpack.c.l.b16 %v599
        %v947 = vunpack.c.h.b16 %v599
        %v948 = vunpack.c.l.b16 %v600
        %v949 = vunpack.c.h.b16 %v600
        %v950 = vunpack.c.l.b16 %v601
        %v951 = vunpack.c.h.b16 %v601
        %v952 = vunpack.c.l.b16 %v602
        %v953 = vunpack.c.h.b16 %v602
        %v954 = vunpack.c.l.b16 %v603
        %v955 = vunpack.c.h.b16 %v603
        %v956 = vunpack.c.l.b16 %v604
        %v957 = vunpack.c.h.b16 %v604
        %v958 = vunpack.c.l.b16 %v605
        %v959 = vunpack.c.h.b16 %v605
        %v960 = vunpack.c.l.b16 %v606
        %v961 = vunpack.c.h.b16 %v606
        %v962 = vunpack.c.l.b16 %v607
        %v963 = vunpack.c.h.b16 %v607
        %v964 = vunpack.c.l.b16 %v608
        %v965 = vunpack.c.h.b16 %v608
        %v966 = vunpack.c.l.b16 %v609
        %v967 = vunpack.c.h.b16 %v609
        %v968 = vunpack.c.l.b16 %v610
        %v969 = vunpack.c.h.b16 %v610
        %v970 = vunpack.c.l.b16 %v611
        %v971 = vunpack.c.h.b16 %v611
        %v972 = vunpack.c.l.b16 %v612
        %v973 = vunpack.c.h.b16 %v612
        %v974 = vunpack.c.l.b16 %v613
        %v975 = vunpack.c.h.b16 %v613
        %v976 = vunpack.c.l.b16 %v614
        %v977 = vunpack.c.h.b16 %v614
        %v978 = vunpack.c.l.b16 %v615
        %v979 = vunpack.c.h.b16 %v615
        %v980 = vunpack.c.l.b16 %v616
        %v981 = vunpack.c.h.b16 %v616
        %v982 = vunpack.c.l.b16 %v617
        %v983 = vunpack.c.h.b16 %v617
        %v984 = vunpack.c.l.b16 %v618
        %v985 = vunpack.c.h.b16 %v618
        %v986 = vunpack.c.l.b16 %v619
        %v987 = vunpack.c.h.b16 %v619
        %v988 = vunpack.c.l.b16 %v620
        %v989 = vunpack.c.h.b16 %v620
        %v990 = vunpack.c.l.b16 %v621
        %v991 = vunpack.c.h.b16 %v621
        %v992 = vunpack.c.l.b16 %v622
        %v993 = vunpack.c.h.b16 %v622
        %v994 = vunpack.c.l.b16 %v623
        %v995 = vunpack.c.h.b16 %v623
        %v996 = vunpack.c.l.b16 %v624
        %v997 = vunpack.c.h.b16 %v624
        %v998 = vunpack.c.l.b16 %v625
        %v999 = vunpack.c.h.b16 %v625
        %v1000 = vunpack.c.l.b16 %v626
        %v1001 = vunpack.c.h.b16 %v626
        %v1002 = vunpack.c.l.b16 %v627
        %v1003 = vunpack.c.h.b16 %v627
        %v1004 = vunpack.c.l.b16 %v628
        %v1005 = vunpack.c.h.b16 %v628
        %v1006 = vunpack.c.l.b16 %v629
        %v1007 = vunpack.c.h.b16 %v629
        %v1008 = vunpack.c.l.b16 %v630
        %v1009 = vunpack.c.h.b16 %v630
        %v1010 = vunpack.c.l.b16 %v631
        %v1011 = vunpack.c.h.b16 %v631
        %v1012 = vunpack.c.l.b16 %v632
        %v1013 = vunpack.c.h.b16 %v632
        %v1014 = vunpack.c.l.b16 %v633
        %v1015 = vunpack.c.h.b16 %v633
        %v1016 = vunpack.c.l.b16 %v634
        %v1017 = vunpack.c.h.b16 %v634
        %v1018 = vunpack.c.l.b16 %v635
        %v1019 = vunpack.c.h.b16 %v635
        %v1020 = vunpack.c.l.b16 %v636
        %v1021 = vunpack.c.h.b16 %v636
        %v1022 = vunpack.c.l.b16 %v637
        %v1023 = vunpack.c.h.b16 %v637
        %v1024 = vunpack.c.l.b16 %v638
        %v1025 = vunpack.c.h.b16 %v638
        %v1026 = vunpack.c.l.b16 %v639
        %v1027 = vunpack.c.h.b16 %v639
        %v1028 = vunpack.c.l.b16 %v640
        %v1029 = vunpack.c.h.b16 %v640
        %v1030 = vunpack.c.l.b16 %v641
        %v1031 = vunpack.c.h.b16 %v641
        %v1032 = vunpack.c.l.b16 %v642
        %v1033 = vunpack.c.h.b16 %v642
        %v1034 = vunpack.c.l.b16 %v643
        %v1035 = vunpack.c.h.b16 %v643
        %v1036 = vunpack.c.l.b16 %v644
        %v1037 = vunpack.c.h.b16 %v644
        %v1038 = vunpack.c.l.b16 %v645
        %v1039 = vunpack.c.h.b16 %v645
        %v1040 = vunpack.c.l.b16 %v646
        %v1041 = vunpack.c.h.b16 %v646
        %v1042 = vunpack.c.l.b16 %v647
        %v1043 = vunpack.c.h.b16 %v647
        %v1044 = vpack.c.b16 %v790, %v788
        %v1045 = vpack.c.b16 %v791, %v789
        %v1046 = vpack.c.b16 %v794, %v792
        %v1047 = vpack.c.b16 %v795, %v793
        %v1048 = vpack.c.b16 %v798, %v796
        %v1049 = vpack.c.b16 %v799, %v797
        %v1050 = vpack.c.b16 %v802, %v800
        %v1051 = vpack.c.b16 %v803, %v801
        %v1052 = vpack.c.b16 %v806, %v804
        %v1053 = vpack.c.b16 %v807, %v805
        %v1054 = vpack.c.b16 %v810, %v808
        %v1055 = vpack.c.b16 %v811, %v809
        %v1056 = vpack.c.b16 %v814, %v812
        %v1057 = vpack.c.b16 %v815, %v813
        %v1058 = vpack.c.b16 %v818, %v816
        %v1059 = vpack.c.b16 %v819, %v817
        %v1060 = vpack.c.b16 %v822, %v820
        %v1061 = vpack.c.b16 %v823, %v821
        %v1062 = vpack.c.b16 %v826, %v824
        %v1063 = vpack.c.b16 %v827, %v825
        %v1064 = vpack.c.b16 %v830, %v828
        %v1065 = vpack.c.b16 %v831, %v829
        %v1066 = vpack.c.b16 %v834, %v832
        %v1067 = vpack.c.b16 %v835, %v833
        %v1068 = vpack.c.b16 %v838, %v836
        %v1069 = vpack.c.b16 %v839, %v837
        %v1070 = vpack.c.b16 %v842, %v840
        %v1071 = vpack.c.b16 %v843, %v841
        %v1072 = vpack.c.b16 %v846, %v844
        %v1073 = vpack.c.b16 %v847, %v845
        %v1074 = vpack.c.b16 %v850, %v848
        %v1075 = vpack.c.b16 %v851, %v849
        %v1076 = vpack.c.b16 %v854, %v852
        %v1077 = vpack.c.b16 %v855, %v853
        %v1078 = vpack.c.b16 %v858, %v856
        %v1079 = vpack.c.b16 %v859, %v857
        %v1080 = vpack.c.b16 %v862, %v860
        %v1081 = vpack.c.b16 %v863, %v861
        %v1082 = vpack.c.b16 %v866, %v864
        %v1083 = vpack.c.b16 %v867, %v865
        %v1084 = vpack.c.b16 %v870, %v868
        %v1085 = vpack.c.b16 %v871, %v869
        %v1086 = vpack.c.b16 %v874, %v872
        %v1087 = vpack.c.b16 %v875, %v873
        %v1088 = vpack.c.b16 %v878, %v876
        %v1089 = vpack.c.b16 %v879, %v877
        %v1090 = vpack.c.b16 %v882, %v880
        %v1091 = vpack.c.b16 %v883, %v881
        %v1092 = vpack.c.b16 %v886, %v884
        %v1093 = vpack.c.b16 %v887, %v885
        %v1094 = vpack.c.b16 %v890, %v888
        %v1095 = vpack.c.b16 %v891, %v889
        %v1096 = vpack.c.b16 %v894, %v892
        %v1097 = vpack.c.b16 %v895, %v893
        %v1098 = vpack.c.b16 %v898, %v896
        %v1099 = vpack.c.b16 %v899, %v897
        %v1100 = vpack.c.b16 %v902, %v900
        %v1101 = vpack.c.b16 %v903, %v901
        %v1102 = vpack.c.b16 %v906, %v904
        %v1103 = vpack.c.b16 %v907, %v905
        %v1104 = vpack.c.b16 %v910, %v908
        %v1105 = vpack.c.b16 %v911, %v909
        %v1106 = vpack.c.b16 %v914, %v912
        %v1107 = vpack.c.b16 %v915, %v913
        %v1108 = vpack.c.b16 %v918, %v916
        %v1109 = vpack.c.b16 %v919, %v917
        %v1110 = vpack.c.b16 %v922, %v920
        %v1111 = vpack.c.b16 %v923, %v921
        %v1112 = vpack.c.b16 %v926, %v924
        %v1113 = vpack.c.b16 %v927, %v925
        %v1114 = vpack.c.b16 %v930, %v928
        %v1115 = vpack.c.b16 %v931, %v929
        %v1116 = vpack.c.b16 %v934, %v932
        %v1117 = vpack.c.b16 %v935, %v933
        %v1118 = vpack.c.b16 %v938, %v936
        %v1119 = vpack.c.b16 %v939, %v937
        %v1120 = vpack.c.b16 %v942, %v940
        %v1121 = vpack.c.b16 %v943, %v941
        %v1122 = vpack.c.b16 %v946, %v944
        %v1123 = vpack.c.b16 %v947, %v945
        %v1124 = vpack.c.b16 %v950, %v948
        %v1125 = vpack.c.b16 %v951, %v949
        %v1126 = vpack.c.b16 %v954, %v952
        %v1127 = vpack.c.b16 %v955, %v953
        %v1128 = vpack.c.b16 %v958, %v956
        %v1129 = vpack.c.b16 %v959, %v957
        %v1130 = vpack.c.b16 %v962, %v960
        %v1131 = vpack.c.b16 %v963, %v961
        %v1132 = vpack.c.b16 %v966, %v964
        %v1133 = vpack.c.b16 %v967, %v965
        %v1134 = vpack.c.b16 %v970, %v968
        %v1135 = vpack.c.b16 %v971, %v969
        %v1136 = vpack.c.b16 %v974, %v972
        %v1137 = vpack.c.b16 %v975, %v973
        %v1138 = vpack.c.b16 %v978, %v976
        %v1139 = vpack.c.b16 %v979, %v977
        %v1140 = vpack.c.b16 %v982, %v980
        %v1141 = vpack.c.b16 %v983, %v981
        %v1142 = vpack.c.b16 %v986, %v984
        %v1143 = vpack.c.b16 %v987, %v985
        %v1144 = vpack.c.b16 %v990, %v988
        %v1145 = vpack.c.b16 %v991, %v989
        %v1146 = vpack.c.b16 %v994, %v992
        %v1147 = vpack.c.b16 %v995, %v993
        %v1148 = vpack.c.b16 %v998, %v996
        %v1149 = vpack.c.b16 %v999, %v997
        %v1150 = vpack.c.b16 %v1002, %v1000
        %v1151 = vpack.c.b16 %v1003, %v1001
        %v1152 = vpack.c.b16 %v1006, %v1004
        %v1153 = vpack.c.b16 %v1007, %v1005
        %v1154 = vpack.c.b16 %v1010, %v1008
        %v1155 = vpack.c.b16 %v1011, %v1009
        %v1156 = vpack.c.b16 %v1014, %v1012
        %v1157 = vpack.c.b16 %v1015, %v1013
        %v1158 = vpack.c.b16 %v1018, %v1016
        %v1159 = vpack.c.b16 %v1019, %v1017
        %v1160 = vpack.c.b16 %v1022, %v1020
        %v1161 = vpack.c.b16 %v1023, %v1021
        %v1162 = vpack.c.b16 %v1026, %v1024
        %v1163 = vpack.c.b16 %v1027, %v1025
        %v1164 = vpack.c.b16 %v1030, %v1028
        %v1165 = vpack.c.b16 %v1031, %v1029
        %v1166 = vpack.c.b16 %v1034, %v1032
        %v1167 = vpack.c.b16 %v1035, %v1033
        %v1168 = vpack.c.b16 %v1038, %v1036
        %v1169 = vpack.c.b16 %v1039, %v1037
        %v1170 = vpack.c.b16 %v1042, %v1040
        %v1171 = vpack.c.b16 %v1043, %v1041
        %1300 = vmatprep.subr.bf16.mxu0 %v1059
        %1301 = vmatpush1.bf16.msra.mxu0 %v1058
        %1302 = vmatprep.subr.bf16.mxu0 %v1057
        %1303 = vmatpush1.bf16.msra.mxu0 %v1056
        %1304 = vmatprep.subr.bf16.mxu0 %v1055
        %1305 = vmatpush1.bf16.msra.mxu0 %v1054
        %1306 = vmatprep.subr.bf16.mxu0 %v1053
        %1307 = vmatpush1.bf16.msra.mxu0 %v1052
        %1308 = vmatprep.subr.bf16.mxu0 %v1051
        %1309 = vmatpush1.bf16.msra.mxu0 %v1050
        %1310 = vmatprep.subr.bf16.mxu0 %v1049
        %1311 = vmatpush1.bf16.msra.mxu0 %v1048
        %1312 = vmatprep.subr.bf16.mxu0 %v1047
        %1313 = vmatpush1.bf16.msra.mxu0 %v1046
        %1314 = vmatprep.subr.bf16.mxu0 %v1045
        %1315 = vmatpush1.bf16.msra.mxu0 %v1044
        %1316 = vmatprep.subr.bf16.mxu0 %v1075
        %1317 = vmatpush2.bf16.msra.mxu0 %v1074
        %1318 = vmatprep.subr.bf16.mxu0 %v1073
        %1319 = vmatpush2.bf16.msra.mxu0 %v1072
        %1320 = vmatprep.subr.bf16.mxu0 %v1071
        %1321 = vmatpush2.bf16.msra.mxu0 %v1070
        %1322 = vmatprep.subr.bf16.mxu0 %v1069
        %1323 = vmatpush2.bf16.msra.mxu0 %v1068
        %1324 = vmatprep.subr.bf16.mxu0 %v1067
        %1325 = vmatpush2.bf16.msra.mxu0 %v1066
        %1326 = vmatprep.subr.bf16.mxu0 %v1065
        %1327 = vmatpush2.bf16.msra.mxu0 %v1064
        %1328 = vmatprep.subr.bf16.mxu0 %v1063
        %1329 = vmatpush2.bf16.msra.mxu0 %v1062
        %1330 = vmatprep.subr.bf16.mxu0 %v1061
        %1331 = vmatpush2.bf16.msra.mxu0 %v1060
        %1332 = vmatprep.mubr.bf16.mxu0 %v513
        %1333 = vmatmul.mubr.bf16.gmra.mxu0 %v512
        %v1334 = vpop.f32.mrf.mxu0
        %v1335 = vadd.f32 %v653, %v1334
        %v1336 = vpop.f32.mrf.mxu0
        %v1337 = vadd.f32 %v657, %v1336
        %v1338 = vpop.f32.mrf.mxu0
        %v1339 = vadd.f32 %v653, %v1338
        %v1340 = vpop.f32.mrf.mxu0
        %v1341 = vadd.f32 %v657, %v1340
        %1342 = vdwg.mxu0
        %1343 = vmatprep.subr.bf16.mxu0 %v1091
        %1344 = vmatpush1.bf16.msra.mxu0 %v1090
        %1345 = vmatprep.subr.bf16.mxu0 %v1089
        %1346 = vmatpush1.bf16.msra.mxu0 %v1088
        %1347 = vmatprep.subr.bf16.mxu0 %v1087
        %1348 = vmatpush1.bf16.msra.mxu0 %v1086
        %1349 = vmatprep.subr.bf16.mxu0 %v1085
        %1350 = vmatpush1.bf16.msra.mxu0 %v1084
        %1351 = vmatprep.subr.bf16.mxu0 %v1083
        %1352 = vmatpush1.bf16.msra.mxu0 %v1082
        %1353 = vmatprep.subr.bf16.mxu0 %v1081
        %1354 = vmatpush1.bf16.msra.mxu0 %v1080
        %1355 = vmatprep.subr.bf16.mxu0 %v1079
        %1356 = vmatpush1.bf16.msra.mxu0 %v1078
        %1357 = vmatprep.subr.bf16.mxu0 %v1077
        %1358 = vmatpush1.bf16.msra.mxu0 %v1076
        %1359 = vmatprep.subr.bf16.mxu0 %v1107
        %1360 = vmatpush2.bf16.msra.mxu0 %v1106
        %1361 = vmatprep.subr.bf16.mxu0 %v1105
        %1362 = vmatpush2.bf16.msra.mxu0 %v1104
        %1363 = vmatprep.subr.bf16.mxu0 %v1103
        %1364 = vmatpush2.bf16.msra.mxu0 %v1102
        %1365 = vmatprep.subr.bf16.mxu0 %v1101
        %1366 = vmatpush2.bf16.msra.mxu0 %v1100
        %1367 = vmatprep.subr.bf16.mxu0 %v1099
        %1368 = vmatpush2.bf16.msra.mxu0 %v1098
        %1369 = vmatprep.subr.bf16.mxu0 %v1097
        %1370 = vmatpush2.bf16.msra.mxu0 %v1096
        %1371 = vmatprep.subr.bf16.mxu0 %v1095
        %1372 = vmatpush2.bf16.msra.mxu0 %v1094
        %1373 = vmatprep.subr.bf16.mxu0 %v1093
        %1374 = vmatpush2.bf16.msra.mxu0 %v1092
        %1375 = vmatprep.mubr.bf16.mxu0 %v515
        %1376 = vmatmul.mubr.bf16.gmra.mxu0 %v514
        %v1377 = vpop.f32.mrf.mxu0
        %v1378 = vadd.f32 %v1335, %v1377
        %v1379 = vpop.f32.mrf.mxu0
        %v1380 = vadd.f32 %v1337, %v1379
        %v1381 = vpop.f32.mrf.mxu0
        %v1382 = vadd.f32 %v1339, %v1381
        %v1383 = vpop.f32.mrf.mxu0
        %v1384 = vadd.f32 %v1341, %v1383
        %1385 = vdwg.mxu0
        %1386 = vmatprep.subr.bf16.mxu0 %v1123
        %1387 = vmatpush1.bf16.msra.mxu0 %v1122
        %1388 = vmatprep.subr.bf16.mxu0 %v1121
        %1389 = vmatpush1.bf16.msra.mxu0 %v1120
        %1390 = vmatprep.subr.bf16.mxu0 %v1119
        %1391 = vmatpush1.bf16.msra.mxu0 %v1118
        %1392 = vmatprep.subr.bf16.mxu0 %v1117
        %1393 = vmatpush1.bf16.msra.mxu0 %v1116
        %1394 = vmatprep.subr.bf16.mxu0 %v1115
        %1395 = vmatpush1.bf16.msra.mxu0 %v1114
        %1396 = vmatprep.subr.bf16.mxu0 %v1113
        %1397 = vmatpush1.bf16.msra.mxu0 %v1112
        %1398 = vmatprep.subr.bf16.mxu0 %v1111
        %1399 = vmatpush1.bf16.msra.mxu0 %v1110
        %1400 = vmatprep.subr.bf16.mxu0 %v1109
        %1401 = vmatpush1.bf16.msra.mxu0 %v1108
        %1402 = vmatprep.subr.bf16.mxu0 %v1139
        %1403 = vmatpush2.bf16.msra.mxu0 %v1138
        %1404 = vmatprep.subr.bf16.mxu0 %v1137
        %1405 = vmatpush2.bf16.msra.mxu0 %v1136
        %1406 = vmatprep.subr.bf16.mxu0 %v1135
        %1407 = vmatpush2.bf16.msra.mxu0 %v1134
        %1408 = vmatprep.subr.bf16.mxu0 %v1133
        %1409 = vmatpush2.bf16.msra.mxu0 %v1132
        %1410 = vmatprep.subr.bf16.mxu0 %v1131
        %1411 = vmatpush2.bf16.msra.mxu0 %v1130
        %1412 = vmatprep.subr.bf16.mxu0 %v1129
        %1413 = vmatpush2.bf16.msra.mxu0 %v1128
        %1414 = vmatprep.subr.bf16.mxu0 %v1127
        %1415 = vmatpush2.bf16.msra.mxu0 %v1126
        %1416 = vmatprep.subr.bf16.mxu0 %v1125
        %1417 = vmatpush2.bf16.msra.mxu0 %v1124
        %1418 = vmatprep.mubr.bf16.mxu0 %v517
        %1419 = vmatmul.mubr.bf16.gmra.mxu0 %v516
        %v1420 = vpop.f32.mrf.mxu0
        %v1421 = vadd.f32 %v1378, %v1420
        %v1422 = vpop.f32.mrf.mxu0
        %v1423 = vadd.f32 %v1380, %v1422
        %v1424 = vpop.f32.mrf.mxu0
        %v1425 = vadd.f32 %v1382, %v1424
        %v1426 = vpop.f32.mrf.mxu0
        %v1427 = vadd.f32 %v1384, %v1426
        %1428 = vdwg.mxu0
        %1429 = vmatprep.subr.bf16.mxu0 %v1155
        %1430 = vmatpush1.bf16.msra.mxu0 %v1154
        %1431 = vmatprep.subr.bf16.mxu0 %v1153
        %1432 = vmatpush1.bf16.msra.mxu0 %v1152
        %1433 = vmatprep.subr.bf16.mxu0 %v1151
        %1434 = vmatpush1.bf16.msra.mxu0 %v1150
        %1435 = vmatprep.subr.bf16.mxu0 %v1149
        %1436 = vmatpush1.bf16.msra.mxu0 %v1148
        %1437 = vmatprep.subr.bf16.mxu0 %v1147
        %1438 = vmatpush1.bf16.msra.mxu0 %v1146
        %1439 = vmatprep.subr.bf16.mxu0 %v1145
        %1440 = vmatpush1.bf16.msra.mxu0 %v1144
        %1441 = vmatprep.subr.bf16.mxu0 %v1143
        %1442 = vmatpush1.bf16.msra.mxu0 %v1142
        %1443 = vmatprep.subr.bf16.mxu0 %v1141
        %1444 = vmatpush1.bf16.msra.mxu0 %v1140
        %1445 = vmatprep.subr.bf16.mxu0 %v1171
        %1446 = vmatpush2.bf16.msra.mxu0 %v1170
        %1447 = vmatprep.subr.bf16.mxu0 %v1169
        %1448 = vmatpush2.bf16.msra.mxu0 %v1168
        %1449 = vmatprep.subr.bf16.mxu0 %v1167
        %1450 = vmatpush2.bf16.msra.mxu0 %v1166
        %1451 = vmatprep.subr.bf16.mxu0 %v1165
        %1452 = vmatpush2.bf16.msra.mxu0 %v1164
        %1453 = vmatprep.subr.bf16.mxu0 %v1163
        %1454 = vmatpush2.bf16.msra.mxu0 %v1162
        %1455 = vmatprep.subr.bf16.mxu0 %v1161
        %1456 = vmatpush2.bf16.msra.mxu0 %v1160
        %1457 = vmatprep.subr.bf16.mxu0 %v1159
        %1458 = vmatpush2.bf16.msra.mxu0 %v1158
        %1459 = vmatprep.subr.bf16.mxu0 %v1157
        %1460 = vmatpush2.bf16.msra.mxu0 %v1156
        %1461 = vmatprep.mubr.bf16.mxu0 %v519
        %1462 = vmatmul.mubr.bf16.gmra.mxu0 %v518
        %v1463 = vpop.f32.mrf.mxu0
        %v1464 = vadd.f32 %v1421, %v1463
        %v1465 = vpop.f32.mrf.mxu0
        %v1466 = vadd.f32 %v1423, %v1465
        %v1467 = vpop.f32.mrf.mxu0
        %v1468 = vadd.f32 %v1425, %v1467
        %v1469 = vpop.f32.mrf.mxu0
        %v1470 = vadd.f32 %v1427, %v1469
        %1471 = vdwg.mxu0
        %1473 = vset.pattern.permute.xlu0 0
        %1474 = vperm.xlu0 %1473, %v510
        %v1475 = vpop.permute.xlu0 %1474
        %1478 = vset.pattern.permute.xlu0 0
        %1479 = vperm.xlu0 %1478, %v511
        %v1480 = vpop.permute.xlu0 %1479
        %v1482 = vmul.f32 %v1464, %v1475
        %v1483 = vmul.f32 %v1466, %v1475
        %v1484 = vmul.f32 %v1468, %v1480
        %v1485 = vmul.f32 %v1470, %v1480
        %v1486 = vmul.f32 %v1482, 0.5
        %v1487 = vmul.f32 %v1483, 0.5
        %v1488 = vmul.f32 %v1484, 0.5
        %v1489 = vmul.f32 %v1485, 0.5
        %v1490 = vrcp.pop 1.4142135
        %v1491 = vmul.f32 %v1482, %v1490
        %v1492 = vmul.f32 %v1483, %v1490
        %v1493 = vmul.f32 %v1484, %v1490
        %v1494 = vmul.f32 %v1485, %v1490
        %v1495 = verf.f32.pop %v1491
        %v1496 = verf.f32.pop %v1492
        %v1497 = verf.f32.pop %v1493
        %v1498 = verf.f32.pop %v1494
        %v1499 = vadd.f32 %v1495, 1.0
        %v1500 = vadd.f32 %v1496, 1.0
        %v1501 = vadd.f32 %v1497, 1.0
        %v1502 = vadd.f32 %v1498, 1.0
        %v1503 = vmul.f32 %v1486, %v1499
        %v1504 = vmul.f32 %v1487, %v1500
        %v1505 = vmul.f32 %v1488, %v1501
        %v1506 = vmul.f32 %v1489, %v1502
        %v1507 = vpack.c.bf16 %v1505, %v1503
        %v1508 = vpack.c.bf16 %v1506, %v1504
        %v1509 = vld [vmem:[#allocation7] sm:$0xff]
        %v1510 = vld [vmem:[#allocation7 + $0x8] sm:$0xff]
        %v1511 = vld [vmem:[#allocation7 + $0x10] sm:$0xff]
        %v1512 = vld [vmem:[#allocation7 + $0x18] sm:$0xff]
        %v1513 = vld [vmem:[#allocation7 + $0x20] sm:$0xff]
        %v1514 = vld [vmem:[#allocation7 + $0x28] sm:$0xff]
        %v1515 = vld [vmem:[#allocation7 + $0x30] sm:$0xff]
        %v1516 = vld [vmem:[#allocation7 + $0x38] sm:$0xff]
        %v1517 = vld [vmem:[#allocation7 + $0x40] sm:$0xff]
        %v1518 = vld [vmem:[#allocation7 + $0x48] sm:$0xff]
        %v1519 = vld [vmem:[#allocation7 + $0x50] sm:$0xff]
        %v1520 = vld [vmem:[#allocation7 + $0x58] sm:$0xff]
        %v1521 = vld [vmem:[#allocation7 + $0x60] sm:$0xff]
        %v1522 = vld [vmem:[#allocation7 + $0x68] sm:$0xff]
        %v1523 = vld [vmem:[#allocation7 + $0x70] sm:$0xff]
        %v1524 = vld [vmem:[#allocation7 + $0x78] sm:$0xff]
        %v1525 = vld [vmem:[#allocation7 + $0x80] sm:$0xff]
        %v1526 = vld [vmem:[#allocation7 + $0x88] sm:$0xff]
        %v1527 = vld [vmem:[#allocation7 + $0x90] sm:$0xff]
        %v1528 = vld [vmem:[#allocation7 + $0x98] sm:$0xff]
        %v1529 = vld [vmem:[#allocation7 + $0xa0] sm:$0xff]
        %v1530 = vld [vmem:[#allocation7 + $0xa8] sm:$0xff]
        %v1531 = vld [vmem:[#allocation7 + $0xb0] sm:$0xff]
        %v1532 = vld [vmem:[#allocation7 + $0xb8] sm:$0xff]
        %v1533 = vld [vmem:[#allocation7 + $0xc0] sm:$0xff]
        %v1534 = vld [vmem:[#allocation7 + $0xc8] sm:$0xff]
        %v1535 = vld [vmem:[#allocation7 + $0xd0] sm:$0xff]
        %v1536 = vld [vmem:[#allocation7 + $0xd8] sm:$0xff]
        %v1537 = vld [vmem:[#allocation7 + $0xe0] sm:$0xff]
        %v1538 = vld [vmem:[#allocation7 + $0xe8] sm:$0xff]
        %v1539 = vld [vmem:[#allocation7 + $0xf0] sm:$0xff]
        %v1540 = vld [vmem:[#allocation7 + $0xf8] sm:$0xff]
        %v1541 = vld [vmem:[#allocation7 + $0x100] sm:$0xff]
        %v1542 = vld [vmem:[#allocation7 + $0x108] sm:$0xff]
        %v1543 = vld [vmem:[#allocation7 + $0x110] sm:$0xff]
        %v1544 = vld [vmem:[#allocation7 + $0x118] sm:$0xff]
        %v1545 = vld [vmem:[#allocation7 + $0x120] sm:$0xff]
        %v1546 = vld [vmem:[#allocation7 + $0x128] sm:$0xff]
        %v1547 = vld [vmem:[#allocation7 + $0x130] sm:$0xff]
        %v1548 = vld [vmem:[#allocation7 + $0x138] sm:$0xff]
        %v1549 = vld [vmem:[#allocation7 + $0x140] sm:$0xff]
        %v1550 = vld [vmem:[#allocation7 + $0x148] sm:$0xff]
        %v1551 = vld [vmem:[#allocation7 + $0x150] sm:$0xff]
        %v1552 = vld [vmem:[#allocation7 + $0x158] sm:$0xff]
        %v1553 = vld [vmem:[#allocation7 + $0x160] sm:$0xff]
        %v1554 = vld [vmem:[#allocation7 + $0x168] sm:$0xff]
        %v1555 = vld [vmem:[#allocation7 + $0x170] sm:$0xff]
        %v1556 = vld [vmem:[#allocation7 + $0x178] sm:$0xff]
        %v1557 = vld [vmem:[#allocation7 + $0x180] sm:$0xff]
        %v1558 = vld [vmem:[#allocation7 + $0x188] sm:$0xff]
        %v1559 = vld [vmem:[#allocation7 + $0x190] sm:$0xff]
        %v1560 = vld [vmem:[#allocation7 + $0x198] sm:$0xff]
        %v1561 = vld [vmem:[#allocation7 + $0x1a0] sm:$0xff]
        %v1562 = vld [vmem:[#allocation7 + $0x1a8] sm:$0xff]
        %v1563 = vld [vmem:[#allocation7 + $0x1b0] sm:$0xff]
        %v1564 = vld [vmem:[#allocation7 + $0x1b8] sm:$0xff]
        %v1565 = vld [vmem:[#allocation7 + $0x1c0] sm:$0xff]
        %v1566 = vld [vmem:[#allocation7 + $0x1c8] sm:$0xff]
        %v1567 = vld [vmem:[#allocation7 + $0x1d0] sm:$0xff]
        %v1568 = vld [vmem:[#allocation7 + $0x1d8] sm:$0xff]
        %v1569 = vld [vmem:[#allocation7 + $0x1e0] sm:$0xff]
        %v1570 = vld [vmem:[#allocation7 + $0x1e8] sm:$0xff]
        %v1571 = vld [vmem:[#allocation7 + $0x1f0] sm:$0xff]
        %v1572 = vld [vmem:[#allocation7 + $0x1f8] sm:$0xff]
        %v1573 = vld [vmem:[#allocation7 + $0x200] sm:$0xff]
        %v1574 = vld [vmem:[#allocation7 + $0x208] sm:$0xff]
        %v1575 = vld [vmem:[#allocation7 + $0x210] sm:$0xff]
        %v1576 = vld [vmem:[#allocation7 + $0x218] sm:$0xff]
        %v1577 = vld [vmem:[#allocation7 + $0x220] sm:$0xff]
        %v1578 = vld [vmem:[#allocation7 + $0x228] sm:$0xff]
        %v1579 = vld [vmem:[#allocation7 + $0x230] sm:$0xff]
        %v1580 = vld [vmem:[#allocation7 + $0x238] sm:$0xff]
        %v1581 = vld [vmem:[#allocation7 + $0x240] sm:$0xff]
        %v1582 = vld [vmem:[#allocation7 + $0x248] sm:$0xff]
        %v1583 = vld [vmem:[#allocation7 + $0x250] sm:$0xff]
        %v1584 = vld [vmem:[#allocation7 + $0x258] sm:$0xff]
        %v1585 = vld [vmem:[#allocation7 + $0x260] sm:$0xff]
        %v1586 = vld [vmem:[#allocation7 + $0x268] sm:$0xff]
        %v1587 = vld [vmem:[#allocation7 + $0x270] sm:$0xff]
        %v1588 = vld [vmem:[#allocation7 + $0x278] sm:$0xff]
        %v1589 = vld [vmem:[#allocation7 + $0x280] sm:$0xff]
        %v1590 = vld [vmem:[#allocation7 + $0x288] sm:$0xff]
        %v1591 = vld [vmem:[#allocation7 + $0x290] sm:$0xff]
        %v1592 = vld [vmem:[#allocation7 + $0x298] sm:$0xff]
        %v1593 = vld [vmem:[#allocation7 + $0x2a0] sm:$0xff]
        %v1594 = vld [vmem:[#allocation7 + $0x2a8] sm:$0xff]
        %v1595 = vld [vmem:[#allocation7 + $0x2b0] sm:$0xff]
        %v1596 = vld [vmem:[#allocation7 + $0x2b8] sm:$0xff]
        %v1597 = vld [vmem:[#allocation7 + $0x2c0] sm:$0xff]
        %v1598 = vld [vmem:[#allocation7 + $0x2c8] sm:$0xff]
        %v1599 = vld [vmem:[#allocation7 + $0x2d0] sm:$0xff]
        %v1600 = vld [vmem:[#allocation7 + $0x2d8] sm:$0xff]
        %v1601 = vld [vmem:[#allocation7 + $0x2e0] sm:$0xff]
        %v1602 = vld [vmem:[#allocation7 + $0x2e8] sm:$0xff]
        %v1603 = vld [vmem:[#allocation7 + $0x2f0] sm:$0xff]
        %v1604 = vld [vmem:[#allocation7 + $0x2f8] sm:$0xff]
        %v1605 = vld [vmem:[%s6] sm:$0x3f]
        %v1607 = vlaneseq
        %v1608 = vshrl.u32 %v1607, 7
        %v1609 = vsub.s32 0, %v1608
        %v1610 = vrot.slane %v1605, %v1609
        %v1611 = vlaneseq
        %v1612 = vshrl.u32 %v1611, 7
        %v1613 = vsub.s32 1, %v1612
        %v1614 = vrot.slane %v1605, %v1613
        %v1615 = vlaneseq
        %v1616 = vshrl.u32 %v1615, 7
        %v1617 = vsub.s32 2, %v1616
        %v1618 = vrot.slane %v1605, %v1617
        %v1619 = vlaneseq
        %v1620 = vshrl.u32 %v1619, 7
        %v1621 = vsub.s32 3, %v1620
        %v1622 = vrot.slane %v1605, %v1621
        %v1623 = vlaneseq
        %v1624 = vshrl.u32 %v1623, 7
        %v1625 = vsub.s32 4, %v1624
        %v1626 = vrot.slane %v1605, %v1625
        %v1627 = vlaneseq
        %v1628 = vshrl.u32 %v1627, 7
        %v1629 = vsub.s32 5, %v1628
        %v1630 = vrot.slane %v1605, %v1629
        %v1733 = vunpack.c.l.b16 %v1509
        %v1734 = vunpack.c.h.b16 %v1509
        %v1735 = vunpack.c.l.b16 %v1510
        %v1736 = vunpack.c.h.b16 %v1510
        %v1737 = vunpack.c.l.b16 %v1511
        %v1738 = vunpack.c.h.b16 %v1511
        %v1739 = vunpack.c.l.b16 %v1512
        %v1740 = vunpack.c.h.b16 %v1512
        %v1741 = vunpack.c.l.b16 %v1513
        %v1742 = vunpack.c.h.b16 %v1513
        %v1743 = vunpack.c.l.b16 %v1514
        %v1744 = vunpack.c.h.b16 %v1514
        %v1745 = vunpack.c.l.b16 %v1515
        %v1746 = vunpack.c.h.b16 %v1515
        %v1747 = vunpack.c.l.b16 %v1516
        %v1748 = vunpack.c.h.b16 %v1516
        %v1749 = vunpack.c.l.b16 %v1517
        %v1750 = vunpack.c.h.b16 %v1517
        %v1751 = vunpack.c.l.b16 %v1518
        %v1752 = vunpack.c.h.b16 %v1518
        %v1753 = vunpack.c.l.b16 %v1519
        %v1754 = vunpack.c.h.b16 %v1519
        %v1755 = vunpack.c.l.b16 %v1520
        %v1756 = vunpack.c.h.b16 %v1520
        %v1757 = vunpack.c.l.b16 %v1521
        %v1758 = vunpack.c.h.b16 %v1521
        %v1759 = vunpack.c.l.b16 %v1522
        %v1760 = vunpack.c.h.b16 %v1522
        %v1761 = vunpack.c.l.b16 %v1523
        %v1762 = vunpack.c.h.b16 %v1523
        %v1763 = vunpack.c.l.b16 %v1524
        %v1764 = vunpack.c.h.b16 %v1524
        %v1765 = vunpack.c.l.b16 %v1525
        %v1766 = vunpack.c.h.b16 %v1525
        %v1767 = vunpack.c.l.b16 %v1526
        %v1768 = vunpack.c.h.b16 %v1526
        %v1769 = vunpack.c.l.b16 %v1527
        %v1770 = vunpack.c.h.b16 %v1527
        %v1771 = vunpack.c.l.b16 %v1528
        %v1772 = vunpack.c.h.b16 %v1528
        %v1773 = vunpack.c.l.b16 %v1529
        %v1774 = vunpack.c.h.b16 %v1529
        %v1775 = vunpack.c.l.b16 %v1530
        %v1776 = vunpack.c.h.b16 %v1530
        %v1777 = vunpack.c.l.b16 %v1531
        %v1778 = vunpack.c.h.b16 %v1531
        %v1779 = vunpack.c.l.b16 %v1532
        %v1780 = vunpack.c.h.b16 %v1532
        %v1781 = vunpack.c.l.b16 %v1533
        %v1782 = vunpack.c.h.b16 %v1533
        %v1783 = vunpack.c.l.b16 %v1534
        %v1784 = vunpack.c.h.b16 %v1534
        %v1785 = vunpack.c.l.b16 %v1535
        %v1786 = vunpack.c.h.b16 %v1535
        %v1787 = vunpack.c.l.b16 %v1536
        %v1788 = vunpack.c.h.b16 %v1536
        %v1789 = vunpack.c.l.b16 %v1537
        %v1790 = vunpack.c.h.b16 %v1537
        %v1791 = vunpack.c.l.b16 %v1538
        %v1792 = vunpack.c.h.b16 %v1538
        %v1793 = vunpack.c.l.b16 %v1539
        %v1794 = vunpack.c.h.b16 %v1539
        %v1795 = vunpack.c.l.b16 %v1540
        %v1796 = vunpack.c.h.b16 %v1540
        %v1797 = vunpack.c.l.b16 %v1541
        %v1798 = vunpack.c.h.b16 %v1541
        %v1799 = vunpack.c.l.b16 %v1542
        %v1800 = vunpack.c.h.b16 %v1542
        %v1801 = vunpack.c.l.b16 %v1543
        %v1802 = vunpack.c.h.b16 %v1543
        %v1803 = vunpack.c.l.b16 %v1544
        %v1804 = vunpack.c.h.b16 %v1544
        %v1805 = vunpack.c.l.b16 %v1545
        %v1806 = vunpack.c.h.b16 %v1545
        %v1807 = vunpack.c.l.b16 %v1546
        %v1808 = vunpack.c.h.b16 %v1546
        %v1809 = vunpack.c.l.b16 %v1547
        %v1810 = vunpack.c.h.b16 %v1547
        %v1811 = vunpack.c.l.b16 %v1548
        %v1812 = vunpack.c.h.b16 %v1548
        %v1813 = vunpack.c.l.b16 %v1549
        %v1814 = vunpack.c.h.b16 %v1549
        %v1815 = vunpack.c.l.b16 %v1550
        %v1816 = vunpack.c.h.b16 %v1550
        %v1817 = vunpack.c.l.b16 %v1551
        %v1818 = vunpack.c.h.b16 %v1551
        %v1819 = vunpack.c.l.b16 %v1552
        %v1820 = vunpack.c.h.b16 %v1552
        %v1821 = vunpack.c.l.b16 %v1553
        %v1822 = vunpack.c.h.b16 %v1553
        %v1823 = vunpack.c.l.b16 %v1554
        %v1824 = vunpack.c.h.b16 %v1554
        %v1825 = vunpack.c.l.b16 %v1555
        %v1826 = vunpack.c.h.b16 %v1555
        %v1827 = vunpack.c.l.b16 %v1556
        %v1828 = vunpack.c.h.b16 %v1556
        %v1829 = vunpack.c.l.b16 %v1557
        %v1830 = vunpack.c.h.b16 %v1557
        %v1831 = vunpack.c.l.b16 %v1558
        %v1832 = vunpack.c.h.b16 %v1558
        %v1833 = vunpack.c.l.b16 %v1559
        %v1834 = vunpack.c.h.b16 %v1559
        %v1835 = vunpack.c.l.b16 %v1560
        %v1836 = vunpack.c.h.b16 %v1560
        %v1837 = vunpack.c.l.b16 %v1561
        %v1838 = vunpack.c.h.b16 %v1561
        %v1839 = vunpack.c.l.b16 %v1562
        %v1840 = vunpack.c.h.b16 %v1562
        %v1841 = vunpack.c.l.b16 %v1563
        %v1842 = vunpack.c.h.b16 %v1563
        %v1843 = vunpack.c.l.b16 %v1564
        %v1844 = vunpack.c.h.b16 %v1564
        %v1845 = vunpack.c.l.b16 %v1565
        %v1846 = vunpack.c.h.b16 %v1565
        %v1847 = vunpack.c.l.b16 %v1566
        %v1848 = vunpack.c.h.b16 %v1566
        %v1849 = vunpack.c.l.b16 %v1567
        %v1850 = vunpack.c.h.b16 %v1567
        %v1851 = vunpack.c.l.b16 %v1568
        %v1852 = vunpack.c.h.b16 %v1568
        %v1853 = vunpack.c.l.b16 %v1569
        %v1854 = vunpack.c.h.b16 %v1569
        %v1855 = vunpack.c.l.b16 %v1570
        %v1856 = vunpack.c.h.b16 %v1570
        %v1857 = vunpack.c.l.b16 %v1571
        %v1858 = vunpack.c.h.b16 %v1571
        %v1859 = vunpack.c.l.b16 %v1572
        %v1860 = vunpack.c.h.b16 %v1572
        %v1861 = vunpack.c.l.b16 %v1573
        %v1862 = vunpack.c.h.b16 %v1573
        %v1863 = vunpack.c.l.b16 %v1574
        %v1864 = vunpack.c.h.b16 %v1574
        %v1865 = vunpack.c.l.b16 %v1575
        %v1866 = vunpack.c.h.b16 %v1575
        %v1867 = vunpack.c.l.b16 %v1576
        %v1868 = vunpack.c.h.b16 %v1576
        %v1869 = vunpack.c.l.b16 %v1577
        %v1870 = vunpack.c.h.b16 %v1577
        %v1871 = vunpack.c.l.b16 %v1578
        %v1872 = vunpack.c.h.b16 %v1578
        %v1873 = vunpack.c.l.b16 %v1579
        %v1874 = vunpack.c.h.b16 %v1579
        %v1875 = vunpack.c.l.b16 %v1580
        %v1876 = vunpack.c.h.b16 %v1580
        %v1877 = vunpack.c.l.b16 %v1581
        %v1878 = vunpack.c.h.b16 %v1581
        %v1879 = vunpack.c.l.b16 %v1582
        %v1880 = vunpack.c.h.b16 %v1582
        %v1881 = vunpack.c.l.b16 %v1583
        %v1882 = vunpack.c.h.b16 %v1583
        %v1883 = vunpack.c.l.b16 %v1584
        %v1884 = vunpack.c.h.b16 %v1584
        %v1885 = vunpack.c.l.b16 %v1585
        %v1886 = vunpack.c.h.b16 %v1585
        %v1887 = vunpack.c.l.b16 %v1586
        %v1888 = vunpack.c.h.b16 %v1586
        %v1889 = vunpack.c.l.b16 %v1587
        %v1890 = vunpack.c.h.b16 %v1587
        %v1891 = vunpack.c.l.b16 %v1588
        %v1892 = vunpack.c.h.b16 %v1588
        %v1893 = vunpack.c.l.b16 %v1589
        %v1894 = vunpack.c.h.b16 %v1589
        %v1895 = vunpack.c.l.b16 %v1590
        %v1896 = vunpack.c.h.b16 %v1590
        %v1897 = vunpack.c.l.b16 %v1591
        %v1898 = vunpack.c.h.b16 %v1591
        %v1899 = vunpack.c.l.b16 %v1592
        %v1900 = vunpack.c.h.b16 %v1592
        %v1901 = vunpack.c.l.b16 %v1593
        %v1902 = vunpack.c.h.b16 %v1593
        %v1903 = vunpack.c.l.b16 %v1594
        %v1904 = vunpack.c.h.b16 %v1594
        %v1905 = vunpack.c.l.b16 %v1595
        %v1906 = vunpack.c.h.b16 %v1595
        %v1907 = vunpack.c.l.b16 %v1596
        %v1908 = vunpack.c.h.b16 %v1596
        %v1909 = vunpack.c.l.b16 %v1597
        %v1910 = vunpack.c.h.b16 %v1597
        %v1911 = vunpack.c.l.b16 %v1598
        %v1912 = vunpack.c.h.b16 %v1598
        %v1913 = vunpack.c.l.b16 %v1599
        %v1914 = vunpack.c.h.b16 %v1599
        %v1915 = vunpack.c.l.b16 %v1600
        %v1916 = vunpack.c.h.b16 %v1600
        %v1917 = vunpack.c.l.b16 %v1601
        %v1918 = vunpack.c.h.b16 %v1601
        %v1919 = vunpack.c.l.b16 %v1602
        %v1920 = vunpack.c.h.b16 %v1602
        %v1921 = vunpack.c.l.b16 %v1603
        %v1922 = vunpack.c.h.b16 %v1603
        %v1923 = vunpack.c.l.b16 %v1604
        %v1924 = vunpack.c.h.b16 %v1604
        %v1925 = vpack.c.b16 %v1739, %v1733
        %v1926 = vpack.c.b16 %v1740, %v1734
        %v1927 = vpack.c.b16 %v1741, %v1735
        %v1928 = vpack.c.b16 %v1742, %v1736
        %v1929 = vpack.c.b16 %v1743, %v1737
        %v1930 = vpack.c.b16 %v1744, %v1738
        %v1931 = vpack.c.b16 %v1751, %v1745
        %v1932 = vpack.c.b16 %v1752, %v1746
        %v1933 = vpack.c.b16 %v1753, %v1747
        %v1934 = vpack.c.b16 %v1754, %v1748
        %v1935 = vpack.c.b16 %v1755, %v1749
        %v1936 = vpack.c.b16 %v1756, %v1750
        %v1937 = vpack.c.b16 %v1763, %v1757
        %v1938 = vpack.c.b16 %v1764, %v1758
        %v1939 = vpack.c.b16 %v1765, %v1759
        %v1940 = vpack.c.b16 %v1766, %v1760
        %v1941 = vpack.c.b16 %v1767, %v1761
        %v1942 = vpack.c.b16 %v1768, %v1762
        %v1943 = vpack.c.b16 %v1775, %v1769
        %v1944 = vpack.c.b16 %v1776, %v1770
        %v1945 = vpack.c.b16 %v1777, %v1771
        %v1946 = vpack.c.b16 %v1778, %v1772
        %v1947 = vpack.c.b16 %v1779, %v1773
        %v1948 = vpack.c.b16 %v1780, %v1774
        %v1949 = vpack.c.b16 %v1787, %v1781
        %v1950 = vpack.c.b16 %v1788, %v1782
        %v1951 = vpack.c.b16 %v1789, %v1783
        %v1952 = vpack.c.b16 %v1790, %v1784
        %v1953 = vpack.c.b16 %v1791, %v1785
        %v1954 = vpack.c.b16 %v1792, %v1786
        %v1955 = vpack.c.b16 %v1799, %v1793
        %v1956 = vpack.c.b16 %v1800, %v1794
        %v1957 = vpack.c.b16 %v1801, %v1795
        %v1958 = vpack.c.b16 %v1802, %v1796
        %v1959 = vpack.c.b16 %v1803, %v1797
        %v1960 = vpack.c.b16 %v1804, %v1798
        %v1961 = vpack.c.b16 %v1811, %v1805
        %v1962 = vpack.c.b16 %v1812, %v1806
        %v1963 = vpack.c.b16 %v1813, %v1807
        %v1964 = vpack.c.b16 %v1814, %v1808
        %v1965 = vpack.c.b16 %v1815, %v1809
        %v1966 = vpack.c.b16 %v1816, %v1810
        %v1967 = vpack.c.b16 %v1823, %v1817
        %v1968 = vpack.c.b16 %v1824, %v1818
        %v1969 = vpack.c.b16 %v1825, %v1819
        %v1970 = vpack.c.b16 %v1826, %v1820
        %v1971 = vpack.c.b16 %v1827, %v1821
        %v1972 = vpack.c.b16 %v1828, %v1822
        %v1973 = vpack.c.b16 %v1835, %v1829
        %v1974 = vpack.c.b16 %v1836, %v1830
        %v1975 = vpack.c.b16 %v1837, %v1831
        %v1976 = vpack.c.b16 %v1838, %v1832
        %v1977 = vpack.c.b16 %v1839, %v1833
        %v1978 = vpack.c.b16 %v1840, %v1834
        %v1979 = vpack.c.b16 %v1847, %v1841
        %v1980 = vpack.c.b16 %v1848, %v1842
        %v1981 = vpack.c.b16 %v1849, %v1843
        %v1982 = vpack.c.b16 %v1850, %v1844
        %v1983 = vpack.c.b16 %v1851, %v1845
        %v1984 = vpack.c.b16 %v1852, %v1846
        %v1985 = vpack.c.b16 %v1859, %v1853
        %v1986 = vpack.c.b16 %v1860, %v1854
        %v1987 = vpack.c.b16 %v1861, %v1855
        %v1988 = vpack.c.b16 %v1862, %v1856
        %v1989 = vpack.c.b16 %v1863, %v1857
        %v1990 = vpack.c.b16 %v1864, %v1858
        %v1991 = vpack.c.b16 %v1871, %v1865
        %v1992 = vpack.c.b16 %v1872, %v1866
        %v1993 = vpack.c.b16 %v1873, %v1867
        %v1994 = vpack.c.b16 %v1874, %v1868
        %v1995 = vpack.c.b16 %v1875, %v1869
        %v1996 = vpack.c.b16 %v1876, %v1870
        %v1997 = vpack.c.b16 %v1883, %v1877
        %v1998 = vpack.c.b16 %v1884, %v1878
        %v1999 = vpack.c.b16 %v1885, %v1879
        %v2000 = vpack.c.b16 %v1886, %v1880
        %v2001 = vpack.c.b16 %v1887, %v1881
        %v2002 = vpack.c.b16 %v1888, %v1882
        %v2003 = vpack.c.b16 %v1895, %v1889
        %v2004 = vpack.c.b16 %v1896, %v1890
        %v2005 = vpack.c.b16 %v1897, %v1891
        %v2006 = vpack.c.b16 %v1898, %v1892
        %v2007 = vpack.c.b16 %v1899, %v1893
        %v2008 = vpack.c.b16 %v1900, %v1894
        %v2009 = vpack.c.b16 %v1907, %v1901
        %v2010 = vpack.c.b16 %v1908, %v1902
        %v2011 = vpack.c.b16 %v1909, %v1903
        %v2012 = vpack.c.b16 %v1910, %v1904
        %v2013 = vpack.c.b16 %v1911, %v1905
        %v2014 = vpack.c.b16 %v1912, %v1906
        %v2015 = vpack.c.b16 %v1919, %v1913
        %v2016 = vpack.c.b16 %v1920, %v1914
        %v2017 = vpack.c.b16 %v1921, %v1915
        %v2018 = vpack.c.b16 %v1922, %v1916
        %v2019 = vpack.c.b16 %v1923, %v1917
        %v2020 = vpack.c.b16 %v1924, %v1918
        %2117 = vmatprep.subr.bf16.mxu0 %v1968
        %2118 = vmatpush1.bf16.msra.mxu0 %v1967
        %2119 = vmatprep.subr.bf16.mxu0 %v1962
        %2120 = vmatpush1.bf16.msra.mxu0 %v1961
        %2121 = vmatprep.subr.bf16.mxu0 %v1956
        %2122 = vmatpush1.bf16.msra.mxu0 %v1955
        %2123 = vmatprep.subr.bf16.mxu0 %v1950
        %2124 = vmatpush1.bf16.msra.mxu0 %v1949
        %2125 = vmatprep.subr.bf16.mxu0 %v1944
        %2126 = vmatpush1.bf16.msra.mxu0 %v1943
        %2127 = vmatprep.subr.bf16.mxu0 %v1938
        %2128 = vmatpush1.bf16.msra.mxu0 %v1937
        %2129 = vmatprep.subr.bf16.mxu0 %v1932
        %2130 = vmatpush1.bf16.msra.mxu0 %v1931
        %2131 = vmatprep.subr.bf16.mxu0 %v1926
        %2132 = vmatpush1.bf16.msra.mxu0 %v1925
        %2133 = vmatprep.subr.bf16.mxu0 %v2016
        %2134 = vmatpush2.bf16.msra.mxu0 %v2015
        %2135 = vmatprep.subr.bf16.mxu0 %v2010
        %2136 = vmatpush2.bf16.msra.mxu0 %v2009
        %2137 = vmatprep.subr.bf16.mxu0 %v2004
        %2138 = vmatpush2.bf16.msra.mxu0 %v2003
        %2139 = vmatprep.subr.bf16.mxu0 %v1998
        %2140 = vmatpush2.bf16.msra.mxu0 %v1997
        %2141 = vmatprep.subr.bf16.mxu0 %v1992
        %2142 = vmatpush2.bf16.msra.mxu0 %v1991
        %2143 = vmatprep.subr.bf16.mxu0 %v1986
        %2144 = vmatpush2.bf16.msra.mxu0 %v1985
        %2145 = vmatprep.subr.bf16.mxu0 %v1980
        %2146 = vmatpush2.bf16.msra.mxu0 %v1979
        %2147 = vmatprep.subr.bf16.mxu0 %v1974
        %2148 = vmatpush2.bf16.msra.mxu0 %v1973
        %2149 = vmatprep.mubr.bf16.mxu0 %v1508
        %2150 = vmatmul.mubr.bf16.gmra.mxu0 %v1507
        %v2151 = vpop.f32.mrf.mxu0
        %v2152 = vadd.f32 %v1610, %v2151
        %v2153 = vpop.f32.mrf.mxu0
        %v2154 = vadd.f32 %v1614, %v2153
        %v2155 = vpop.f32.mrf.mxu0
        %v2156 = vadd.f32 %v1610, %v2155
        %v2157 = vpop.f32.mrf.mxu0
        %v2158 = vadd.f32 %v1614, %v2157
        %2159 = vdwg.mxu0
        %2160 = vmatprep.subr.bf16.mxu0 %v1970
        %2161 = vmatpush1.bf16.msra.mxu0 %v1969
        %2162 = vmatprep.subr.bf16.mxu0 %v1964
        %2163 = vmatpush1.bf16.msra.mxu0 %v1963
        %2164 = vmatprep.subr.bf16.mxu0 %v1958
        %2165 = vmatpush1.bf16.msra.mxu0 %v1957
        %2166 = vmatprep.subr.bf16.mxu0 %v1952
        %2167 = vmatpush1.bf16.msra.mxu0 %v1951
        %2168 = vmatprep.subr.bf16.mxu0 %v1946
        %2169 = vmatpush1.bf16.msra.mxu0 %v1945
        %2170 = vmatprep.subr.bf16.mxu0 %v1940
        %2171 = vmatpush1.bf16.msra.mxu0 %v1939
        %2172 = vmatprep.subr.bf16.mxu0 %v1934
        %2173 = vmatpush1.bf16.msra.mxu0 %v1933
        %2174 = vmatprep.subr.bf16.mxu0 %v1928
        %2175 = vmatpush1.bf16.msra.mxu0 %v1927
        %2176 = vmatprep.subr.bf16.mxu0 %v2018
        %2177 = vmatpush2.bf16.msra.mxu0 %v2017
        %2178 = vmatprep.subr.bf16.mxu0 %v2012
        %2179 = vmatpush2.bf16.msra.mxu0 %v2011
        %2180 = vmatprep.subr.bf16.mxu0 %v2006
        %2181 = vmatpush2.bf16.msra.mxu0 %v2005
        %2182 = vmatprep.subr.bf16.mxu0 %v2000
        %2183 = vmatpush2.bf16.msra.mxu0 %v1999
        %2184 = vmatprep.subr.bf16.mxu0 %v1994
        %2185 = vmatpush2.bf16.msra.mxu0 %v1993
        %2186 = vmatprep.subr.bf16.mxu0 %v1988
        %2187 = vmatpush2.bf16.msra.mxu0 %v1987
        %2188 = vmatprep.subr.bf16.mxu0 %v1982
        %2189 = vmatpush2.bf16.msra.mxu0 %v1981
        %2190 = vmatprep.subr.bf16.mxu0 %v1976
        %2191 = vmatpush2.bf16.msra.mxu0 %v1975
        %2192 = vmatprep.mubr.bf16.mxu0 %v1508
        %2193 = vmatmul.mubr.bf16.gmra.mxu0 %v1507
        %v2194 = vpop.f32.mrf.mxu0
        %v2195 = vadd.f32 %v1618, %v2194
        %v2196 = vpop.f32.mrf.mxu0
        %v2197 = vadd.f32 %v1622, %v2196
        %v2198 = vpop.f32.mrf.mxu0
        %v2199 = vadd.f32 %v1618, %v2198
        %v2200 = vpop.f32.mrf.mxu0
        %v2201 = vadd.f32 %v1622, %v2200
        %2202 = vdwg.mxu0
        %2203 = vmatprep.subr.bf16.mxu0 %v1972
        %2204 = vmatpush1.bf16.msra.mxu0 %v1971
        %2205 = vmatprep.subr.bf16.mxu0 %v1966
        %2206 = vmatpush1.bf16.msra.mxu0 %v1965
        %2207 = vmatprep.subr.bf16.mxu0 %v1960
        %2208 = vmatpush1.bf16.msra.mxu0 %v1959
        %2209 = vmatprep.subr.bf16.mxu0 %v1954
        %2210 = vmatpush1.bf16.msra.mxu0 %v1953
        %2211 = vmatprep.subr.bf16.mxu0 %v1948
        %2212 = vmatpush1.bf16.msra.mxu0 %v1947
        %2213 = vmatprep.subr.bf16.mxu0 %v1942
        %2214 = vmatpush1.bf16.msra.mxu0 %v1941
        %2215 = vmatprep.subr.bf16.mxu0 %v1936
        %2216 = vmatpush1.bf16.msra.mxu0 %v1935
        %2217 = vmatprep.subr.bf16.mxu0 %v1930
        %2218 = vmatpush1.bf16.msra.mxu0 %v1929
        %2219 = vmatprep.subr.bf16.mxu0 %v2020
        %2220 = vmatpush2.bf16.msra.mxu0 %v2019
        %2221 = vmatprep.subr.bf16.mxu0 %v2014
        %2222 = vmatpush2.bf16.msra.mxu0 %v2013
        %2223 = vmatprep.subr.bf16.mxu0 %v2008
        %2224 = vmatpush2.bf16.msra.mxu0 %v2007
        %2225 = vmatprep.subr.bf16.mxu0 %v2002
        %2226 = vmatpush2.bf16.msra.mxu0 %v2001
        %2227 = vmatprep.subr.bf16.mxu0 %v1996
        %2228 = vmatpush2.bf16.msra.mxu0 %v1995
        %2229 = vmatprep.subr.bf16.mxu0 %v1990
        %2230 = vmatpush2.bf16.msra.mxu0 %v1989
        %2231 = vmatprep.subr.bf16.mxu0 %v1984
        %2232 = vmatpush2.bf16.msra.mxu0 %v1983
        %2233 = vmatprep.subr.bf16.mxu0 %v1978
        %2234 = vmatpush2.bf16.msra.mxu0 %v1977
        %2235 = vmatprep.mubr.bf16.mxu0 %v1508
        %2236 = vmatmul.mubr.bf16.gmra.mxu0 %v1507
        %v2237 = vpop.f32.mrf.mxu0
        %v2238 = vadd.f32 %v1626, %v2237
        %v2239 = vpop.f32.mrf.mxu0
        %v2240 = vadd.f32 %v1630, %v2239
        %v2241 = vpop.f32.mrf.mxu0
        %v2242 = vadd.f32 %v1626, %v2241
        %v2243 = vpop.f32.mrf.mxu0
        %v2244 = vadd.f32 %v1630, %v2243
        %2245 = vdwg.mxu0
        %2248 = vrot.lane.b32.xlu0 %v2152, 64
        %v2249 = vpop.permute.xlu0 %2248
        %2250 = vrot.lane.b32.xlu0 %v2156, 64
        %v2251 = vpop.permute.xlu0 %2250
        %2256 = vrot.lane.b32.xlu0 %v2154, 64
        %v2257 = vpop.permute.xlu0 %2256
        %2258 = vrot.lane.b32.xlu0 %v2158, 64
        %v2259 = vpop.permute.xlu0 %2258
        %v2262 = vcombine.low %v2152, %v2154
        %v2263 = vcombine.high %v2152, %v2154
        %v2265 = vunpack.c.l.s4 1983009808
        %v2266 = vunpack.c.0.s8 %v2265
        %v2267 = vlaneseq
        %v2268 = vshrl.u32 %v2267, 7
        %v2269 = vsub.s32 %v2266, %v2268
        %v2270 = vrot.slane %v2262, %v2269
        %v2272 = vunpack.c.l.s4 1983009808
        %v2273 = vunpack.c.0.s8 %v2272
        %v2274 = vlaneseq
        %v2275 = vshrl.u32 %v2274, 7
        %v2276 = vsub.s32 %v2273, %v2275
        %v2277 = vrot.slane %v2263, %v2276
        %v2278 = vcombine.low %v2249, %v2257
        %v2279 = vcombine.high %v2249, %v2257
        %v2281 = vunpack.c.l.s4 1983009808
        %v2282 = vunpack.c.0.s8 %v2281
        %v2283 = vlaneseq
        %v2284 = vshrl.u32 %v2283, 7
        %v2285 = vsub.s32 %v2282, %v2284
        %v2286 = vrot.slane %v2278, %v2285
        %v2288 = vunpack.c.l.s4 1983009808
        %v2289 = vunpack.c.0.s8 %v2288
        %v2290 = vlaneseq
        %v2291 = vshrl.u32 %v2290, 7
        %v2292 = vsub.s32 %v2289, %v2291
        %v2293 = vrot.slane %v2279, %v2292
        %v2294 = vcombine.low %v2270, %v2286
        %v2295 = vcombine.high %v2270, %v2286
        %v2297 = vunpack.c.l.s4 1934713408
        %v2298 = vunpack.c.0.s8 %v2297
        %v2299 = vlaneseq
        %v2300 = vshrl.u32 %v2299, 7
        %v2301 = vsub.s32 %v2298, %v2300
        %v2302 = vrot.slane %v2294, %v2301
        %v2304 = vunpack.c.l.s4 1934713408
        %v2305 = vunpack.c.0.s8 %v2304
        %v2306 = vlaneseq
        %v2307 = vshrl.u32 %v2306, 7
        %v2308 = vsub.s32 %v2305, %v2307
        %v2309 = vrot.slane %v2295, %v2308
        %v2310 = vcombine.low %v2277, %v2293
        %v2311 = vcombine.high %v2277, %v2293
        %v2313 = vunpack.c.l.s4 1934713408
        %v2314 = vunpack.c.0.s8 %v2313
        %v2315 = vlaneseq
        %v2316 = vshrl.u32 %v2315, 7
        %v2317 = vsub.s32 %v2314, %v2316
        %v2318 = vrot.slane %v2310, %v2317
        %v2320 = vunpack.c.l.s4 1934713408
        %v2321 = vunpack.c.0.s8 %v2320
        %v2322 = vlaneseq
        %v2323 = vshrl.u32 %v2322, 7
        %v2324 = vsub.s32 %v2321, %v2323
        %v2325 = vrot.slane %v2311, %v2324
        %v2326 = vcombine.high %v2302, 0.0
        %v2327 = vcombine.high %v2309, 0.0
        %v2328 = vcombine.high %v2318, 0.0
        %v2329 = vcombine.high %v2325, 0.0
        %v2330 = vcombine.low %v2156, %v2158
        %v2331 = vcombine.high %v2156, %v2158
        %v2333 = vunpack.c.l.s4 1983009808
        %v2334 = vunpack.c.0.s8 %v2333
        %v2335 = vlaneseq
        %v2336 = vshrl.u32 %v2335, 7
        %v2337 = vsub.s32 %v2334, %v2336
        %v2338 = vrot.slane %v2330, %v2337
        %v2340 = vunpack.c.l.s4 1983009808
        %v2341 = vunpack.c.0.s8 %v2340
        %v2342 = vlaneseq
        %v2343 = vshrl.u32 %v2342, 7
        %v2344 = vsub.s32 %v2341, %v2343
        %v2345 = vrot.slane %v2331, %v2344
        %v2346 = vcombine.low %v2251, %v2259
        %v2347 = vcombine.high %v2251, %v2259
        %v2349 = vunpack.c.l.s4 1983009808
        %v2350 = vunpack.c.0.s8 %v2349
        %v2351 = vlaneseq
        %v2352 = vshrl.u32 %v2351, 7
        %v2353 = vsub.s32 %v2350, %v2352
        %v2354 = vrot.slane %v2346, %v2353
        %v2356 = vunpack.c.l.s4 1983009808
        %v2357 = vunpack.c.0.s8 %v2356
        %v2358 = vlaneseq
        %v2359 = vshrl.u32 %v2358, 7
        %v2360 = vsub.s32 %v2357, %v2359
        %v2361 = vrot.slane %v2347, %v2360
        %v2362 = vcombine.low %v2338, %v2354
        %v2363 = vcombine.high %v2338, %v2354
        %v2365 = vunpack.c.l.s4 1934713408
        %v2366 = vunpack.c.0.s8 %v2365
        %v2367 = vlaneseq
        %v2368 = vshrl.u32 %v2367, 7
        %v2369 = vsub.s32 %v2366, %v2368
        %v2370 = vrot.slane %v2362, %v2369
        %v2372 = vunpack.c.l.s4 1934713408
        %v2373 = vunpack.c.0.s8 %v2372
        %v2374 = vlaneseq
        %v2375 = vshrl.u32 %v2374, 7
        %v2376 = vsub.s32 %v2373, %v2375
        %v2377 = vrot.slane %v2363, %v2376
        %v2378 = vcombine.low %v2345, %v2361
        %v2379 = vcombine.high %v2345, %v2361
        %v2381 = vunpack.c.l.s4 1934713408
        %v2382 = vunpack.c.0.s8 %v2381
        %v2383 = vlaneseq
        %v2384 = vshrl.u32 %v2383, 7
        %v2385 = vsub.s32 %v2382, %v2384
        %v2386 = vrot.slane %v2378, %v2385
        %v2388 = vunpack.c.l.s4 1934713408
        %v2389 = vunpack.c.0.s8 %v2388
        %v2390 = vlaneseq
        %v2391 = vshrl.u32 %v2390, 7
        %v2392 = vsub.s32 %v2389, %v2391
        %v2393 = vrot.slane %v2379, %v2392
        %v2394 = vcombine.high %v2370, 0.0
        %v2395 = vcombine.high %v2377, 0.0
        %v2396 = vcombine.high %v2386, 0.0
        %v2397 = vcombine.high %v2393, 0.0
        %v2398 = vcombine.low %v2302, %v2309
        %v2400 = vunpack.c.l.s4 1983009808
        %v2401 = vunpack.c.0.s8 %v2400
        %v2402 = vlaneseq
        %v2403 = vshrl.u32 %v2402, 7
        %v2404 = vsub.s32 %v2401, %v2403
        %v2405 = vrot.slane %v2398, %v2404
        %v2406 = vcombine.low %v2326, %v2327
        %v2408 = vunpack.c.l.s4 1983009808
        %v2409 = vunpack.c.0.s8 %v2408
        %v2410 = vlaneseq
        %v2411 = vshrl.u32 %v2410, 7
        %v2412 = vsub.s32 %v2409, %v2411
        %v2413 = vrot.slane %v2406, %v2412
        %v2414 = vcombine.low %v2318, %v2325
        %v2416 = vunpack.c.l.s4 1983009808
        %v2417 = vunpack.c.0.s8 %v2416
        %v2418 = vlaneseq
        %v2419 = vshrl.u32 %v2418, 7
        %v2420 = vsub.s32 %v2417, %v2419
        %v2421 = vrot.slane %v2414, %v2420
        %v2422 = vcombine.low %v2328, %v2329
        %v2424 = vunpack.c.l.s4 1983009808
        %v2425 = vunpack.c.0.s8 %v2424
        %v2426 = vlaneseq
        %v2427 = vshrl.u32 %v2426, 7
        %v2428 = vsub.s32 %v2425, %v2427
        %v2429 = vrot.slane %v2422, %v2428
        %v2430 = vcombine.low %v2405, %v2413
        %v2431 = vcombine.high %v2405, %v2413
        %v2433 = vunpack.c.l.s4 1934713408
        %v2434 = vunpack.c.0.s8 %v2433
        %v2435 = vlaneseq
        %v2436 = vshrl.u32 %v2435, 7
        %v2437 = vsub.s32 %v2434, %v2436
        %v2438 = vrot.slane %v2430, %v2437
        %v2440 = vunpack.c.l.s4 1934713408
        %v2441 = vunpack.c.0.s8 %v2440
        %v2442 = vlaneseq
        %v2443 = vshrl.u32 %v2442, 7
        %v2444 = vsub.s32 %v2441, %v2443
        %v2445 = vrot.slane %v2431, %v2444
        %v2446 = vcombine.low %v2421, %v2429
        %v2447 = vcombine.high %v2421, %v2429
        %v2449 = vunpack.c.l.s4 1934713408
        %v2450 = vunpack.c.0.s8 %v2449
        %v2451 = vlaneseq
        %v2452 = vshrl.u32 %v2451, 7
        %v2453 = vsub.s32 %v2450, %v2452
        %v2454 = vrot.slane %v2446, %v2453
        %v2456 = vunpack.c.l.s4 1934713408
        %v2457 = vunpack.c.0.s8 %v2456
        %v2458 = vlaneseq
        %v2459 = vshrl.u32 %v2458, 7
        %v2460 = vsub.s32 %v2457, %v2459
        %v2461 = vrot.slane %v2447, %v2460
        %v2462 = vcombine.low %v2438, %v2454
        %v2463 = vcombine.high %v2438, %v2454
        %v2464 = vcombine.low %v2445, %v2461
        %v2465 = vcombine.high %v2445, %v2461
        %v2466 = vcombine.low %v2370, %v2377
        %v2468 = vunpack.c.l.s4 1983009808
        %v2469 = vunpack.c.0.s8 %v2468
        %v2470 = vlaneseq
        %v2471 = vshrl.u32 %v2470, 7
        %v2472 = vsub.s32 %v2469, %v2471
        %v2473 = vrot.slane %v2466, %v2472
        %v2474 = vcombine.low %v2394, %v2395
        %v2476 = vunpack.c.l.s4 1983009808
        %v2477 = vunpack.c.0.s8 %v2476
        %v2478 = vlaneseq
        %v2479 = vshrl.u32 %v2478, 7
        %v2480 = vsub.s32 %v2477, %v2479
        %v2481 = vrot.slane %v2474, %v2480
        %v2482 = vcombine.low %v2386, %v2393
        %v2484 = vunpack.c.l.s4 1983009808
        %v2485 = vunpack.c.0.s8 %v2484
        %v2486 = vlaneseq
        %v2487 = vshrl.u32 %v2486, 7
        %v2488 = vsub.s32 %v2485, %v2487
        %v2489 = vrot.slane %v2482, %v2488
        %v2490 = vcombine.low %v2396, %v2397
        %v2492 = vunpack.c.l.s4 1983009808
        %v2493 = vunpack.c.0.s8 %v2492
        %v2494 = vlaneseq
        %v2495 = vshrl.u32 %v2494, 7
        %v2496 = vsub.s32 %v2493, %v2495
        %v2497 = vrot.slane %v2490, %v2496
        %v2498 = vcombine.low %v2473, %v2481
        %v2499 = vcombine.high %v2473, %v2481
        %v2501 = vunpack.c.l.s4 1934713408
        %v2502 = vunpack.c.0.s8 %v2501
        %v2503 = vlaneseq
        %v2504 = vshrl.u32 %v2503, 7
        %v2505 = vsub.s32 %v2502, %v2504
        %v2506 = vrot.slane %v2498, %v2505
        %v2508 = vunpack.c.l.s4 1934713408
        %v2509 = vunpack.c.0.s8 %v2508
        %v2510 = vlaneseq
        %v2511 = vshrl.u32 %v2510, 7
        %v2512 = vsub.s32 %v2509, %v2511
        %v2513 = vrot.slane %v2499, %v2512
        %v2514 = vcombine.low %v2489, %v2497
        %v2515 = vcombine.high %v2489, %v2497
        %v2517 = vunpack.c.l.s4 1934713408
        %v2518 = vunpack.c.0.s8 %v2517
        %v2519 = vlaneseq
        %v2520 = vshrl.u32 %v2519, 7
        %v2521 = vsub.s32 %v2518, %v2520
        %v2522 = vrot.slane %v2514, %v2521
        %v2524 = vunpack.c.l.s4 1934713408
        %v2525 = vunpack.c.0.s8 %v2524
        %v2526 = vlaneseq
        %v2527 = vshrl.u32 %v2526, 7
        %v2528 = vsub.s32 %v2525, %v2527
        %v2529 = vrot.slane %v2515, %v2528
        %v2530 = vcombine.low %v2506, %v2522
        %v2531 = vcombine.high %v2506, %v2522
        %v2532 = vcombine.low %v2513, %v2529
        %v2533 = vcombine.high %v2513, %v2529
        %v2534 = vpack.c.bf16 %v2462, %v2462
        %v2535 = vpack.c.bf16 %v2530, %v2530
        %v2536 = vpack.c.bf16 %v2463, %v2463
        %v2537 = vpack.c.bf16 %v2531, %v2531
        %v2538 = vpack.c.bf16 %v2464, %v2464
        %v2539 = vpack.c.bf16 %v2532, %v2532
        %v2540 = vpack.c.bf16 %v2465, %v2465
        %v2541 = vpack.c.bf16 %v2533, %v2533
        %2544 = vrot.lane.b32.xlu0 %v2195, 64
        %v2545 = vpop.permute.xlu0 %2544
        %2546 = vrot.lane.b32.xlu0 %v2199, 64
        %v2547 = vpop.permute.xlu0 %2546
        %2552 = vrot.lane.b32.xlu0 %v2197, 64
        %v2553 = vpop.permute.xlu0 %2552
        %2554 = vrot.lane.b32.xlu0 %v2201, 64
        %v2555 = vpop.permute.xlu0 %2554
        %v2558 = vcombine.low %v2195, %v2197
        %v2559 = vcombine.high %v2195, %v2197
        %v2561 = vunpack.c.l.s4 1983009808
        %v2562 = vunpack.c.0.s8 %v2561
        %v2563 = vlaneseq
        %v2564 = vshrl.u32 %v2563, 7
        %v2565 = vsub.s32 %v2562, %v2564
        %v2566 = vrot.slane %v2558, %v2565
        %v2568 = vunpack.c.l.s4 1983009808
        %v2569 = vunpack.c.0.s8 %v2568
        %v2570 = vlaneseq
        %v2571 = vshrl.u32 %v2570, 7
        %v2572 = vsub.s32 %v2569, %v2571
        %v2573 = vrot.slane %v2559, %v2572
        %v2574 = vcombine.low %v2545, %v2553
        %v2575 = vcombine.high %v2545, %v2553
        %v2577 = vunpack.c.l.s4 1983009808
        %v2578 = vunpack.c.0.s8 %v2577
        %v2579 = vlaneseq
        %v2580 = vshrl.u32 %v2579, 7
        %v2581 = vsub.s32 %v2578, %v2580
        %v2582 = vrot.slane %v2574, %v2581
        %v2584 = vunpack.c.l.s4 1983009808
        %v2585 = vunpack.c.0.s8 %v2584
        %v2586 = vlaneseq
        %v2587 = vshrl.u32 %v2586, 7
        %v2588 = vsub.s32 %v2585, %v2587
        %v2589 = vrot.slane %v2575, %v2588
        %v2590 = vcombine.low %v2566, %v2582
        %v2591 = vcombine.high %v2566, %v2582
        %v2593 = vunpack.c.l.s4 1934713408
        %v2594 = vunpack.c.0.s8 %v2593
        %v2595 = vlaneseq
        %v2596 = vshrl.u32 %v2595, 7
        %v2597 = vsub.s32 %v2594, %v2596
        %v2598 = vrot.slane %v2590, %v2597
        %v2600 = vunpack.c.l.s4 1934713408
        %v2601 = vunpack.c.0.s8 %v2600
        %v2602 = vlaneseq
        %v2603 = vshrl.u32 %v2602, 7
        %v2604 = vsub.s32 %v2601, %v2603
        %v2605 = vrot.slane %v2591, %v2604
        %v2606 = vcombine.low %v2573, %v2589
        %v2607 = vcombine.high %v2573, %v2589
        %v2609 = vunpack.c.l.s4 1934713408
        %v2610 = vunpack.c.0.s8 %v2609
        %v2611 = vlaneseq
        %v2612 = vshrl.u32 %v2611, 7
        %v2613 = vsub.s32 %v2610, %v2612
        %v2614 = vrot.slane %v2606, %v2613
        %v2616 = vunpack.c.l.s4 1934713408
        %v2617 = vunpack.c.0.s8 %v2616
        %v2618 = vlaneseq
        %v2619 = vshrl.u32 %v2618, 7
        %v2620 = vsub.s32 %v2617, %v2619
        %v2621 = vrot.slane %v2607, %v2620
        %v2622 = vcombine.high %v2598, 0.0
        %v2623 = vcombine.high %v2605, 0.0
        %v2624 = vcombine.high %v2614, 0.0
        %v2625 = vcombine.high %v2621, 0.0
        %v2626 = vcombine.low %v2199, %v2201
        %v2627 = vcombine.high %v2199, %v2201
        %v2629 = vunpack.c.l.s4 1983009808
        %v2630 = vunpack.c.0.s8 %v2629
        %v2631 = vlaneseq
        %v2632 = vshrl.u32 %v2631, 7
        %v2633 = vsub.s32 %v2630, %v2632
        %v2634 = vrot.slane %v2626, %v2633
        %v2636 = vunpack.c.l.s4 1983009808
        %v2637 = vunpack.c.0.s8 %v2636
        %v2638 = vlaneseq
        %v2639 = vshrl.u32 %v2638, 7
        %v2640 = vsub.s32 %v2637, %v2639
        %v2641 = vrot.slane %v2627, %v2640
        %v2642 = vcombine.low %v2547, %v2555
        %v2643 = vcombine.high %v2547, %v2555
        %v2645 = vunpack.c.l.s4 1983009808
        %v2646 = vunpack.c.0.s8 %v2645
        %v2647 = vlaneseq
        %v2648 = vshrl.u32 %v2647, 7
        %v2649 = vsub.s32 %v2646, %v2648
        %v2650 = vrot.slane %v2642, %v2649
        %v2652 = vunpack.c.l.s4 1983009808
        %v2653 = vunpack.c.0.s8 %v2652
        %v2654 = vlaneseq
        %v2655 = vshrl.u32 %v2654, 7
        %v2656 = vsub.s32 %v2653, %v2655
        %v2657 = vrot.slane %v2643, %v2656
        %v2658 = vcombine.low %v2634, %v2650
        %v2659 = vcombine.high %v2634, %v2650
        %v2661 = vunpack.c.l.s4 1934713408
        %v2662 = vunpack.c.0.s8 %v2661
        %v2663 = vlaneseq
        %v2664 = vshrl.u32 %v2663, 7
        %v2665 = vsub.s32 %v2662, %v2664
        %v2666 = vrot.slane %v2658, %v2665
        %v2668 = vunpack.c.l.s4 1934713408
        %v2669 = vunpack.c.0.s8 %v2668
        %v2670 = vlaneseq
        %v2671 = vshrl.u32 %v2670, 7
        %v2672 = vsub.s32 %v2669, %v2671
        %v2673 = vrot.slane %v2659, %v2672
        %v2674 = vcombine.low %v2641, %v2657
        %v2675 = vcombine.high %v2641, %v2657
        %v2677 = vunpack.c.l.s4 1934713408
        %v2678 = vunpack.c.0.s8 %v2677
        %v2679 = vlaneseq
        %v2680 = vshrl.u32 %v2679, 7
        %v2681 = vsub.s32 %v2678, %v2680
        %v2682 = vrot.slane %v2674, %v2681
        %v2684 = vunpack.c.l.s4 1934713408
        %v2685 = vunpack.c.0.s8 %v2684
        %v2686 = vlaneseq
        %v2687 = vshrl.u32 %v2686, 7
        %v2688 = vsub.s32 %v2685, %v2687
        %v2689 = vrot.slane %v2675, %v2688
        %v2690 = vcombine.high %v2666, 0.0
        %v2691 = vcombine.high %v2673, 0.0
        %v2692 = vcombine.high %v2682, 0.0
        %v2693 = vcombine.high %v2689, 0.0
        %v2694 = vcombine.low %v2598, %v2605
        %v2696 = vunpack.c.l.s4 1983009808
        %v2697 = vunpack.c.0.s8 %v2696
        %v2698 = vlaneseq
        %v2699 = vshrl.u32 %v2698, 7
        %v2700 = vsub.s32 %v2697, %v2699
        %v2701 = vrot.slane %v2694, %v2700
        %v2702 = vcombine.low %v2622, %v2623
        %v2704 = vunpack.c.l.s4 1983009808
        %v2705 = vunpack.c.0.s8 %v2704
        %v2706 = vlaneseq
        %v2707 = vshrl.u32 %v2706, 7
        %v2708 = vsub.s32 %v2705, %v2707
        %v2709 = vrot.slane %v2702, %v2708
        %v2710 = vcombine.low %v2614, %v2621
        %v2712 = vunpack.c.l.s4 1983009808
        %v2713 = vunpack.c.0.s8 %v2712
        %v2714 = vlaneseq
        %v2715 = vshrl.u32 %v2714, 7
        %v2716 = vsub.s32 %v2713, %v2715
        %v2717 = vrot.slane %v2710, %v2716
        %v2718 = vcombine.low %v2624, %v2625
        %v2720 = vunpack.c.l.s4 1983009808
        %v2721 = vunpack.c.0.s8 %v2720
        %v2722 = vlaneseq
        %v2723 = vshrl.u32 %v2722, 7
        %v2724 = vsub.s32 %v2721, %v2723
        %v2725 = vrot.slane %v2718, %v2724
        %v2726 = vcombine.low %v2701, %v2709
        %v2727 = vcombine.high %v2701, %v2709
        %v2729 = vunpack.c.l.s4 1934713408
        %v2730 = vunpack.c.0.s8 %v2729
        %v2731 = vlaneseq
        %v2732 = vshrl.u32 %v2731, 7
        %v2733 = vsub.s32 %v2730, %v2732
        %v2734 = vrot.slane %v2726, %v2733
        %v2736 = vunpack.c.l.s4 1934713408
        %v2737 = vunpack.c.0.s8 %v2736
        %v2738 = vlaneseq
        %v2739 = vshrl.u32 %v2738, 7
        %v2740 = vsub.s32 %v2737, %v2739
        %v2741 = vrot.slane %v2727, %v2740
        %v2742 = vcombine.low %v2717, %v2725
        %v2743 = vcombine.high %v2717, %v2725
        %v2745 = vunpack.c.l.s4 1934713408
        %v2746 = vunpack.c.0.s8 %v2745
        %v2747 = vlaneseq
        %v2748 = vshrl.u32 %v2747, 7
        %v2749 = vsub.s32 %v2746, %v2748
        %v2750 = vrot.slane %v2742, %v2749
        %v2752 = vunpack.c.l.s4 1934713408
        %v2753 = vunpack.c.0.s8 %v2752
        %v2754 = vlaneseq
        %v2755 = vshrl.u32 %v2754, 7
        %v2756 = vsub.s32 %v2753, %v2755
        %v2757 = vrot.slane %v2743, %v2756
        %v2758 = vcombine.low %v2734, %v2750
        %v2759 = vcombine.high %v2734, %v2750
        %v2760 = vcombine.low %v2741, %v2757
        %v2761 = vcombine.high %v2741, %v2757
        %v2762 = vcombine.low %v2666, %v2673
        %v2764 = vunpack.c.l.s4 1983009808
        %v2765 = vunpack.c.0.s8 %v2764
        %v2766 = vlaneseq
        %v2767 = vshrl.u32 %v2766, 7
        %v2768 = vsub.s32 %v2765, %v2767
        %v2769 = vrot.slane %v2762, %v2768
        %v2770 = vcombine.low %v2690, %v2691
        %v2772 = vunpack.c.l.s4 1983009808
        %v2773 = vunpack.c.0.s8 %v2772
        %v2774 = vlaneseq
        %v2775 = vshrl.u32 %v2774, 7
        %v2776 = vsub.s32 %v2773, %v2775
        %v2777 = vrot.slane %v2770, %v2776
        %v2778 = vcombine.low %v2682, %v2689
        %v2780 = vunpack.c.l.s4 1983009808
        %v2781 = vunpack.c.0.s8 %v2780
        %v2782 = vlaneseq
        %v2783 = vshrl.u32 %v2782, 7
        %v2784 = vsub.s32 %v2781, %v2783
        %v2785 = vrot.slane %v2778, %v2784
        %v2786 = vcombine.low %v2692, %v2693
        %v2788 = vunpack.c.l.s4 1983009808
        %v2789 = vunpack.c.0.s8 %v2788
        %v2790 = vlaneseq
        %v2791 = vshrl.u32 %v2790, 7
        %v2792 = vsub.s32 %v2789, %v2791
        %v2793 = vrot.slane %v2786, %v2792
        %v2794 = vcombine.low %v2769, %v2777
        %v2795 = vcombine.high %v2769, %v2777
        %v2797 = vunpack.c.l.s4 1934713408
        %v2798 = vunpack.c.0.s8 %v2797
        %v2799 = vlaneseq
        %v2800 = vshrl.u32 %v2799, 7
        %v2801 = vsub.s32 %v2798, %v2800
        %v2802 = vrot.slane %v2794, %v2801
        %v2804 = vunpack.c.l.s4 1934713408
        %v2805 = vunpack.c.0.s8 %v2804
        %v2806 = vlaneseq
        %v2807 = vshrl.u32 %v2806, 7
        %v2808 = vsub.s32 %v2805, %v2807
        %v2809 = vrot.slane %v2795, %v2808
        %v2810 = vcombine.low %v2785, %v2793
        %v2811 = vcombine.high %v2785, %v2793
        %v2813 = vunpack.c.l.s4 1934713408
        %v2814 = vunpack.c.0.s8 %v2813
        %v2815 = vlaneseq
        %v2816 = vshrl.u32 %v2815, 7
        %v2817 = vsub.s32 %v2814, %v2816
        %v2818 = vrot.slane %v2810, %v2817
        %v2820 = vunpack.c.l.s4 1934713408
        %v2821 = vunpack.c.0.s8 %v2820
        %v2822 = vlaneseq
        %v2823 = vshrl.u32 %v2822, 7
        %v2824 = vsub.s32 %v2821, %v2823
        %v2825 = vrot.slane %v2811, %v2824
        %v2826 = vcombine.low %v2802, %v2818
        %v2827 = vcombine.high %v2802, %v2818
        %v2828 = vcombine.low %v2809, %v2825
        %v2829 = vcombine.high %v2809, %v2825
        %v2830 = vpack.c.bf16 %v2758, %v2758
        %v2831 = vpack.c.bf16 %v2826, %v2826
        %v2832 = vpack.c.bf16 %v2759, %v2759
        %v2833 = vpack.c.bf16 %v2827, %v2827
        %v2834 = vpack.c.bf16 %v2760, %v2760
        %v2835 = vpack.c.bf16 %v2828, %v2828
        %v2836 = vpack.c.bf16 %v2761, %v2761
        %v2837 = vpack.c.bf16 %v2829, %v2829
        %2840 = vrot.lane.b32.xlu0 %v2238, 64
        %v2841 = vpop.permute.xlu0 %2840
        %2842 = vrot.lane.b32.xlu0 %v2242, 64
        %v2843 = vpop.permute.xlu0 %2842
        %2848 = vrot.lane.b32.xlu0 %v2240, 64
        %v2849 = vpop.permute.xlu0 %2848
        %2850 = vrot.lane.b32.xlu0 %v2244, 64
        %v2851 = vpop.permute.xlu0 %2850
        %v2854 = vcombine.low %v2238, %v2240
        %v2855 = vcombine.high %v2238, %v2240
        %v2857 = vunpack.c.l.s4 1983009808
        %v2858 = vunpack.c.0.s8 %v2857
        %v2859 = vlaneseq
        %v2860 = vshrl.u32 %v2859, 7
        %v2861 = vsub.s32 %v2858, %v2860
        %v2862 = vrot.slane %v2854, %v2861
        %v2864 = vunpack.c.l.s4 1983009808
        %v2865 = vunpack.c.0.s8 %v2864
        %v2866 = vlaneseq
        %v2867 = vshrl.u32 %v2866, 7
        %v2868 = vsub.s32 %v2865, %v2867
        %v2869 = vrot.slane %v2855, %v2868
        %v2870 = vcombine.low %v2841, %v2849
        %v2871 = vcombine.high %v2841, %v2849
        %v2873 = vunpack.c.l.s4 1983009808
        %v2874 = vunpack.c.0.s8 %v2873
        %v2875 = vlaneseq
        %v2876 = vshrl.u32 %v2875, 7
        %v2877 = vsub.s32 %v2874, %v2876
        %v2878 = vrot.slane %v2870, %v2877
        %v2880 = vunpack.c.l.s4 1983009808
        %v2881 = vunpack.c.0.s8 %v2880
        %v2882 = vlaneseq
        %v2883 = vshrl.u32 %v2882, 7
        %v2884 = vsub.s32 %v2881, %v2883
        %v2885 = vrot.slane %v2871, %v2884
        %v2886 = vcombine.low %v2862, %v2878
        %v2887 = vcombine.high %v2862, %v2878
        %v2889 = vunpack.c.l.s4 1934713408
        %v2890 = vunpack.c.0.s8 %v2889
        %v2891 = vlaneseq
        %v2892 = vshrl.u32 %v2891, 7
        %v2893 = vsub.s32 %v2890, %v2892
        %v2894 = vrot.slane %v2886, %v2893
        %v2896 = vunpack.c.l.s4 1934713408
        %v2897 = vunpack.c.0.s8 %v2896
        %v2898 = vlaneseq
        %v2899 = vshrl.u32 %v2898, 7
        %v2900 = vsub.s32 %v2897, %v2899
        %v2901 = vrot.slane %v2887, %v2900
        %v2902 = vcombine.low %v2869, %v2885
        %v2903 = vcombine.high %v2869, %v2885
        %v2905 = vunpack.c.l.s4 1934713408
        %v2906 = vunpack.c.0.s8 %v2905
        %v2907 = vlaneseq
        %v2908 = vshrl.u32 %v2907, 7
        %v2909 = vsub.s32 %v2906, %v2908
        %v2910 = vrot.slane %v2902, %v2909
        %v2912 = vunpack.c.l.s4 1934713408
        %v2913 = vunpack.c.0.s8 %v2912
        %v2914 = vlaneseq
        %v2915 = vshrl.u32 %v2914, 7
        %v2916 = vsub.s32 %v2913, %v2915
        %v2917 = vrot.slane %v2903, %v2916
        %v2918 = vcombine.high %v2894, 0.0
        %v2919 = vcombine.high %v2901, 0.0
        %v2920 = vcombine.high %v2910, 0.0
        %v2921 = vcombine.high %v2917, 0.0
        %v2922 = vcombine.low %v2242, %v2244
        %v2923 = vcombine.high %v2242, %v2244
        %v2925 = vunpack.c.l.s4 1983009808
        %v2926 = vunpack.c.0.s8 %v2925
        %v2927 = vlaneseq
        %v2928 = vshrl.u32 %v2927, 7
        %v2929 = vsub.s32 %v2926, %v2928
        %v2930 = vrot.slane %v2922, %v2929
        %v2932 = vunpack.c.l.s4 1983009808
        %v2933 = vunpack.c.0.s8 %v2932
        %v2934 = vlaneseq
        %v2935 = vshrl.u32 %v2934, 7
        %v2936 = vsub.s32 %v2933, %v2935
        %v2937 = vrot.slane %v2923, %v2936
        %v2938 = vcombine.low %v2843, %v2851
        %v2939 = vcombine.high %v2843, %v2851
        %v2941 = vunpack.c.l.s4 1983009808
        %v2942 = vunpack.c.0.s8 %v2941
        %v2943 = vlaneseq
        %v2944 = vshrl.u32 %v2943, 7
        %v2945 = vsub.s32 %v2942, %v2944
        %v2946 = vrot.slane %v2938, %v2945
        %v2948 = vunpack.c.l.s4 1983009808
        %v2949 = vunpack.c.0.s8 %v2948
        %v2950 = vlaneseq
        %v2951 = vshrl.u32 %v2950, 7
        %v2952 = vsub.s32 %v2949, %v2951
        %v2953 = vrot.slane %v2939, %v2952
        %v2954 = vcombine.low %v2930, %v2946
        %v2955 = vcombine.high %v2930, %v2946
        %v2957 = vunpack.c.l.s4 1934713408
        %v2958 = vunpack.c.0.s8 %v2957
        %v2959 = vlaneseq
        %v2960 = vshrl.u32 %v2959, 7
        %v2961 = vsub.s32 %v2958, %v2960
        %v2962 = vrot.slane %v2954, %v2961
        %v2964 = vunpack.c.l.s4 1934713408
        %v2965 = vunpack.c.0.s8 %v2964
        %v2966 = vlaneseq
        %v2967 = vshrl.u32 %v2966, 7
        %v2968 = vsub.s32 %v2965, %v2967
        %v2969 = vrot.slane %v2955, %v2968
        %v2970 = vcombine.low %v2937, %v2953
        %v2971 = vcombine.high %v2937, %v2953
        %v2973 = vunpack.c.l.s4 1934713408
        %v2974 = vunpack.c.0.s8 %v2973
        %v2975 = vlaneseq
        %v2976 = vshrl.u32 %v2975, 7
        %v2977 = vsub.s32 %v2974, %v2976
        %v2978 = vrot.slane %v2970, %v2977
        %v2980 = vunpack.c.l.s4 1934713408
        %v2981 = vunpack.c.0.s8 %v2980
        %v2982 = vlaneseq
        %v2983 = vshrl.u32 %v2982, 7
        %v2984 = vsub.s32 %v2981, %v2983
        %v2985 = vrot.slane %v2971, %v2984
        %v2986 = vcombine.high %v2962, 0.0
        %v2987 = vcombine.high %v2969, 0.0
        %v2988 = vcombine.high %v2978, 0.0
        %v2989 = vcombine.high %v2985, 0.0
        %v2990 = vcombine.low %v2894, %v2901
        %v2992 = vunpack.c.l.s4 1983009808
        %v2993 = vunpack.c.0.s8 %v2992
        %v2994 = vlaneseq
        %v2995 = vshrl.u32 %v2994, 7
        %v2996 = vsub.s32 %v2993, %v2995
        %v2997 = vrot.slane %v2990, %v2996
        %v2998 = vcombine.low %v2918, %v2919
        %v3000 = vunpack.c.l.s4 1983009808
        %v3001 = vunpack.c.0.s8 %v3000
        %v3002 = vlaneseq
        %v3003 = vshrl.u32 %v3002, 7
        %v3004 = vsub.s32 %v3001, %v3003
        %v3005 = vrot.slane %v2998, %v3004
        %v3006 = vcombine.low %v2910, %v2917
        %v3008 = vunpack.c.l.s4 1983009808
        %v3009 = vunpack.c.0.s8 %v3008
        %v3010 = vlaneseq
        %v3011 = vshrl.u32 %v3010, 7
        %v3012 = vsub.s32 %v3009, %v3011
        %v3013 = vrot.slane %v3006, %v3012
        %v3014 = vcombine.low %v2920, %v2921
        %v3016 = vunpack.c.l.s4 1983009808
        %v3017 = vunpack.c.0.s8 %v3016
        %v3018 = vlaneseq
        %v3019 = vshrl.u32 %v3018, 7
        %v3020 = vsub.s32 %v3017, %v3019
        %v3021 = vrot.slane %v3014, %v3020
        %v3022 = vcombine.low %v2997, %v3005
        %v3023 = vcombine.high %v2997, %v3005
        %v3025 = vunpack.c.l.s4 1934713408
        %v3026 = vunpack.c.0.s8 %v3025
        %v3027 = vlaneseq
        %v3028 = vshrl.u32 %v3027, 7
        %v3029 = vsub.s32 %v3026, %v3028
        %v3030 = vrot.slane %v3022, %v3029
        %v3032 = vunpack.c.l.s4 1934713408
        %v3033 = vunpack.c.0.s8 %v3032
        %v3034 = vlaneseq
        %v3035 = vshrl.u32 %v3034, 7
        %v3036 = vsub.s32 %v3033, %v3035
        %v3037 = vrot.slane %v3023, %v3036
        %v3038 = vcombine.low %v3013, %v3021
        %v3039 = vcombine.high %v3013, %v3021
        %v3041 = vunpack.c.l.s4 1934713408
        %v3042 = vunpack.c.0.s8 %v3041
        %v3043 = vlaneseq
        %v3044 = vshrl.u32 %v3043, 7
        %v3045 = vsub.s32 %v3042, %v3044
        %v3046 = vrot.slane %v3038, %v3045
        %v3048 = vunpack.c.l.s4 1934713408
        %v3049 = vunpack.c.0.s8 %v3048
        %v3050 = vlaneseq
        %v3051 = vshrl.u32 %v3050, 7
        %v3052 = vsub.s32 %v3049, %v3051
        %v3053 = vrot.slane %v3039, %v3052
        %v3054 = vcombine.low %v3030, %v3046
        %v3055 = vcombine.high %v3030, %v3046
        %v3056 = vcombine.low %v3037, %v3053
        %v3057 = vcombine.high %v3037, %v3053
        %v3058 = vcombine.low %v2962, %v2969
        %v3060 = vunpack.c.l.s4 1983009808
        %v3061 = vunpack.c.0.s8 %v3060
        %v3062 = vlaneseq
        %v3063 = vshrl.u32 %v3062, 7
        %v3064 = vsub.s32 %v3061, %v3063
        %v3065 = vrot.slane %v3058, %v3064
        %v3066 = vcombine.low %v2986, %v2987
        %v3068 = vunpack.c.l.s4 1983009808
        %v3069 = vunpack.c.0.s8 %v3068
        %v3070 = vlaneseq
        %v3071 = vshrl.u32 %v3070, 7
        %v3072 = vsub.s32 %v3069, %v3071
        %v3073 = vrot.slane %v3066, %v3072
        %v3074 = vcombine.low %v2978, %v2985
        %v3076 = vunpack.c.l.s4 1983009808
        %v3077 = vunpack.c.0.s8 %v3076
        %v3078 = vlaneseq
        %v3079 = vshrl.u32 %v3078, 7
        %v3080 = vsub.s32 %v3077, %v3079
        %v3081 = vrot.slane %v3074, %v3080
        %v3082 = vcombine.low %v2988, %v2989
        %v3084 = vunpack.c.l.s4 1983009808
        %v3085 = vunpack.c.0.s8 %v3084
        %v3086 = vlaneseq
        %v3087 = vshrl.u32 %v3086, 7
        %v3088 = vsub.s32 %v3085, %v3087
        %v3089 = vrot.slane %v3082, %v3088
        %v3090 = vcombine.low %v3065, %v3073
        %v3091 = vcombine.high %v3065, %v3073
        %v3093 = vunpack.c.l.s4 1934713408
        %v3094 = vunpack.c.0.s8 %v3093
        %v3095 = vlaneseq
        %v3096 = vshrl.u32 %v3095, 7
        %v3097 = vsub.s32 %v3094, %v3096
        %v3098 = vrot.slane %v3090, %v3097
        %v3100 = vunpack.c.l.s4 1934713408
        %v3101 = vunpack.c.0.s8 %v3100
        %v3102 = vlaneseq
        %v3103 = vshrl.u32 %v3102, 7
        %v3104 = vsub.s32 %v3101, %v3103
        %v3105 = vrot.slane %v3091, %v3104
        %v3106 = vcombine.low %v3081, %v3089
        %v3107 = vcombine.high %v3081, %v3089
        %v3109 = vunpack.c.l.s4 1934713408
        %v3110 = vunpack.c.0.s8 %v3109
        %v3111 = vlaneseq
        %v3112 = vshrl.u32 %v3111, 7
        %v3113 = vsub.s32 %v3110, %v3112
        %v3114 = vrot.slane %v3106, %v3113
        %v3116 = vunpack.c.l.s4 1934713408
        %v3117 = vunpack.c.0.s8 %v3116
        %v3118 = vlaneseq
        %v3119 = vshrl.u32 %v3118, 7
        %v3120 = vsub.s32 %v3117, %v3119
        %v3121 = vrot.slane %v3107, %v3120
        %v3122 = vcombine.low %v3098, %v3114
        %v3123 = vcombine.high %v3098, %v3114
        %v3124 = vcombine.low %v3105, %v3121
        %v3125 = vcombine.high %v3105, %v3121
        %v3126 = vpack.c.bf16 %v3054, %v3054
        %v3127 = vpack.c.bf16 %v3122, %v3122
        %v3128 = vpack.c.bf16 %v3055, %v3055
        %v3129 = vpack.c.bf16 %v3123, %v3123
        %v3130 = vpack.c.bf16 %v3056, %v3056
        %v3131 = vpack.c.bf16 %v3124, %v3124
        %v3132 = vpack.c.bf16 %v3057, %v3057
        %v3133 = vpack.c.bf16 %v3125, %v3125
        %vm3134 = vcmask 523264
        %v3136 = vsel %vm3134, %v2534, 0
        %v3139 = vsel %vm3134, %v2830, 0
        %3141 = vmatprep.subr.bf16.mxu0 0
        %3142 = vmatpush1.bf16.xpose.msra.mxu0 0
        %3143 = vmatprep.subr.bf16.mxu0 0
        %3144 = vmatpush1.bf16.xpose.msra.mxu0 0
        %3145 = vmatprep.subr.bf16.mxu0 0
        %3146 = vmatpush1.bf16.xpose.msra.mxu0 0
        %3147 = vmatprep.subr.bf16.mxu0 0
        %3148 = vmatpush1.bf16.xpose.msra.mxu0 0
        %3149 = vmatprep.subr.bf16.mxu0 0
        %3150 = vmatpush1.bf16.xpose.msra.mxu0 0
        %3151 = vmatprep.subr.bf16.mxu0 0
        %3152 = vmatpush1.bf16.xpose.msra.mxu0 0
        %3153 = vmatprep.subr.bf16.mxu0 0
        %3154 = vmatpush1.bf16.xpose.msra.mxu0 0
        %3155 = vmatprep.subr.bf16.mxu0 0
        %3156 = vmatpush1.bf16.xpose.msra.mxu0 %v3139
        %3157 = vmatprep.subr.bf16.mxu0 0
        %3158 = vmatpush2.bf16.xpose.msra.mxu0 0
        %3159 = vmatprep.subr.bf16.mxu0 0
        %3160 = vmatpush2.bf16.xpose.msra.mxu0 0
        %3161 = vmatprep.subr.bf16.mxu0 0
        %3162 = vmatpush2.bf16.xpose.msra.mxu0 0
        %3163 = vmatprep.subr.bf16.mxu0 0
        %3164 = vmatpush2.bf16.xpose.msra.mxu0 0
        %3165 = vmatprep.subr.bf16.mxu0 0
        %3166 = vmatpush2.bf16.xpose.msra.mxu0 0
        %3167 = vmatprep.subr.bf16.mxu0 0
        %3168 = vmatpush2.bf16.xpose.msra.mxu0 0
        %3169 = vmatprep.subr.bf16.mxu0 0
        %3170 = vmatpush2.bf16.xpose.msra.mxu0 0
        %3171 = vmatprep.subr.bf16.mxu0 0
        %3172 = vmatpush2.bf16.xpose.msra.mxu0 0
        %3173 = vmatprep.mubr.bf16.mxu0 0
        %3174 = vmatmul.mubr.bf16.gmra.mxu0 %v3136
        %v3175 = vpop.f32.mrf.mxu0
        %v3176 = vadd.f32 0.0, %v3175
        %v3177 = vpop.f32.mrf.mxu0
        %v3178 = vpop.f32.mrf.mxu0
        %v3179 = vpop.f32.mrf.mxu0
        %3180 = vdwg.mxu0
        %v3182 = vsel %vm3134, %v2535, 0
        %v3185 = vsel %vm3134, %v2831, 0
        %3187 = vmatprep.subr.bf16.mxu0 0
        %3188 = vmatpush1.bf16.xpose.msra.mxu0 0
        %3189 = vmatprep.subr.bf16.mxu0 0
        %3190 = vmatpush1.bf16.xpose.msra.mxu0 0
        %3191 = vmatprep.subr.bf16.mxu0 0
        %3192 = vmatpush1.bf16.xpose.msra.mxu0 0
        %3193 = vmatprep.subr.bf16.mxu0 0
        %3194 = vmatpush1.bf16.xpose.msra.mxu0 0
        %3195 = vmatprep.subr.bf16.mxu0 0
        %3196 = vmatpush1.bf16.xpose.msra.mxu0 0
        %3197 = vmatprep.subr.bf16.mxu0 0
        %3198 = vmatpush1.bf16.xpose.msra.mxu0 0
        %3199 = vmatprep.subr.bf16.mxu0 0
        %3200 = vmatpush1.bf16.xpose.msra.mxu0 0
        %3201 = vmatprep.subr.bf16.mxu0 0
        %3202 = vmatpush1.bf16.xpose.msra.mxu0 %v3185
        %3203 = vmatprep.subr.bf16.mxu0 0
        %3204 = vmatpush2.bf16.xpose.msra.mxu0 0
        %3205 = vmatprep.subr.bf16.mxu0 0
        %3206 = vmatpush2.bf16.xpose.msra.mxu0 0
        %3207 = vmatprep.subr.bf16.mxu0 0
        %3208 = vmatpush2.bf16.xpose.msra.mxu0 0
        %3209 = vmatprep.subr.bf16.mxu0 0
        %3210 = vmatpush2.bf16.xpose.msra.mxu0 0
        %3211 = vmatprep.subr.bf16.mxu0 0
        %3212 = vmatpush2.bf16.xpose.msra.mxu0 0
        %3213 = vmatprep.subr.bf16.mxu0 0
        %3214 = vmatpush2.bf16.xpose.msra.mxu0 0
        %3215 = vmatprep.subr.bf16.mxu0 0
        %3216 = vmatpush2.bf16.xpose.msra.mxu0 0
        %3217 = vmatprep.subr.bf16.mxu0 0
        %3218 = vmatpush2.bf16.xpose.msra.mxu0 0
        %3219 = vmatprep.mubr.bf16.mxu0 0
        %3220 = vmatmul.mubr.bf16.gmra.mxu0 %v3182
        %v3221 = vpop.f32.mrf.mxu0
        %v3222 = vadd.f32 0.0, %v3221
        %v3223 = vpop.f32.mrf.mxu0
        %v3224 = vpop.f32.mrf.mxu0
        %v3225 = vpop.f32.mrf.mxu0
        %3226 = vdwg.mxu0
        %v3228 = vsel %vm3134, %v2536, 0
        %v3231 = vsel %vm3134, %v2832, 0
        %3233 = vmatprep.subr.bf16.mxu0 0
        %3234 = vmatpush1.bf16.xpose.msra.mxu0 0
        %3235 = vmatprep.subr.bf16.mxu0 0
        %3236 = vmatpush1.bf16.xpose.msra.mxu0 0
        %3237 = vmatprep.subr.bf16.mxu0 0
        %3238 = vmatpush1.bf16.xpose.msra.mxu0 0
        %3239 = vmatprep.subr.bf16.mxu0 0
        %3240 = vmatpush1.bf16.xpose.msra.mxu0 0
        %3241 = vmatprep.subr.bf16.mxu0 0
        %3242 = vmatpush1.bf16.xpose.msra.mxu0 0
        %3243 = vmatprep.subr.bf16.mxu0 0
        %3244 = vmatpush1.bf16.xpose.msra.mxu0 0
        %3245 = vmatprep.subr.bf16.mxu0 0
        %3246 = vmatpush1.bf16.xpose.msra.mxu0 0
        %3247 = vmatprep.subr.bf16.mxu0 0
        %3248 = vmatpush1.bf16.xpose.msra.mxu0 %v3231
        %3249 = vmatprep.subr.bf16.mxu0 0
        %3250 = vmatpush2.bf16.xpose.msra.mxu0 0
        %3251 = vmatprep.subr.bf16.mxu0 0
        %3252 = vmatpush2.bf16.xpose.msra.mxu0 0
        %3253 = vmatprep.subr.bf16.mxu0 0
        %3254 = vmatpush2.bf16.xpose.msra.mxu0 0
        %3255 = vmatprep.subr.bf16.mxu0 0
        %3256 = vmatpush2.bf16.xpose.msra.mxu0 0
        %3257 = vmatprep.subr.bf16.mxu0 0
        %3258 = vmatpush2.bf16.xpose.msra.mxu0 0
        %3259 = vmatprep.subr.bf16.mxu0 0
        %3260 = vmatpush2.bf16.xpose.msra.mxu0 0
        %3261 = vmatprep.subr.bf16.mxu0 0
        %3262 = vmatpush2.bf16.xpose.msra.mxu0 0
        %3263 = vmatprep.subr.bf16.mxu0 0
        %3264 = vmatpush2.bf16.xpose.msra.mxu0 0
        %3265 = vmatprep.mubr.bf16.mxu0 0
        %3266 = vmatmul.mubr.bf16.gmra.mxu0 %v3228
        %v3267 = vpop.f32.mrf.mxu0
        %v3268 = vadd.f32 0.0, %v3267
        %v3269 = vpop.f32.mrf.mxu0
        %v3270 = vpop.f32.mrf.mxu0
        %v3271 = vpop.f32.mrf.mxu0
        %3272 = vdwg.mxu0
        %v3274 = vsel %vm3134, %v2537, 0
        %v3277 = vsel %vm3134, %v2833, 0
        %3279 = vmatprep.subr.bf16.mxu0 0
        %3280 = vmatpush1.bf16.xpose.msra.mxu0 0
        %3281 = vmatprep.subr.bf16.mxu0 0
        %3282 = vmatpush1.bf16.xpose.msra.mxu0 0
        %3283 = vmatprep.subr.bf16.mxu0 0
        %3284 = vmatpush1.bf16.xpose.msra.mxu0 0
        %3285 = vmatprep.subr.bf16.mxu0 0
        %3286 = vmatpush1.bf16.xpose.msra.mxu0 0
        %3287 = vmatprep.subr.bf16.mxu0 0
        %3288 = vmatpush1.bf16.xpose.msra.mxu0 0
        %3289 = vmatprep.subr.bf16.mxu0 0
        %3290 = vmatpush1.bf16.xpose.msra.mxu0 0
        %3291 = vmatprep.subr.bf16.mxu0 0
        %3292 = vmatpush1.bf16.xpose.msra.mxu0 0
        %3293 = vmatprep.subr.bf16.mxu0 0
        %3294 = vmatpush1.bf16.xpose.msra.mxu0 %v3277
        %3295 = vmatprep.subr.bf16.mxu0 0
        %3296 = vmatpush2.bf16.xpose.msra.mxu0 0
        %3297 = vmatprep.subr.bf16.mxu0 0
        %3298 = vmatpush2.bf16.xpose.msra.mxu0 0
        %3299 = vmatprep.subr.bf16.mxu0 0
        %3300 = vmatpush2.bf16.xpose.msra.mxu0 0
        %3301 = vmatprep.subr.bf16.mxu0 0
        %3302 = vmatpush2.bf16.xpose.msra.mxu0 0
        %3303 = vmatprep.subr.bf16.mxu0 0
        %3304 = vmatpush2.bf16.xpose.msra.mxu0 0
        %3305 = vmatprep.subr.bf16.mxu0 0
        %3306 = vmatpush2.bf16.xpose.msra.mxu0 0
        %3307 = vmatprep.subr.bf16.mxu0 0
        %3308 = vmatpush2.bf16.xpose.msra.mxu0 0
        %3309 = vmatprep.subr.bf16.mxu0 0
        %3310 = vmatpush2.bf16.xpose.msra.mxu0 0
        %3311 = vmatprep.mubr.bf16.mxu0 0
        %3312 = vmatmul.mubr.bf16.gmra.mxu0 %v3274
        %v3313 = vpop.f32.mrf.mxu0
        %v3314 = vadd.f32 0.0, %v3313
        %v3315 = vpop.f32.mrf.mxu0
        %v3316 = vpop.f32.mrf.mxu0
        %v3317 = vpop.f32.mrf.mxu0
        %3318 = vdwg.mxu0
        %v3320 = vsel %vm3134, %v2538, 0
        %v3323 = vsel %vm3134, %v2834, 0
        %3325 = vmatprep.subr.bf16.mxu0 0
        %3326 = vmatpush1.bf16.xpose.msra.mxu0 0
        %3327 = vmatprep.subr.bf16.mxu0 0
        %3328 = vmatpush1.bf16.xpose.msra.mxu0 0
        %3329 = vmatprep.subr.bf16.mxu0 0
        %3330 = vmatpush1.bf16.xpose.msra.mxu0 0
        %3331 = vmatprep.subr.bf16.mxu0 0
        %3332 = vmatpush1.bf16.xpose.msra.mxu0 0
        %3333 = vmatprep.subr.bf16.mxu0 0
        %3334 = vmatpush1.bf16.xpose.msra.mxu0 0
        %3335 = vmatprep.subr.bf16.mxu0 0
        %3336 = vmatpush1.bf16.xpose.msra.mxu0 0
        %3337 = vmatprep.subr.bf16.mxu0 0
        %3338 = vmatpush1.bf16.xpose.msra.mxu0 0
        %3339 = vmatprep.subr.bf16.mxu0 0
        %3340 = vmatpush1.bf16.xpose.msra.mxu0 %v3323
        %3341 = vmatprep.subr.bf16.mxu0 0
        %3342 = vmatpush2.bf16.xpose.msra.mxu0 0
        %3343 = vmatprep.subr.bf16.mxu0 0
        %3344 = vmatpush2.bf16.xpose.msra.mxu0 0
        %3345 = vmatprep.subr.bf16.mxu0 0
        %3346 = vmatpush2.bf16.xpose.msra.mxu0 0
        %3347 = vmatprep.subr.bf16.mxu0 0
        %3348 = vmatpush2.bf16.xpose.msra.mxu0 0
        %3349 = vmatprep.subr.bf16.mxu0 0
        %3350 = vmatpush2.bf16.xpose.msra.mxu0 0
        %3351 = vmatprep.subr.bf16.mxu0 0
        %3352 = vmatpush2.bf16.xpose.msra.mxu0 0
        %3353 = vmatprep.subr.bf16.mxu0 0
        %3354 = vmatpush2.bf16.xpose.msra.mxu0 0
        %3355 = vmatprep.subr.bf16.mxu0 0
        %3356 = vmatpush2.bf16.xpose.msra.mxu0 0
        %3357 = vmatprep.mubr.bf16.mxu0 0
        %3358 = vmatmul.mubr.bf16.gmra.mxu0 %v3320
        %v3359 = vpop.f32.mrf.mxu0
        %v3360 = vadd.f32 0.0, %v3359
        %v3361 = vpop.f32.mrf.mxu0
        %v3362 = vpop.f32.mrf.mxu0
        %v3363 = vpop.f32.mrf.mxu0
        %3364 = vdwg.mxu0
        %v3366 = vsel %vm3134, %v2539, 0
        %v3369 = vsel %vm3134, %v2835, 0
        %3371 = vmatprep.subr.bf16.mxu0 0
        %3372 = vmatpush1.bf16.xpose.msra.mxu0 0
        %3373 = vmatprep.subr.bf16.mxu0 0
        %3374 = vmatpush1.bf16.xpose.msra.mxu0 0
        %3375 = vmatprep.subr.bf16.mxu0 0
        %3376 = vmatpush1.bf16.xpose.msra.mxu0 0
        %3377 = vmatprep.subr.bf16.mxu0 0
        %3378 = vmatpush1.bf16.xpose.msra.mxu0 0
        %3379 = vmatprep.subr.bf16.mxu0 0
        %3380 = vmatpush1.bf16.xpose.msra.mxu0 0
        %3381 = vmatprep.subr.bf16.mxu0 0
        %3382 = vmatpush1.bf16.xpose.msra.mxu0 0
        %3383 = vmatprep.subr.bf16.mxu0 0
        %3384 = vmatpush1.bf16.xpose.msra.mxu0 0
        %3385 = vmatprep.subr.bf16.mxu0 0
        %3386 = vmatpush1.bf16.xpose.msra.mxu0 %v3369
        %3387 = vmatprep.subr.bf16.mxu0 0
        %3388 = vmatpush2.bf16.xpose.msra.mxu0 0
        %3389 = vmatprep.subr.bf16.mxu0 0
        %3390 = vmatpush2.bf16.xpose.msra.mxu0 0
        %3391 = vmatprep.subr.bf16.mxu0 0
        %3392 = vmatpush2.bf16.xpose.msra.mxu0 0
        %3393 = vmatprep.subr.bf16.mxu0 0
        %3394 = vmatpush2.bf16.xpose.msra.mxu0 0
        %3395 = vmatprep.subr.bf16.mxu0 0
        %3396 = vmatpush2.bf16.xpose.msra.mxu0 0
        %3397 = vmatprep.subr.bf16.mxu0 0
        %3398 = vmatpush2.bf16.xpose.msra.mxu0 0
        %3399 = vmatprep.subr.bf16.mxu0 0
        %3400 = vmatpush2.bf16.xpose.msra.mxu0 0
        %3401 = vmatprep.subr.bf16.mxu0 0
        %3402 = vmatpush2.bf16.xpose.msra.mxu0 0
        %3403 = vmatprep.mubr.bf16.mxu0 0
        %3404 = vmatmul.mubr.bf16.gmra.mxu0 %v3366
        %v3405 = vpop.f32.mrf.mxu0
        %v3406 = vadd.f32 0.0, %v3405
        %v3407 = vpop.f32.mrf.mxu0
        %v3408 = vpop.f32.mrf.mxu0
        %v3409 = vpop.f32.mrf.mxu0
        %3410 = vdwg.mxu0
        %v3412 = vsel %vm3134, %v2540, 0
        %v3415 = vsel %vm3134, %v2836, 0
        %3417 = vmatprep.subr.bf16.mxu0 0
        %3418 = vmatpush1.bf16.xpose.msra.mxu0 0
        %3419 = vmatprep.subr.bf16.mxu0 0
        %3420 = vmatpush1.bf16.xpose.msra.mxu0 0
        %3421 = vmatprep.subr.bf16.mxu0 0
        %3422 = vmatpush1.bf16.xpose.msra.mxu0 0
        %3423 = vmatprep.subr.bf16.mxu0 0
        %3424 = vmatpush1.bf16.xpose.msra.mxu0 0
        %3425 = vmatprep.subr.bf16.mxu0 0
        %3426 = vmatpush1.bf16.xpose.msra.mxu0 0
        %3427 = vmatprep.subr.bf16.mxu0 0
        %3428 = vmatpush1.bf16.xpose.msra.mxu0 0
        %3429 = vmatprep.subr.bf16.mxu0 0
        %3430 = vmatpush1.bf16.xpose.msra.mxu0 0
        %3431 = vmatprep.subr.bf16.mxu0 0
        %3432 = vmatpush1.bf16.xpose.msra.mxu0 %v3415
        %3433 = vmatprep.subr.bf16.mxu0 0
        %3434 = vmatpush2.bf16.xpose.msra.mxu0 0
        %3435 = vmatprep.subr.bf16.mxu0 0
        %3436 = vmatpush2.bf16.xpose.msra.mxu0 0
        %3437 = vmatprep.subr.bf16.mxu0 0
        %3438 = vmatpush2.bf16.xpose.msra.mxu0 0
        %3439 = vmatprep.subr.bf16.mxu0 0
        %3440 = vmatpush2.bf16.xpose.msra.mxu0 0
        %3441 = vmatprep.subr.bf16.mxu0 0
        %3442 = vmatpush2.bf16.xpose.msra.mxu0 0
        %3443 = vmatprep.subr.bf16.mxu0 0
        %3444 = vmatpush2.bf16.xpose.msra.mxu0 0
        %3445 = vmatprep.subr.bf16.mxu0 0
        %3446 = vmatpush2.bf16.xpose.msra.mxu0 0
        %3447 = vmatprep.subr.bf16.mxu0 0
        %3448 = vmatpush2.bf16.xpose.msra.mxu0 0
        %3449 = vmatprep.mubr.bf16.mxu0 0
        %3450 = vmatmul.mubr.bf16.gmra.mxu0 %v3412
        %v3451 = vpop.f32.mrf.mxu0
        %v3452 = vadd.f32 0.0, %v3451
        %v3453 = vpop.f32.mrf.mxu0
        %v3454 = vpop.f32.mrf.mxu0
        %v3455 = vpop.f32.mrf.mxu0
        %3456 = vdwg.mxu0
        %v3458 = vsel %vm3134, %v2541, 0
        %v3461 = vsel %vm3134, %v2837, 0
        %3463 = vmatprep.subr.bf16.mxu0 0
        %3464 = vmatpush1.bf16.xpose.msra.mxu0 0
        %3465 = vmatprep.subr.bf16.mxu0 0
        %3466 = vmatpush1.bf16.xpose.msra.mxu0 0
        %3467 = vmatprep.subr.bf16.mxu0 0
        %3468 = vmatpush1.bf16.xpose.msra.mxu0 0
        %3469 = vmatprep.subr.bf16.mxu0 0
        %3470 = vmatpush1.bf16.xpose.msra.mxu0 0
        %3471 = vmatprep.subr.bf16.mxu0 0
        %3472 = vmatpush1.bf16.xpose.msra.mxu0 0
        %3473 = vmatprep.subr.bf16.mxu0 0
        %3474 = vmatpush1.bf16.xpose.msra.mxu0 0
        %3475 = vmatprep.subr.bf16.mxu0 0
        %3476 = vmatpush1.bf16.xpose.msra.mxu0 0
        %3477 = vmatprep.subr.bf16.mxu0 0
        %3478 = vmatpush1.bf16.xpose.msra.mxu0 %v3461
        %3479 = vmatprep.subr.bf16.mxu0 0
        %3480 = vmatpush2.bf16.xpose.msra.mxu0 0
        %3481 = vmatprep.subr.bf16.mxu0 0
        %3482 = vmatpush2.bf16.xpose.msra.mxu0 0
        %3483 = vmatprep.subr.bf16.mxu0 0
        %3484 = vmatpush2.bf16.xpose.msra.mxu0 0
        %3485 = vmatprep.subr.bf16.mxu0 0
        %3486 = vmatpush2.bf16.xpose.msra.mxu0 0
        %3487 = vmatprep.subr.bf16.mxu0 0
        %3488 = vmatpush2.bf16.xpose.msra.mxu0 0
        %3489 = vmatprep.subr.bf16.mxu0 0
        %3490 = vmatpush2.bf16.xpose.msra.mxu0 0
        %3491 = vmatprep.subr.bf16.mxu0 0
        %3492 = vmatpush2.bf16.xpose.msra.mxu0 0
        %3493 = vmatprep.subr.bf16.mxu0 0
        %3494 = vmatpush2.bf16.xpose.msra.mxu0 0
        %3495 = vmatprep.mubr.bf16.mxu0 0
        %3496 = vmatmul.mubr.bf16.gmra.mxu0 %v3458
        %v3497 = vpop.f32.mrf.mxu0
        %v3498 = vadd.f32 0.0, %v3497
        %v3499 = vpop.f32.mrf.mxu0
        %v3500 = vpop.f32.mrf.mxu0
        %v3501 = vpop.f32.mrf.mxu0
        %3502 = vdwg.mxu0
        %v3503 = vmul.f32 %v3176, 0.125
        %v3504 = vmul.f32 %v3222, 0.125
        %v3505 = vmul.f32 %v3268, 0.125
        %v3506 = vmul.f32 %v3314, 0.125
        %v3507 = vmul.f32 %v3360, 0.125
        %v3508 = vmul.f32 %v3406, 0.125
        %v3509 = vmul.f32 %v3452, 0.125
        %v3510 = vmul.f32 %v3498, 0.125
        %v3511 = vld [vmem:[%s484] sm:$0x1]
        %v3512 = vld [vmem:[%s484 + $0x1] sm:$0x1]
        %v3515 = vlaneseq
        %v3516 = vshrl.u32 %v3515, 7
        %v3517 = vsub.s32 0, %v3516
        %v3518 = vrot.slane %v3511, %v3517
        %v3519 = vlaneseq
        %v3520 = vshrl.u32 %v3519, 7
        %v3521 = vsub.s32 0, %v3520
        %v3522 = vrot.slane %v3512, %v3521
        %v3525 = vadd.f32 %v3503, %v3518
        %v3526 = vadd.f32 %v3504, %v3522
        %v3527 = vadd.f32 %v3505, %v3518
        %v3528 = vadd.f32 %v3506, %v3522
        %v3529 = vadd.f32 %v3507, %v3518
        %v3530 = vadd.f32 %v3508, %v3522
        %v3531 = vadd.f32 %v3509, %v3518
        %v3532 = vadd.f32 %v3510, %v3522
        %vm3533 = vcmask 64512
        %v3534 = vsel %vm3533, %v3525, -inf
        %3535 = vmax.xlane.f32.xlu0 %v3534
        %v3536 = vpop.xlane.xlu0 %3535
        %v3537 = vsel %vm3533, %v3526, -inf
        %3538 = vmax.xlane.f32.xlu0 %v3537
        %v3539 = vpop.xlane.xlu0 %3538
        %v3540 = vsel %vm3533, %v3527, -inf
        %3541 = vmax.xlane.f32.xlu0 %v3540
        %v3542 = vpop.xlane.xlu0 %3541
        %v3543 = vsel %vm3533, %v3528, -inf
        %3544 = vmax.xlane.f32.xlu0 %v3543
        %v3545 = vpop.xlane.xlu0 %3544
        %v3546 = vsel %vm3533, %v3529, -inf
        %3547 = vmax.xlane.f32.xlu0 %v3546
        %v3548 = vpop.xlane.xlu0 %3547
        %v3549 = vsel %vm3533, %v3530, -inf
        %3550 = vmax.xlane.f32.xlu0 %v3549
        %v3551 = vpop.xlane.xlu0 %3550
        %v3552 = vsel %vm3533, %v3531, -inf
        %3553 = vmax.xlane.f32.xlu0 %v3552
        %v3554 = vpop.xlane.xlu0 %3553
        %v3555 = vsel %vm3533, %v3532, -inf
        %3556 = vmax.xlane.f32.xlu0 %v3555
        %v3557 = vpop.xlane.xlu0 %3556
        %v3558 = vsub.f32 %v3525, %v3536
        %v3559 = vsub.f32 %v3526, %v3539
        %v3560 = vsub.f32 %v3527, %v3542
        %v3561 = vsub.f32 %v3528, %v3545
        %v3562 = vsub.f32 %v3529, %v3548
        %v3563 = vsub.f32 %v3530, %v3551
        %v3564 = vsub.f32 %v3531, %v3554
        %v3565 = vsub.f32 %v3532, %v3557
        %v3566 = vmul.f32 %v3558, 1.442695
        %v3567 = vpow.pop %v3566
        %v3568 = vmul.f32 %v3559, 1.442695
        %v3569 = vpow.pop %v3568
        %v3570 = vmul.f32 %v3560, 1.442695
        %v3571 = vpow.pop %v3570
        %v3572 = vmul.f32 %v3561, 1.442695
        %v3573 = vpow.pop %v3572
        %v3574 = vmul.f32 %v3562, 1.442695
        %v3575 = vpow.pop %v3574
        %v3576 = vmul.f32 %v3563, 1.442695
        %v3577 = vpow.pop %v3576
        %v3578 = vmul.f32 %v3564, 1.442695
        %v3579 = vpow.pop %v3578
        %v3580 = vmul.f32 %v3565, 1.442695
        %v3581 = vpow.pop %v3580
        %v3582 = vsel %vm3533, %v3567, 0.0
        %3583 = vadd.xlane.f32.xlu0 %v3582
        %v3584 = vpop.xlane.xlu0 %3583
        %v3585 = vsel %vm3533, %v3569, 0.0
        %3586 = vadd.xlane.f32.xlu0 %v3585
        %v3587 = vpop.xlane.xlu0 %3586
        %v3588 = vsel %vm3533, %v3571, 0.0
        %3589 = vadd.xlane.f32.xlu0 %v3588
        %v3590 = vpop.xlane.xlu0 %3589
        %v3591 = vsel %vm3533, %v3573, 0.0
        %3592 = vadd.xlane.f32.xlu0 %v3591
        %v3593 = vpop.xlane.xlu0 %3592
        %v3594 = vsel %vm3533, %v3575, 0.0
        %3595 = vadd.xlane.f32.xlu0 %v3594
        %v3596 = vpop.xlane.xlu0 %3595
        %v3597 = vsel %vm3533, %v3577, 0.0
        %3598 = vadd.xlane.f32.xlu0 %v3597
        %v3599 = vpop.xlane.xlu0 %3598
        %v3600 = vsel %vm3533, %v3579, 0.0
        %3601 = vadd.xlane.f32.xlu0 %v3600
        %v3602 = vpop.xlane.xlu0 %3601
        %v3603 = vsel %vm3533, %v3581, 0.0
        %3604 = vadd.xlane.f32.xlu0 %v3603
        %v3605 = vpop.xlane.xlu0 %3604
        %v3606 = vrcp.pop %v3584
        %v3607 = vrcp.pop %v3587
        %v3608 = vrcp.pop %v3590
        %v3609 = vrcp.pop %v3593
        %v3610 = vrcp.pop %v3596
        %v3611 = vrcp.pop %v3599
        %v3612 = vrcp.pop %v3602
        %v3613 = vrcp.pop %v3605
        %v3614 = vmul.f32 %v3567, %v3606
        %v3615 = vmul.f32 %v3569, %v3607
        %v3616 = vmul.f32 %v3571, %v3608
        %v3617 = vmul.f32 %v3573, %v3609
        %v3618 = vmul.f32 %v3575, %v3610
        %v3619 = vmul.f32 %v3577, %v3611
        %v3620 = vmul.f32 %v3579, %v3612
        %v3621 = vmul.f32 %v3581, %v3613
        %v3622 = vld [vmem:[%s490] sm:$0xff]
        %v3623 = vld [vmem:[%s490 + $0x8] sm:$0xff]
        %3625 = vset.pattern.permute.xlu0 0
        %3626 = vperm.xlu0 %3625, %v3622
        %v3627 = vpop.permute.xlu0 %3626
        %3630 = vset.pattern.permute.xlu0 0
        %3631 = vperm.xlu0 %3630, %v3623
        %v3632 = vpop.permute.xlu0 %3631
        %v3634 = vmul.f32 %v3614, %v3627
        %v3635 = vmul.f32 %v3615, %v3632
        %v3636 = vmul.f32 %v3616, %v3627
        %v3637 = vmul.f32 %v3617, %v3632
        %v3638 = vmul.f32 %v3618, %v3627
        %v3639 = vmul.f32 %v3619, %v3632
        %v3640 = vmul.f32 %v3620, %v3627
        %v3641 = vmul.f32 %v3621, %v3632
        %v3642 = vpack.c.bf16 %v3634, %v3634
        %v3643 = vpack.c.bf16 %v3635, %v3635
        %v3644 = vpack.c.bf16 %v3636, %v3636
        %v3645 = vpack.c.bf16 %v3637, %v3637
        %v3646 = vpack.c.bf16 %v3638, %v3638
        %v3647 = vpack.c.bf16 %v3639, %v3639
        %v3648 = vpack.c.bf16 %v3640, %v3640
        %v3649 = vpack.c.bf16 %v3641, %v3641
        %v3651 = vsel %vm3533, %v3642, 0
        %vm3653 = vcmask 1043456
        %v3655 = vsel %vm3653, %v3126, 0
        %3657 = vmatprep.subr.bf16.mxu0 0
        %3658 = vmatpush1.bf16.msra.mxu0 0
        %3659 = vmatprep.subr.bf16.mxu0 0
        %3660 = vmatpush1.bf16.msra.mxu0 0
        %3661 = vmatprep.subr.bf16.mxu0 0
        %3662 = vmatpush1.bf16.msra.mxu0 0
        %3663 = vmatprep.subr.bf16.mxu0 0
        %3664 = vmatpush1.bf16.msra.mxu0 0
        %3665 = vmatprep.subr.bf16.mxu0 0
        %3666 = vmatpush1.bf16.msra.mxu0 0
        %3667 = vmatprep.subr.bf16.mxu0 0
        %3668 = vmatpush1.bf16.msra.mxu0 0
        %3669 = vmatprep.subr.bf16.mxu0 0
        %3670 = vmatpush1.bf16.msra.mxu0 0
        %3671 = vmatprep.subr.bf16.mxu0 0
        %3672 = vmatpush1.bf16.msra.mxu0 %v3655
        %3673 = vmatprep.subr.bf16.mxu0 0
        %3674 = vmatpush2.bf16.msra.mxu0 0
        %3675 = vmatprep.subr.bf16.mxu0 0
        %3676 = vmatpush2.bf16.msra.mxu0 0
        %3677 = vmatprep.subr.bf16.mxu0 0
        %3678 = vmatpush2.bf16.msra.mxu0 0
        %3679 = vmatprep.subr.bf16.mxu0 0
        %3680 = vmatpush2.bf16.msra.mxu0 0
        %3681 = vmatprep.subr.bf16.mxu0 0
        %3682 = vmatpush2.bf16.msra.mxu0 0
        %3683 = vmatprep.subr.bf16.mxu0 0
        %3684 = vmatpush2.bf16.msra.mxu0 0
        %3685 = vmatprep.subr.bf16.mxu0 0
        %3686 = vmatpush2.bf16.msra.mxu0 0
        %3687 = vmatprep.subr.bf16.mxu0 0
        %3688 = vmatpush2.bf16.msra.mxu0 0
        %3689 = vmatprep.mubr.bf16.mxu0 0
        %3690 = vmatmul.mubr.bf16.gmra.mxu0 %v3651
        %v3691 = vpop.f32.mrf.mxu0
        %v3692 = vadd.f32 0.0, %v3691
        %v3693 = vpop.f32.mrf.mxu0
        %v3694 = vpop.f32.mrf.mxu0
        %v3695 = vpop.f32.mrf.mxu0
        %3696 = vdwg.mxu0
        %v3698 = vsel %vm3533, %v3643, 0
        %v3701 = vsel %vm3653, %v3127, 0
        %3703 = vmatprep.subr.bf16.mxu0 0
        %3704 = vmatpush1.bf16.msra.mxu0 0
        %3705 = vmatprep.subr.bf16.mxu0 0
        %3706 = vmatpush1.bf16.msra.mxu0 0
        %3707 = vmatprep.subr.bf16.mxu0 0
        %3708 = vmatpush1.bf16.msra.mxu0 0
        %3709 = vmatprep.subr.bf16.mxu0 0
        %3710 = vmatpush1.bf16.msra.mxu0 0
        %3711 = vmatprep.subr.bf16.mxu0 0
        %3712 = vmatpush1.bf16.msra.mxu0 0
        %3713 = vmatprep.subr.bf16.mxu0 0
        %3714 = vmatpush1.bf16.msra.mxu0 0
        %3715 = vmatprep.subr.bf16.mxu0 0
        %3716 = vmatpush1.bf16.msra.mxu0 0
        %3717 = vmatprep.subr.bf16.mxu0 0
        %3718 = vmatpush1.bf16.msra.mxu0 %v3701
        %3719 = vmatprep.subr.bf16.mxu0 0
        %3720 = vmatpush2.bf16.msra.mxu0 0
        %3721 = vmatprep.subr.bf16.mxu0 0
        %3722 = vmatpush2.bf16.msra.mxu0 0
        %3723 = vmatprep.subr.bf16.mxu0 0
        %3724 = vmatpush2.bf16.msra.mxu0 0
        %3725 = vmatprep.subr.bf16.mxu0 0
        %3726 = vmatpush2.bf16.msra.mxu0 0
        %3727 = vmatprep.subr.bf16.mxu0 0
        %3728 = vmatpush2.bf16.msra.mxu0 0
        %3729 = vmatprep.subr.bf16.mxu0 0
        %3730 = vmatpush2.bf16.msra.mxu0 0
        %3731 = vmatprep.subr.bf16.mxu0 0
        %3732 = vmatpush2.bf16.msra.mxu0 0
        %3733 = vmatprep.subr.bf16.mxu0 0
        %3734 = vmatpush2.bf16.msra.mxu0 0
        %3735 = vmatprep.mubr.bf16.mxu0 0
        %3736 = vmatmul.mubr.bf16.gmra.mxu0 %v3698
        %v3737 = vpop.f32.mrf.mxu0
        %v3738 = vadd.f32 0.0, %v3737
        %v3739 = vpop.f32.mrf.mxu0
        %v3740 = vpop.f32.mrf.mxu0
        %v3741 = vpop.f32.mrf.mxu0
        %3742 = vdwg.mxu0
        %v3744 = vsel %vm3533, %v3644, 0
        %v3747 = vsel %vm3653, %v3128, 0
        %3749 = vmatprep.subr.bf16.mxu0 0
        %3750 = vmatpush1.bf16.msra.mxu0 0
        %3751 = vmatprep.subr.bf16.mxu0 0
        %3752 = vmatpush1.bf16.msra.mxu0 0
        %3753 = vmatprep.subr.bf16.mxu0 0
        %3754 = vmatpush1.bf16.msra.mxu0 0
        %3755 = vmatprep.subr.bf16.mxu0 0
        %3756 = vmatpush1.bf16.msra.mxu0 0
        %3757 = vmatprep.subr.bf16.mxu0 0
        %3758 = vmatpush1.bf16.msra.mxu0 0
        %3759 = vmatprep.subr.bf16.mxu0 0
        %3760 = vmatpush1.bf16.msra.mxu0 0
        %3761 = vmatprep.subr.bf16.mxu0 0
        %3762 = vmatpush1.bf16.msra.mxu0 0
        %3763 = vmatprep.subr.bf16.mxu0 0
        %3764 = vmatpush1.bf16.msra.mxu0 %v3747
        %3765 = vmatprep.subr.bf16.mxu0 0
        %3766 = vmatpush2.bf16.msra.mxu0 0
        %3767 = vmatprep.subr.bf16.mxu0 0
        %3768 = vmatpush2.bf16.msra.mxu0 0
        %3769 = vmatprep.subr.bf16.mxu0 0
        %3770 = vmatpush2.bf16.msra.mxu0 0
        %3771 = vmatprep.subr.bf16.mxu0 0
        %3772 = vmatpush2.bf16.msra.mxu0 0
        %3773 = vmatprep.subr.bf16.mxu0 0
        %3774 = vmatpush2.bf16.msra.mxu0 0
        %3775 = vmatprep.subr.bf16.mxu0 0
        %3776 = vmatpush2.bf16.msra.mxu0 0
        %3777 = vmatprep.subr.bf16.mxu0 0
        %3778 = vmatpush2.bf16.msra.mxu0 0
        %3779 = vmatprep.subr.bf16.mxu0 0
        %3780 = vmatpush2.bf16.msra.mxu0 0
        %3781 = vmatprep.mubr.bf16.mxu0 0
        %3782 = vmatmul.mubr.bf16.gmra.mxu0 %v3744
        %v3783 = vpop.f32.mrf.mxu0
        %v3784 = vadd.f32 0.0, %v3783
        %v3785 = vpop.f32.mrf.mxu0
        %v3786 = vpop.f32.mrf.mxu0
        %v3787 = vpop.f32.mrf.mxu0
        %3788 = vdwg.mxu0
        %v3790 = vsel %vm3533, %v3645, 0
        %v3793 = vsel %vm3653, %v3129, 0
        %3795 = vmatprep.subr.bf16.mxu0 0
        %3796 = vmatpush1.bf16.msra.mxu0 0
        %3797 = vmatprep.subr.bf16.mxu0 0
        %3798 = vmatpush1.bf16.msra.mxu0 0
        %3799 = vmatprep.subr.bf16.mxu0 0
        %3800 = vmatpush1.bf16.msra.mxu0 0
        %3801 = vmatprep.subr.bf16.mxu0 0
        %3802 = vmatpush1.bf16.msra.mxu0 0
        %3803 = vmatprep.subr.bf16.mxu0 0
        %3804 = vmatpush1.bf16.msra.mxu0 0
        %3805 = vmatprep.subr.bf16.mxu0 0
        %3806 = vmatpush1.bf16.msra.mxu0 0
        %3807 = vmatprep.subr.bf16.mxu0 0
        %3808 = vmatpush1.bf16.msra.mxu0 0
        %3809 = vmatprep.subr.bf16.mxu0 0
        %3810 = vmatpush1.bf16.msra.mxu0 %v3793
        %3811 = vmatprep.subr.bf16.mxu0 0
        %3812 = vmatpush2.bf16.msra.mxu0 0
        %3813 = vmatprep.subr.bf16.mxu0 0
        %3814 = vmatpush2.bf16.msra.mxu0 0
        %3815 = vmatprep.subr.bf16.mxu0 0
        %3816 = vmatpush2.bf16.msra.mxu0 0
        %3817 = vmatprep.subr.bf16.mxu0 0
        %3818 = vmatpush2.bf16.msra.mxu0 0
        %3819 = vmatprep.subr.bf16.mxu0 0
        %3820 = vmatpush2.bf16.msra.mxu0 0
        %3821 = vmatprep.subr.bf16.mxu0 0
        %3822 = vmatpush2.bf16.msra.mxu0 0
        %3823 = vmatprep.subr.bf16.mxu0 0
        %3824 = vmatpush2.bf16.msra.mxu0 0
        %3825 = vmatprep.subr.bf16.mxu0 0
        %3826 = vmatpush2.bf16.msra.mxu0 0
        %3827 = vmatprep.mubr.bf16.mxu0 0
        %3828 = vmatmul.mubr.bf16.gmra.mxu0 %v3790
        %v3829 = vpop.f32.mrf.mxu0
        %v3830 = vadd.f32 0.0, %v3829
        %v3831 = vpop.f32.mrf.mxu0
        %v3832 = vpop.f32.mrf.mxu0
        %v3833 = vpop.f32.mrf.mxu0
        %3834 = vdwg.mxu0
        %v3836 = vsel %vm3533, %v3646, 0
        %v3839 = vsel %vm3653, %v3130, 0
        %3841 = vmatprep.subr.bf16.mxu0 0
        %3842 = vmatpush1.bf16.msra.mxu0 0
        %3843 = vmatprep.subr.bf16.mxu0 0
        %3844 = vmatpush1.bf16.msra.mxu0 0
        %3845 = vmatprep.subr.bf16.mxu0 0
        %3846 = vmatpush1.bf16.msra.mxu0 0
        %3847 = vmatprep.subr.bf16.mxu0 0
        %3848 = vmatpush1.bf16.msra.mxu0 0
        %3849 = vmatprep.subr.bf16.mxu0 0
        %3850 = vmatpush1.bf16.msra.mxu0 0
        %3851 = vmatprep.subr.bf16.mxu0 0
        %3852 = vmatpush1.bf16.msra.mxu0 0
        %3853 = vmatprep.subr.bf16.mxu0 0
        %3854 = vmatpush1.bf16.msra.mxu0 0
        %3855 = vmatprep.subr.bf16.mxu0 0
        %3856 = vmatpush1.bf16.msra.mxu0 %v3839
        %3857 = vmatprep.subr.bf16.mxu0 0
        %3858 = vmatpush2.bf16.msra.mxu0 0
        %3859 = vmatprep.subr.bf16.mxu0 0
        %3860 = vmatpush2.bf16.msra.mxu0 0
        %3861 = vmatprep.subr.bf16.mxu0 0
        %3862 = vmatpush2.bf16.msra.mxu0 0
        %3863 = vmatprep.subr.bf16.mxu0 0
        %3864 = vmatpush2.bf16.msra.mxu0 0
        %3865 = vmatprep.subr.bf16.mxu0 0
        %3866 = vmatpush2.bf16.msra.mxu0 0
        %3867 = vmatprep.subr.bf16.mxu0 0
        %3868 = vmatpush2.bf16.msra.mxu0 0
        %3869 = vmatprep.subr.bf16.mxu0 0
        %3870 = vmatpush2.bf16.msra.mxu0 0
        %3871 = vmatprep.subr.bf16.mxu0 0
        %3872 = vmatpush2.bf16.msra.mxu0 0
        %3873 = vmatprep.mubr.bf16.mxu0 0
        %3874 = vmatmul.mubr.bf16.gmra.mxu0 %v3836
        %v3875 = vpop.f32.mrf.mxu0
        %v3876 = vadd.f32 0.0, %v3875
        %v3877 = vpop.f32.mrf.mxu0
        %v3878 = vpop.f32.mrf.mxu0
        %v3879 = vpop.f32.mrf.mxu0
        %3880 = vdwg.mxu0
        %v3882 = vsel %vm3533, %v3647, 0
        %v3885 = vsel %vm3653, %v3131, 0
        %3887 = vmatprep.subr.bf16.mxu0 0
        %3888 = vmatpush1.bf16.msra.mxu0 0
        %3889 = vmatprep.subr.bf16.mxu0 0
        %3890 = vmatpush1.bf16.msra.mxu0 0
        %3891 = vmatprep.subr.bf16.mxu0 0
        %3892 = vmatpush1.bf16.msra.mxu0 0
        %3893 = vmatprep.subr.bf16.mxu0 0
        %3894 = vmatpush1.bf16.msra.mxu0 0
        %3895 = vmatprep.subr.bf16.mxu0 0
        %3896 = vmatpush1.bf16.msra.mxu0 0
        %3897 = vmatprep.subr.bf16.mxu0 0
        %3898 = vmatpush1.bf16.msra.mxu0 0
        %3899 = vmatprep.subr.bf16.mxu0 0
        %3900 = vmatpush1.bf16.msra.mxu0 0
        %3901 = vmatprep.subr.bf16.mxu0 0
        %3902 = vmatpush1.bf16.msra.mxu0 %v3885
        %3903 = vmatprep.subr.bf16.mxu0 0
        %3904 = vmatpush2.bf16.msra.mxu0 0
        %3905 = vmatprep.subr.bf16.mxu0 0
        %3906 = vmatpush2.bf16.msra.mxu0 0
        %3907 = vmatprep.subr.bf16.mxu0 0
        %3908 = vmatpush2.bf16.msra.mxu0 0
        %3909 = vmatprep.subr.bf16.mxu0 0
        %3910 = vmatpush2.bf16.msra.mxu0 0
        %3911 = vmatprep.subr.bf16.mxu0 0
        %3912 = vmatpush2.bf16.msra.mxu0 0
        %3913 = vmatprep.subr.bf16.mxu0 0
        %3914 = vmatpush2.bf16.msra.mxu0 0
        %3915 = vmatprep.subr.bf16.mxu0 0
        %3916 = vmatpush2.bf16.msra.mxu0 0
        %3917 = vmatprep.subr.bf16.mxu0 0
        %3918 = vmatpush2.bf16.msra.mxu0 0
        %3919 = vmatprep.mubr.bf16.mxu0 0
        %3920 = vmatmul.mubr.bf16.gmra.mxu0 %v3882
        %v3921 = vpop.f32.mrf.mxu0
        %v3922 = vadd.f32 0.0, %v3921
        %v3923 = vpop.f32.mrf.mxu0
        %v3924 = vpop.f32.mrf.mxu0
        %v3925 = vpop.f32.mrf.mxu0
        %3926 = vdwg.mxu0
        %v3928 = vsel %vm3533, %v3648, 0
        %v3931 = vsel %vm3653, %v3132, 0
        %3933 = vmatprep.subr.bf16.mxu0 0
        %3934 = vmatpush1.bf16.msra.mxu0 0
        %3935 = vmatprep.subr.bf16.mxu0 0
        %3936 = vmatpush1.bf16.msra.mxu0 0
        %3937 = vmatprep.subr.bf16.mxu0 0
        %3938 = vmatpush1.bf16.msra.mxu0 0
        %3939 = vmatprep.subr.bf16.mxu0 0
        %3940 = vmatpush1.bf16.msra.mxu0 0
        %3941 = vmatprep.subr.bf16.mxu0 0
        %3942 = vmatpush1.bf16.msra.mxu0 0
        %3943 = vmatprep.subr.bf16.mxu0 0
        %3944 = vmatpush1.bf16.msra.mxu0 0
        %3945 = vmatprep.subr.bf16.mxu0 0
        %3946 = vmatpush1.bf16.msra.mxu0 0
        %3947 = vmatprep.subr.bf16.mxu0 0
        %3948 = vmatpush1.bf16.msra.mxu0 %v3931
        %3949 = vmatprep.subr.bf16.mxu0 0
        %3950 = vmatpush2.bf16.msra.mxu0 0
        %3951 = vmatprep.subr.bf16.mxu0 0
        %3952 = vmatpush2.bf16.msra.mxu0 0
        %3953 = vmatprep.subr.bf16.mxu0 0
        %3954 = vmatpush2.bf16.msra.mxu0 0
        %3955 = vmatprep.subr.bf16.mxu0 0
        %3956 = vmatpush2.bf16.msra.mxu0 0
        %3957 = vmatprep.subr.bf16.mxu0 0
        %3958 = vmatpush2.bf16.msra.mxu0 0
        %3959 = vmatprep.subr.bf16.mxu0 0
        %3960 = vmatpush2.bf16.msra.mxu0 0
        %3961 = vmatprep.subr.bf16.mxu0 0
        %3962 = vmatpush2.bf16.msra.mxu0 0
        %3963 = vmatprep.subr.bf16.mxu0 0
        %3964 = vmatpush2.bf16.msra.mxu0 0
        %3965 = vmatprep.mubr.bf16.mxu0 0
        %3966 = vmatmul.mubr.bf16.gmra.mxu0 %v3928
        %v3967 = vpop.f32.mrf.mxu0
        %v3968 = vadd.f32 0.0, %v3967
        %v3969 = vpop.f32.mrf.mxu0
        %v3970 = vpop.f32.mrf.mxu0
        %v3971 = vpop.f32.mrf.mxu0
        %3972 = vdwg.mxu0
        %v3974 = vsel %vm3533, %v3649, 0
        %v3977 = vsel %vm3653, %v3133, 0
        %3979 = vmatprep.subr.bf16.mxu0 0
        %3980 = vmatpush1.bf16.msra.mxu0 0
        %3981 = vmatprep.subr.bf16.mxu0 0
        %3982 = vmatpush1.bf16.msra.mxu0 0
        %3983 = vmatprep.subr.bf16.mxu0 0
        %3984 = vmatpush1.bf16.msra.mxu0 0
        %3985 = vmatprep.subr.bf16.mxu0 0
        %3986 = vmatpush1.bf16.msra.mxu0 0
        %3987 = vmatprep.subr.bf16.mxu0 0
        %3988 = vmatpush1.bf16.msra.mxu0 0
        %3989 = vmatprep.subr.bf16.mxu0 0
        %3990 = vmatpush1.bf16.msra.mxu0 0
        %3991 = vmatprep.subr.bf16.mxu0 0
        %3992 = vmatpush1.bf16.msra.mxu0 0
        %3993 = vmatprep.subr.bf16.mxu0 0
        %3994 = vmatpush1.bf16.msra.mxu0 %v3977
        %3995 = vmatprep.subr.bf16.mxu0 0
        %3996 = vmatpush2.bf16.msra.mxu0 0
        %3997 = vmatprep.subr.bf16.mxu0 0
        %3998 = vmatpush2.bf16.msra.mxu0 0
        %3999 = vmatprep.subr.bf16.mxu0 0
        %4000 = vmatpush2.bf16.msra.mxu0 0
        %4001 = vmatprep.subr.bf16.mxu0 0
        %4002 = vmatpush2.bf16.msra.mxu0 0
        %4003 = vmatprep.subr.bf16.mxu0 0
        %4004 = vmatpush2.bf16.msra.mxu0 0
        %4005 = vmatprep.subr.bf16.mxu0 0
        %4006 = vmatpush2.bf16.msra.mxu0 0
        %4007 = vmatprep.subr.bf16.mxu0 0
        %4008 = vmatpush2.bf16.msra.mxu0 0
        %4009 = vmatprep.subr.bf16.mxu0 0
        %4010 = vmatpush2.bf16.msra.mxu0 0
        %4011 = vmatprep.mubr.bf16.mxu0 0
        %4012 = vmatmul.mubr.bf16.gmra.mxu0 %v3974
        %v4013 = vpop.f32.mrf.mxu0
        %v4014 = vadd.f32 0.0, %v4013
        %v4015 = vpop.f32.mrf.mxu0
        %v4016 = vpop.f32.mrf.mxu0
        %v4017 = vpop.f32.mrf.mxu0
        %4018 = vdwg.mxu0
        %v4019 = vcombine.low %v3692, %v3876
        %v4020 = vcombine.high %v3692, %v3876
        %v4022 = vunpack.c.l.s4 1983009808
        %v4023 = vunpack.c.0.s8 %v4022
        %v4024 = vlaneseq
        %v4025 = vshrl.u32 %v4024, 7
        %v4026 = vsub.s32 %v4023, %v4025
        %v4027 = vrot.slane %v4019, %v4026
        %v4029 = vunpack.c.l.s4 1983009808
        %v4030 = vunpack.c.0.s8 %v4029
        %v4031 = vlaneseq
        %v4032 = vshrl.u32 %v4031, 7
        %v4033 = vsub.s32 %v4030, %v4032
        %v4034 = vrot.slane %v4020, %v4033
        %v4035 = vcombine.low %v3784, %v3968
        %v4036 = vcombine.high %v3784, %v3968
        %v4038 = vunpack.c.l.s4 1983009808
        %v4039 = vunpack.c.0.s8 %v4038
        %v4040 = vlaneseq
        %v4041 = vshrl.u32 %v4040, 7
        %v4042 = vsub.s32 %v4039, %v4041
        %v4043 = vrot.slane %v4035, %v4042
        %v4045 = vunpack.c.l.s4 1983009808
        %v4046 = vunpack.c.0.s8 %v4045
        %v4047 = vlaneseq
        %v4048 = vshrl.u32 %v4047, 7
        %v4049 = vsub.s32 %v4046, %v4048
        %v4050 = vrot.slane %v4036, %v4049
        %v4051 = vcombine.low %v4027, %v4043
        %v4052 = vcombine.high %v4027, %v4043
        %v4054 = vunpack.c.l.s4 1934713408
        %v4055 = vunpack.c.0.s8 %v4054
        %v4056 = vlaneseq
        %v4057 = vshrl.u32 %v4056, 7
        %v4058 = vsub.s32 %v4055, %v4057
        %v4059 = vrot.slane %v4051, %v4058
        %v4061 = vunpack.c.l.s4 1934713408
        %v4062 = vunpack.c.0.s8 %v4061
        %v4063 = vlaneseq
        %v4064 = vshrl.u32 %v4063, 7
        %v4065 = vsub.s32 %v4062, %v4064
        %v4066 = vrot.slane %v4052, %v4065
        %v4067 = vcombine.low %v4034, %v4050
        %v4068 = vcombine.high %v4034, %v4050
        %v4070 = vunpack.c.l.s4 1934713408
        %v4071 = vunpack.c.0.s8 %v4070
        %v4072 = vlaneseq
        %v4073 = vshrl.u32 %v4072, 7
        %v4074 = vsub.s32 %v4071, %v4073
        %v4075 = vrot.slane %v4067, %v4074
        %v4077 = vunpack.c.l.s4 1934713408
        %v4078 = vunpack.c.0.s8 %v4077
        %v4079 = vlaneseq
        %v4080 = vshrl.u32 %v4079, 7
        %v4081 = vsub.s32 %v4078, %v4080
        %v4082 = vrot.slane %v4068, %v4081
        %v4083 = vcombine.high %v4059, 0.0
        %v4084 = vcombine.high %v4066, 0.0
        %v4085 = vcombine.high %v4075, 0.0
        %v4086 = vcombine.high %v4082, 0.0
        %v4087 = vcombine.low %v3738, %v3922
        %v4088 = vcombine.high %v3738, %v3922
        %v4090 = vunpack.c.l.s4 1983009808
        %v4091 = vunpack.c.0.s8 %v4090
        %v4092 = vlaneseq
        %v4093 = vshrl.u32 %v4092, 7
        %v4094 = vsub.s32 %v4091, %v4093
        %v4095 = vrot.slane %v4087, %v4094
        %v4097 = vunpack.c.l.s4 1983009808
        %v4098 = vunpack.c.0.s8 %v4097
        %v4099 = vlaneseq
        %v4100 = vshrl.u32 %v4099, 7
        %v4101 = vsub.s32 %v4098, %v4100
        %v4102 = vrot.slane %v4088, %v4101
        %v4103 = vcombine.low %v3830, %v4014
        %v4104 = vcombine.high %v3830, %v4014
        %v4106 = vunpack.c.l.s4 1983009808
        %v4107 = vunpack.c.0.s8 %v4106
        %v4108 = vlaneseq
        %v4109 = vshrl.u32 %v4108, 7
        %v4110 = vsub.s32 %v4107, %v4109
        %v4111 = vrot.slane %v4103, %v4110
        %v4113 = vunpack.c.l.s4 1983009808
        %v4114 = vunpack.c.0.s8 %v4113
        %v4115 = vlaneseq
        %v4116 = vshrl.u32 %v4115, 7
        %v4117 = vsub.s32 %v4114, %v4116
        %v4118 = vrot.slane %v4104, %v4117
        %v4119 = vcombine.low %v4095, %v4111
        %v4120 = vcombine.high %v4095, %v4111
        %v4122 = vunpack.c.l.s4 1934713408
        %v4123 = vunpack.c.0.s8 %v4122
        %v4124 = vlaneseq
        %v4125 = vshrl.u32 %v4124, 7
        %v4126 = vsub.s32 %v4123, %v4125
        %v4127 = vrot.slane %v4119, %v4126
        %v4129 = vunpack.c.l.s4 1934713408
        %v4130 = vunpack.c.0.s8 %v4129
        %v4131 = vlaneseq
        %v4132 = vshrl.u32 %v4131, 7
        %v4133 = vsub.s32 %v4130, %v4132
        %v4134 = vrot.slane %v4120, %v4133
        %v4135 = vcombine.low %v4102, %v4118
        %v4136 = vcombine.high %v4102, %v4118
        %v4138 = vunpack.c.l.s4 1934713408
        %v4139 = vunpack.c.0.s8 %v4138
        %v4140 = vlaneseq
        %v4141 = vshrl.u32 %v4140, 7
        %v4142 = vsub.s32 %v4139, %v4141
        %v4143 = vrot.slane %v4135, %v4142
        %v4145 = vunpack.c.l.s4 1934713408
        %v4146 = vunpack.c.0.s8 %v4145
        %v4147 = vlaneseq
        %v4148 = vshrl.u32 %v4147, 7
        %v4149 = vsub.s32 %v4146, %v4148
        %v4150 = vrot.slane %v4136, %v4149
        %v4151 = vcombine.high %v4127, 0.0
        %v4152 = vcombine.high %v4134, 0.0
        %v4153 = vcombine.high %v4143, 0.0
        %v4154 = vcombine.high %v4150, 0.0
        %v4155 = vcombine.low %v4059, %v4066
        %v4157 = vunpack.c.l.s4 1983009808
        %v4158 = vunpack.c.0.s8 %v4157
        %v4159 = vlaneseq
        %v4160 = vshrl.u32 %v4159, 7
        %v4161 = vsub.s32 %v4158, %v4160
        %v4162 = vrot.slane %v4155, %v4161
        %v4163 = vcombine.low %v4083, %v4084
        %v4165 = vunpack.c.l.s4 1983009808
        %v4166 = vunpack.c.0.s8 %v4165
        %v4167 = vlaneseq
        %v4168 = vshrl.u32 %v4167, 7
        %v4169 = vsub.s32 %v4166, %v4168
        %v4170 = vrot.slane %v4163, %v4169
        %v4171 = vcombine.low %v4075, %v4082
        %v4173 = vunpack.c.l.s4 1983009808
        %v4174 = vunpack.c.0.s8 %v4173
        %v4175 = vlaneseq
        %v4176 = vshrl.u32 %v4175, 7
        %v4177 = vsub.s32 %v4174, %v4176
        %v4178 = vrot.slane %v4171, %v4177
        %v4179 = vcombine.low %v4085, %v4086
        %v4181 = vunpack.c.l.s4 1983009808
        %v4182 = vunpack.c.0.s8 %v4181
        %v4183 = vlaneseq
        %v4184 = vshrl.u32 %v4183, 7
        %v4185 = vsub.s32 %v4182, %v4184
        %v4186 = vrot.slane %v4179, %v4185
        %v4187 = vcombine.low %v4162, %v4170
        %v4188 = vcombine.high %v4162, %v4170
        %v4190 = vunpack.c.l.s4 1934713408
        %v4191 = vunpack.c.0.s8 %v4190
        %v4192 = vlaneseq
        %v4193 = vshrl.u32 %v4192, 7
        %v4194 = vsub.s32 %v4191, %v4193
        %v4195 = vrot.slane %v4187, %v4194
        %v4197 = vunpack.c.l.s4 1934713408
        %v4198 = vunpack.c.0.s8 %v4197
        %v4199 = vlaneseq
        %v4200 = vshrl.u32 %v4199, 7
        %v4201 = vsub.s32 %v4198, %v4200
        %v4202 = vrot.slane %v4188, %v4201
        %v4203 = vcombine.low %v4178, %v4186
        %v4204 = vcombine.high %v4178, %v4186
        %v4206 = vunpack.c.l.s4 1934713408
        %v4207 = vunpack.c.0.s8 %v4206
        %v4208 = vlaneseq
        %v4209 = vshrl.u32 %v4208, 7
        %v4210 = vsub.s32 %v4207, %v4209
        %v4211 = vrot.slane %v4203, %v4210
        %v4213 = vunpack.c.l.s4 1934713408
        %v4214 = vunpack.c.0.s8 %v4213
        %v4215 = vlaneseq
        %v4216 = vshrl.u32 %v4215, 7
        %v4217 = vsub.s32 %v4214, %v4216
        %v4218 = vrot.slane %v4204, %v4217
        %v4219 = vcombine.low %v4195, %v4211
        %v4220 = vcombine.high %v4195, %v4211
        %v4221 = vcombine.low %v4202, %v4218
        %v4222 = vcombine.high %v4202, %v4218
        %v4223 = vcombine.low %v4127, %v4134
        %v4225 = vunpack.c.l.s4 1983009808
        %v4226 = vunpack.c.0.s8 %v4225
        %v4227 = vlaneseq
        %v4228 = vshrl.u32 %v4227, 7
        %v4229 = vsub.s32 %v4226, %v4228
        %v4230 = vrot.slane %v4223, %v4229
        %v4231 = vcombine.low %v4151, %v4152
        %v4233 = vunpack.c.l.s4 1983009808
        %v4234 = vunpack.c.0.s8 %v4233
        %v4235 = vlaneseq
        %v4236 = vshrl.u32 %v4235, 7
        %v4237 = vsub.s32 %v4234, %v4236
        %v4238 = vrot.slane %v4231, %v4237
        %v4239 = vcombine.low %v4143, %v4150
        %v4241 = vunpack.c.l.s4 1983009808
        %v4242 = vunpack.c.0.s8 %v4241
        %v4243 = vlaneseq
        %v4244 = vshrl.u32 %v4243, 7
        %v4245 = vsub.s32 %v4242, %v4244
        %v4246 = vrot.slane %v4239, %v4245
        %v4247 = vcombine.low %v4153, %v4154
        %v4249 = vunpack.c.l.s4 1983009808
        %v4250 = vunpack.c.0.s8 %v4249
        %v4251 = vlaneseq
        %v4252 = vshrl.u32 %v4251, 7
        %v4253 = vsub.s32 %v4250, %v4252
        %v4254 = vrot.slane %v4247, %v4253
        %v4255 = vcombine.low %v4230, %v4238
        %v4256 = vcombine.high %v4230, %v4238
        %v4258 = vunpack.c.l.s4 1934713408
        %v4259 = vunpack.c.0.s8 %v4258
        %v4260 = vlaneseq
        %v4261 = vshrl.u32 %v4260, 7
        %v4262 = vsub.s32 %v4259, %v4261
        %v4263 = vrot.slane %v4255, %v4262
        %v4265 = vunpack.c.l.s4 1934713408
        %v4266 = vunpack.c.0.s8 %v4265
        %v4267 = vlaneseq
        %v4268 = vshrl.u32 %v4267, 7
        %v4269 = vsub.s32 %v4266, %v4268
        %v4270 = vrot.slane %v4256, %v4269
        %v4271 = vcombine.low %v4246, %v4254
        %v4272 = vcombine.high %v4246, %v4254
        %v4274 = vunpack.c.l.s4 1934713408
        %v4275 = vunpack.c.0.s8 %v4274
        %v4276 = vlaneseq
        %v4277 = vshrl.u32 %v4276, 7
        %v4278 = vsub.s32 %v4275, %v4277
        %v4279 = vrot.slane %v4271, %v4278
        %v4281 = vunpack.c.l.s4 1934713408
        %v4282 = vunpack.c.0.s8 %v4281
        %v4283 = vlaneseq
        %v4284 = vshrl.u32 %v4283, 7
        %v4285 = vsub.s32 %v4282, %v4284
        %v4286 = vrot.slane %v4272, %v4285
        %v4287 = vcombine.low %v4263, %v4279
        %v4288 = vcombine.high %v4263, %v4279
        %v4289 = vcombine.low %v4270, %v4286
        %v4290 = vcombine.high %v4270, %v4286
        %4293 = vrot.lane.b32.xlu0 %v4220, 64
        %v4294 = vpop.permute.xlu0 %4293
        %4295 = vrot.lane.b32.xlu0 %v4288, 64
        %v4296 = vpop.permute.xlu0 %4295
        %4301 = vrot.lane.b32.xlu0 %v4222, 64
        %v4302 = vpop.permute.xlu0 %4301
        %4303 = vrot.lane.b32.xlu0 %v4290, 64
        %v4304 = vpop.permute.xlu0 %4303
        %v4307 = vsel %vm3134, %v4219, %v4294
        %v4308 = vsel %vm3134, %v4287, %v4296
        %v4309 = vsel %vm3134, %v4221, %v4302
        %v4310 = vsel %vm3134, %v4289, %v4304
        %v4311 = vpack.c.bf16 %v4308, %v4307
        %v4312 = vpack.c.bf16 %v4310, %v4309
        %v4313 = vld [vmem:[#allocation8] sm:$0xff]
        %v4314 = vld [vmem:[#allocation8 + $0x8] sm:$0xff]
        %v4315 = vld [vmem:[#allocation8 + $0x10] sm:$0xff]
        %v4316 = vld [vmem:[#allocation8 + $0x18] sm:$0xff]
        %v4317 = vld [vmem:[#allocation8 + $0x20] sm:$0xff]
        %v4318 = vld [vmem:[#allocation8 + $0x28] sm:$0xff]
        %v4319 = vld [vmem:[#allocation8 + $0x30] sm:$0xff]
        %v4320 = vld [vmem:[#allocation8 + $0x38] sm:$0xff]
        %v4321 = vld [vmem:[#allocation8 + $0x40] sm:$0xff]
        %v4322 = vld [vmem:[#allocation8 + $0x48] sm:$0xff]
        %v4323 = vld [vmem:[#allocation8 + $0x50] sm:$0xff]
        %v4324 = vld [vmem:[#allocation8 + $0x58] sm:$0xff]
        %v4325 = vld [vmem:[#allocation8 + $0x60] sm:$0xff]
        %v4326 = vld [vmem:[#allocation8 + $0x68] sm:$0xff]
        %v4327 = vld [vmem:[#allocation8 + $0x70] sm:$0xff]
        %v4328 = vld [vmem:[#allocation8 + $0x78] sm:$0xff]
        %v4329 = vld [vmem:[#allocation8 + $0x80] sm:$0xff]
        %v4330 = vld [vmem:[#allocation8 + $0x88] sm:$0xff]
        %v4331 = vld [vmem:[#allocation8 + $0x90] sm:$0xff]
        %v4332 = vld [vmem:[#allocation8 + $0x98] sm:$0xff]
        %v4333 = vld [vmem:[#allocation8 + $0xa0] sm:$0xff]
        %v4334 = vld [vmem:[#allocation8 + $0xa8] sm:$0xff]
        %v4335 = vld [vmem:[#allocation8 + $0xb0] sm:$0xff]
        %v4336 = vld [vmem:[#allocation8 + $0xb8] sm:$0xff]
        %v4337 = vld [vmem:[#allocation8 + $0xc0] sm:$0xff]
        %v4338 = vld [vmem:[#allocation8 + $0xc8] sm:$0xff]
        %v4339 = vld [vmem:[#allocation8 + $0xd0] sm:$0xff]
        %v4340 = vld [vmem:[#allocation8 + $0xd8] sm:$0xff]
        %v4341 = vld [vmem:[#allocation8 + $0xe0] sm:$0xff]
        %v4342 = vld [vmem:[#allocation8 + $0xe8] sm:$0xff]
        %v4343 = vld [vmem:[#allocation8 + $0xf0] sm:$0xff]
        %v4344 = vld [vmem:[#allocation8 + $0xf8] sm:$0xff]
        %v4345 = vld [vmem:[%s8] sm:$0x3]
        %v4347 = vlaneseq
        %v4348 = vshrl.u32 %v4347, 7
        %v4349 = vsub.s32 0, %v4348
        %v4350 = vrot.slane %v4345, %v4349
        %v4351 = vlaneseq
        %v4352 = vshrl.u32 %v4351, 7
        %v4353 = vsub.s32 1, %v4352
        %v4354 = vrot.slane %v4345, %v4353
        %v4389 = vunpack.c.l.b16 %v4313
        %v4390 = vunpack.c.h.b16 %v4313
        %v4391 = vunpack.c.l.b16 %v4314
        %v4392 = vunpack.c.h.b16 %v4314
        %v4393 = vunpack.c.l.b16 %v4315
        %v4394 = vunpack.c.h.b16 %v4315
        %v4395 = vunpack.c.l.b16 %v4316
        %v4396 = vunpack.c.h.b16 %v4316
        %v4397 = vunpack.c.l.b16 %v4317
        %v4398 = vunpack.c.h.b16 %v4317
        %v4399 = vunpack.c.l.b16 %v4318
        %v4400 = vunpack.c.h.b16 %v4318
        %v4401 = vunpack.c.l.b16 %v4319
        %v4402 = vunpack.c.h.b16 %v4319
        %v4403 = vunpack.c.l.b16 %v4320
        %v4404 = vunpack.c.h.b16 %v4320
        %v4405 = vunpack.c.l.b16 %v4321
        %v4406 = vunpack.c.h.b16 %v4321
        %v4407 = vunpack.c.l.b16 %v4322
        %v4408 = vunpack.c.h.b16 %v4322
        %v4409 = vunpack.c.l.b16 %v4323
        %v4410 = vunpack.c.h.b16 %v4323
        %v4411 = vunpack.c.l.b16 %v4324
        %v4412 = vunpack.c.h.b16 %v4324
        %v4413 = vunpack.c.l.b16 %v4325
        %v4414 = vunpack.c.h.b16 %v4325
        %v4415 = vunpack.c.l.b16 %v4326
        %v4416 = vunpack.c.h.b16 %v4326
        %v4417 = vunpack.c.l.b16 %v4327
        %v4418 = vunpack.c.h.b16 %v4327
        %v4419 = vunpack.c.l.b16 %v4328
        %v4420 = vunpack.c.h.b16 %v4328
        %v4421 = vunpack.c.l.b16 %v4329
        %v4422 = vunpack.c.h.b16 %v4329
        %v4423 = vunpack.c.l.b16 %v4330
        %v4424 = vunpack.c.h.b16 %v4330
        %v4425 = vunpack.c.l.b16 %v4331
        %v4426 = vunpack.c.h.b16 %v4331
        %v4427 = vunpack.c.l.b16 %v4332
        %v4428 = vunpack.c.h.b16 %v4332
        %v4429 = vunpack.c.l.b16 %v4333
        %v4430 = vunpack.c.h.b16 %v4333
        %v4431 = vunpack.c.l.b16 %v4334
        %v4432 = vunpack.c.h.b16 %v4334
        %v4433 = vunpack.c.l.b16 %v4335
        %v4434 = vunpack.c.h.b16 %v4335
        %v4435 = vunpack.c.l.b16 %v4336
        %v4436 = vunpack.c.h.b16 %v4336
        %v4437 = vunpack.c.l.b16 %v4337
        %v4438 = vunpack.c.h.b16 %v4337
        %v4439 = vunpack.c.l.b16 %v4338
        %v4440 = vunpack.c.h.b16 %v4338
        %v4441 = vunpack.c.l.b16 %v4339
        %v4442 = vunpack.c.h.b16 %v4339
        %v4443 = vunpack.c.l.b16 %v4340
        %v4444 = vunpack.c.h.b16 %v4340
        %v4445 = vunpack.c.l.b16 %v4341
        %v4446 = vunpack.c.h.b16 %v4341
        %v4447 = vunpack.c.l.b16 %v4342
        %v4448 = vunpack.c.h.b16 %v4342
        %v4449 = vunpack.c.l.b16 %v4343
        %v4450 = vunpack.c.h.b16 %v4343
        %v4451 = vunpack.c.l.b16 %v4344
        %v4452 = vunpack.c.h.b16 %v4344
        %v4453 = vpack.c.b16 %v4391, %v4389
        %v4454 = vpack.c.b16 %v4392, %v4390
        %v4455 = vpack.c.b16 %v4395, %v4393
        %v4456 = vpack.c.b16 %v4396, %v4394
        %v4457 = vpack.c.b16 %v4399, %v4397
        %v4458 = vpack.c.b16 %v4400, %v4398
        %v4459 = vpack.c.b16 %v4403, %v4401
        %v4460 = vpack.c.b16 %v4404, %v4402
        %v4461 = vpack.c.b16 %v4407, %v4405
        %v4462 = vpack.c.b16 %v4408, %v4406
        %v4463 = vpack.c.b16 %v4411, %v4409
        %v4464 = vpack.c.b16 %v4412, %v4410
        %v4465 = vpack.c.b16 %v4415, %v4413
        %v4466 = vpack.c.b16 %v4416, %v4414
        %v4467 = vpack.c.b16 %v4419, %v4417
        %v4468 = vpack.c.b16 %v4420, %v4418
        %v4469 = vpack.c.b16 %v4423, %v4421
        %v4470 = vpack.c.b16 %v4424, %v4422
        %v4471 = vpack.c.b16 %v4427, %v4425
        %v4472 = vpack.c.b16 %v4428, %v4426
        %v4473 = vpack.c.b16 %v4431, %v4429
        %v4474 = vpack.c.b16 %v4432, %v4430
        %v4475 = vpack.c.b16 %v4435, %v4433
        %v4476 = vpack.c.b16 %v4436, %v4434
        %v4477 = vpack.c.b16 %v4439, %v4437
        %v4478 = vpack.c.b16 %v4440, %v4438
        %v4479 = vpack.c.b16 %v4443, %v4441
        %v4480 = vpack.c.b16 %v4444, %v4442
        %v4481 = vpack.c.b16 %v4447, %v4445
        %v4482 = vpack.c.b16 %v4448, %v4446
        %v4483 = vpack.c.b16 %v4451, %v4449
        %v4484 = vpack.c.b16 %v4452, %v4450
        %4517 = vmatprep.subr.bf16.mxu0 %v4468
        %4518 = vmatpush1.bf16.msra.mxu0 %v4467
        %4519 = vmatprep.subr.bf16.mxu0 %v4466
        %4520 = vmatpush1.bf16.msra.mxu0 %v4465
        %4521 = vmatprep.subr.bf16.mxu0 %v4464
        %4522 = vmatpush1.bf16.msra.mxu0 %v4463
        %4523 = vmatprep.subr.bf16.mxu0 %v4462
        %4524 = vmatpush1.bf16.msra.mxu0 %v4461
        %4525 = vmatprep.subr.bf16.mxu0 %v4460
        %4526 = vmatpush1.bf16.msra.mxu0 %v4459
        %4527 = vmatprep.subr.bf16.mxu0 %v4458
        %4528 = vmatpush1.bf16.msra.mxu0 %v4457
        %4529 = vmatprep.subr.bf16.mxu0 %v4456
        %4530 = vmatpush1.bf16.msra.mxu0 %v4455
        %4531 = vmatprep.subr.bf16.mxu0 %v4454
        %4532 = vmatpush1.bf16.msra.mxu0 %v4453
        %4533 = vmatprep.subr.bf16.mxu0 %v4484
        %4534 = vmatpush2.bf16.msra.mxu0 %v4483
        %4535 = vmatprep.subr.bf16.mxu0 %v4482
        %4536 = vmatpush2.bf16.msra.mxu0 %v4481
        %4537 = vmatprep.subr.bf16.mxu0 %v4480
        %4538 = vmatpush2.bf16.msra.mxu0 %v4479
        %4539 = vmatprep.subr.bf16.mxu0 %v4478
        %4540 = vmatpush2.bf16.msra.mxu0 %v4477
        %4541 = vmatprep.subr.bf16.mxu0 %v4476
        %4542 = vmatpush2.bf16.msra.mxu0 %v4475
        %4543 = vmatprep.subr.bf16.mxu0 %v4474
        %4544 = vmatpush2.bf16.msra.mxu0 %v4473
        %4545 = vmatprep.subr.bf16.mxu0 %v4472
        %4546 = vmatpush2.bf16.msra.mxu0 %v4471
        %4547 = vmatprep.subr.bf16.mxu0 %v4470
        %4548 = vmatpush2.bf16.msra.mxu0 %v4469
        %4549 = vmatprep.mubr.bf16.mxu0 %v4312
        %4550 = vmatmul.mubr.bf16.gmra.mxu0 %v4311
        %v4551 = vpop.f32.mrf.mxu0
        %v4552 = vadd.f32 %v4350, %v4551
        %v4553 = vpop.f32.mrf.mxu0
        %v4554 = vadd.f32 %v4354, %v4553
        %v4555 = vpop.f32.mrf.mxu0
        %v4556 = vadd.f32 %v4350, %v4555
        %v4557 = vpop.f32.mrf.mxu0
        %v4558 = vadd.f32 %v4354, %v4557
        %4559 = vdwg.mxu0
        %v4560 = vadd.f32 %v4552, %v1503
        %v4561 = vadd.f32 %v4554, %v1504
        %v4562 = vadd.f32 %v4556, %v1505
        %v4563 = vadd.f32 %v4558, %v1506
        %v4564 = vadd.f32 %v4560, %v4561
        %4565 = vadd.xlane.f32.xlu0 %v4564
        %v4566 = vpop.xlane.xlu0 %4565
        %v4567 = vadd.f32 %v4562, %v4563
        %4568 = vadd.xlane.f32.xlu0 %v4567
        %v4569 = vpop.xlane.xlu0 %4568
        %v4570 = vrcp.pop 256.0
        %v4571 = vmul.f32 %v4566, %v4570
        %v4572 = vmul.f32 %v4569, %v4570
        %v4573 = vsub.f32 %v4560, %v4571
        %v4574 = vsub.f32 %v4561, %v4571
        %v4575 = vsub.f32 %v4562, %v4572
        %v4576 = vsub.f32 %v4563, %v4572
        %v4577 = vmul.f32 %v4573, %v4573
        %v4578 = vmul.f32 %v4574, %v4574
        %v4579 = vmul.f32 %v4575, %v4575
        %v4580 = vmul.f32 %v4576, %v4576
        %v4581 = vadd.f32 %v4577, %v4578
        %4582 = vadd.xlane.f32.xlu0 %v4581
        %v4583 = vpop.xlane.xlu0 %4582
        %v4584 = vadd.f32 %v4579, %v4580
        %4585 = vadd.xlane.f32.xlu0 %v4584
        %v4586 = vpop.xlane.xlu0 %4585
        %v4587 = vmul.f32 %v4583, %v4570
        %v4588 = vmul.f32 %v4586, %v4570
        %v4589 = vadd.f32 %v4587, 1e-12
        %v4590 = vadd.f32 %v4588, 1e-12
        %v4591 = vrsqrt.pop %v4589
        %v4592 = vrsqrt.pop %v4590
        %v4593 = vmul.f32 %v4573, %v4591
        %v4594 = vmul.f32 %v4574, %v4591
        %v4595 = vmul.f32 %v4575, %v4592
        %v4596 = vmul.f32 %v4576, %v4592
        %v4597 = vld [vmem:[%s9] sm:$0x3]
        %v4599 = vlaneseq
        %v4600 = vshrl.u32 %v4599, 7
        %v4601 = vsub.s32 0, %v4600
        %v4602 = vrot.slane %v4597, %v4601
        %v4603 = vlaneseq
        %v4604 = vshrl.u32 %v4603, 7
        %v4605 = vsub.s32 1, %v4604
        %v4606 = vrot.slane %v4597, %v4605
        %v4609 = vmul.f32 %v4593, %v4602
        %v4610 = vmul.f32 %v4594, %v4606
        %v4611 = vmul.f32 %v4595, %v4602
        %v4612 = vmul.f32 %v4596, %v4606
        %v4613 = vld [vmem:[%s10] sm:$0x3]
        %v4615 = vlaneseq
        %v4616 = vshrl.u32 %v4615, 7
        %v4617 = vsub.s32 0, %v4616
        %v4618 = vrot.slane %v4613, %v4617
        %v4619 = vlaneseq
        %v4620 = vshrl.u32 %v4619, 7
        %v4621 = vsub.s32 1, %v4620
        %v4622 = vrot.slane %v4613, %v4621
        %v4625 = vadd.f32 %v4609, %v4618
        %v4626 = vadd.f32 %v4610, %v4622
        %v4627 = vadd.f32 %v4611, %v4618
        %v4628 = vadd.f32 %v4612, %v4622
        %v4629 = vmul.f32 %v4625, 0.5
        %v4630 = vmul.f32 %v4626, 0.5
        %v4631 = vmul.f32 %v4627, 0.5
        %v4632 = vmul.f32 %v4628, 0.5
        %v4633 = vmul.f32 %v4625, %v1490
        %v4634 = vmul.f32 %v4626, %v1490
        %v4635 = vmul.f32 %v4627, %v1490
        %v4636 = vmul.f32 %v4628, %v1490
        %v4637 = verf.f32.pop %v4633
        %v4638 = verf.f32.pop %v4634
        %v4639 = verf.f32.pop %v4635
        %v4640 = verf.f32.pop %v4636
        %v4641 = vadd.f32 %v4637, 1.0
        %v4642 = vadd.f32 %v4638, 1.0
        %v4643 = vadd.f32 %v4639, 1.0
        %v4644 = vadd.f32 %v4640, 1.0
        %v4645 = vmul.f32 %v4629, %v4641
        %v4646 = vmul.f32 %v4630, %v4642
        %v4647 = vmul.f32 %v4631, %v4643
        %v4648 = vmul.f32 %v4632, %v4644
        %v4649 = vmul.f32 %v4645, %v1475
        %v4650 = vmul.f32 %v4646, %v1475
        %v4651 = vmul.f32 %v4647, %v1480
        %v4652 = vmul.f32 %v4648, %v1480
        %4653 = vst [vmem:[%s479] sm:$0xff] %v4649
        %4654 = vst [vmem:[%s479 + $0x8] sm:$0xff] %v4650
        %4655 = vst [vmem:[%s479 + $0x10] sm:$0xff] %v4651
        %4656 = vst [vmem:[%s479 + $0x18] sm:$0xff] %v4652
        %s4657 = sand.u32 %s284, 1
        %s4658 = scalar_lea.sflag [#allocation4], %s4657
        %s4659 = sand.u32 %s284, 1
        %s4660 = smul.addr %s4659, 32
        %s4661 = scalar_lea.vmem [#allocation10], %s4660
        // Predicated region
        $region81: #{tpu_custom_call.1} parent=63 // pred_check
          %p4662 = pneg %p294
        $region82: #{tpu_custom_call.1} parent=63 // pred_check_branch
          %4664 = sbr.rel (%p4662) target = $region84
        $region83: #{tpu_custom_call.1} parent=63 // pred_region
          %s4665 = smul.u32 2, %s30
          %s4667 = ssub.s32 512, 512
          %4668 = vsyncadd %s4658, %s4667
          %s4669 = smul.addr %s4665, 2
          %s4670 = smul.addr %s4669, 128
          %s4671 = scalar_lea.hbm %s11, %s4670
          %s4672 = sshll.u32 %s4661, 4
          %s4673 = int_to_ptr.vmem [resolvable:$true] %s4672
          %4678 = dma.vmem_to_hbm [thread:$0]  %s4673, 512, %s4671, %s4658, 256, 256, 16
        $region84: #{tpu_custom_call.1} parent=63 // pred_fallthru
          _
      $region64: #{tpu_custom_call.1} parent=5 // pred_fallthru
        _
      %p4679 = scmp.le.s32.totalorder 2, %s25
      // Predicated region
      $region85: #{tpu_custom_call.1} parent=5 // pred_check
        %p4680 = pneg %p4679
      $region86: #{tpu_custom_call.1} parent=5 // pred_check_branch
        %4682 = sbr.rel (%p4680) target = $region88
      $region87: #{tpu_custom_call.1} parent=5 // pred_region
        %s4683 = ssub.s32 %s25, 2
        // Predicated region
        $region89: #{tpu_custom_call.1} parent=87 // pred_check
          %p4684 = pneg %p300
        $region90: #{tpu_custom_call.1} parent=87 // pred_check_branch
          %4686 = sbr.rel (%p4684) target = $region92
        $region91: #{tpu_custom_call.1} parent=87 // pred_region
          %s4687 = sand.u32 %s285, 1
          %s4688 = scalar_lea.sflag [#allocation4], %s4687
          %s4689 = sand.u32 %s285, 1
          %s4690 = smul.addr %s4689, 32
          %s4691 = scalar_lea.vmem [#allocation10], %s4690
          %4692 = dma.done %s4688, 512
        $region92: #{tpu_custom_call.1} parent=87 // pred_fallthru
          _
      $region88: #{tpu_custom_call.1} parent=5 // pred_fallthru
        _
    $region6: #{tpu_custom_call.1} parent=1 // loop_footer
      %s29 = sadd.s32 1, %s25
    $region7: #{tpu_custom_call.1} parent=1 // loop_footer_branch
      %24 = sbr.rel target = $region3
    $region8: #{tpu_custom_call.1} parent=1 // loop_exit
      _
    %4693 = vsyncpa [#allocation3], 1
    %s4694 = scalar_lea.sflag [#allocation3], 1
    %4695 = vsyncpa %s4694, 1
    %4696 = vsyncpa [#allocation6], 1
    %4697 = vsyncpa [#allocation9], 1
    %4698 = vsyncpa [#allocation4], 1
    %s4699 = scalar_lea.sflag [#allocation4], 1
    %4700 = vsyncpa %s4699, 1

</llo_original>
